<compile_context>
chip_gen: v6e
topology: v6e:2x2x1
jax: 0.10.0
libtpu: 0.0.40
codegen_flags: <defaults>
</compile_context>

<pallas_src>
import functools

import numpy as np

import jax
import jax.numpy as jnp
from jax import lax
from jax.experimental import pallas as pl
from jax.experimental.pallas import tpu as pltpu


def _lepe_attention_kernel(q_ref, k_ref, v_ref, w_ref, b_ref, m_ref, o_ref, *,
                           num_heads, scale, res, block_b):
    # q_ref/k_ref/v_ref : (block_b, L, C)   channels-last, lane-dense
    # w_ref             : (27, C)           depthwise conv weights, tap-major
    # b_ref             : (1, C)            depthwise conv bias
    # m_ref             : (L, 27)           per-tap 0/1 boundary-validity columns
    # o_ref             : (block_b, L, C)
    _, L, C = o_ref.shape
    R = res
    d = C // num_heads
    CENTER = 13                         # tap (1,1,1): un-shifted, un-masked centre tap

    bias = b_ref[...]                   # (1, C)

    for s in range(block_b):            # unrolled sample-block loop
        q = q_ref[s] * scale            # scale folded once per sample (input dtype)
        k = k_ref[s]
        v = v_ref[s]

        # ---------------- attention: per-head QK^T / softmax / PV (MXU) --------------
        ctx_parts = []
        for h in range(num_heads):
            lo = h * d
            q_h = q[:, lo:lo + d]                                    # (L, d) lane slice
            k_h = k[:, lo:lo + d]
            v_h = v[:, lo:lo + d]
            s_h = lax.dot_general(q_h, k_h, (((1,), (1,)), ((), ())),
                                  preferred_element_type=jnp.float32)      # (L, L) f32
            s_h = s_h - jnp.max(s_h, axis=-1, keepdims=True)
            e_h = jnp.exp(s_h)
            r_h = pl.reciprocal(jnp.sum(e_h, axis=-1, keepdims=True), approx=True)
            # TODO(synk): attn_drop > 0 (training-mode dropout on the attention matrix)
            # is not implemented; with the module default attn_drop=0.0 / eval it is id.
            c_h = lax.dot_general(e_h.astype(v_h.dtype), v_h, (((1,), (0,)), ((), ())),
                                  preferred_element_type=jnp.float32) * r_h  # (L, d)
            ctx_parts.append(c_h)
        ctx = jnp.concatenate(ctx_parts, axis=-1) if num_heads > 1 else ctx_parts[0]

        # ---------------- LePE: depthwise 3x3x3 conv as 27 rolled+masked taps --------
        # Init the f32 accumulator with the centre tap (no zero-fill, no roll, no mask).
        acc = (v * w_ref[CENTER:CENTER + 1, :]).astype(jnp.float32)
        for dz in range(3):
            for dy in range(3):
                for dx in range(3):
                    if (dz, dy, dx) == (1, 1, 1):
                        continue
                    tap = dz * 9 + dy * 3 + dx
                    shift = (dz - 1) * R * R + (dy - 1) * R + (dx - 1)
                    # rolled[n] = v[(n + shift) mod L]; invalid wrap-arounds are masked.
                    rolled = pltpu.roll(v, shift=(-shift) % L, axis=0)
                    m_col = m_ref[:, tap:tap + 1]                    # (L, 1) 0/1 mask
                    acc = acc + ((rolled * m_col) *
                                 w_ref[tap:tap + 1, :]).astype(jnp.float32)

        # ---------------- single full-width lane-dense (L, C) store ------------------
        o_ref[s] = (ctx + acc + bias).astype(o_ref.dtype)


def _pick_block_b(batch, max_block=8):
    """Largest divisor of `batch` (capped) that still leaves >= 2 grid steps (v7x TCs)."""
    best = 1
    for blk in range(1, min(batch, max_block) + 1):
        if batch % blk == 0 and batch // blk >= 2:
            best = blk
    return best


def _tap_masks(resolution):
    """(L, 27) 0/1 boundary-validity masks for the 3x3x3 depthwise taps (host side)."""
    R = resolution
    L = R ** 3
    n = np.arange(L)
    hh, ww, gg = n // (R * R), (n // R) % R, n % R
    cols = []
    for dz in range(3):
        for dy in range(3):
            for dx in range(3):
                m = np.ones(L, bool)
                if dz == 0:
                    m &= hh >= 1
                elif dz == 2:
                    m &= hh <= R - 2
                if dy == 0:
                    m &= ww >= 1
                elif dy == 2:
                    m &= ww <= R - 2
                if dx == 0:
                    m &= gg >= 1
                elif dx == 2:
                    m &= gg <= R - 2
                cols.append(m)
    return np.stack(cols, axis=1).astype(np.float32)                # (L, 27)


@functools.partial(jax.jit,
                   static_argnames=("resolution", "num_heads", "qk_scale", "block_b"))
def lepe_attention(qkv, w_dw, b_dw, *, resolution, num_heads, qk_scale=None,
                   block_b=None):
    """qkv: (3, B, L, C) with L = resolution**3;  w_dw: (C, 1, 3, 3, 3);  b_dw: (C,)."""
    q, k, v = qkv[0], qkv[1], qkv[2]
    B, L, C = q.shape
    R = resolution
    assert L == R ** 3, "flatten img_tokens has wrong size"
    assert C % num_heads == 0
    d = C // num_heads
    scale = qk_scale if qk_scale is not None else d ** -0.5

    if block_b is None:
        block_b = _pick_block_b(B)
    assert B % block_b == 0

    # Layout-only boundary glue: tap-major depthwise weights with channels on the lane
    # axis, bias as a (1, C) row, and the (L, 27) boundary-mask columns for rolled taps.
    wdw = jnp.transpose(w_dw.reshape(C, 27), (1, 0))                 # (27, C)
    bdw = b_dw.reshape(1, C)
    masks = jnp.asarray(_tap_masks(R), dtype=v.dtype)                # (L, 27)

    kernel = functools.partial(_lepe_attention_kernel, num_heads=num_heads,
                               scale=scale, res=R, block_b=block_b)
    out = pl.pallas_call(
        kernel,
        out_shape=jax.ShapeDtypeStruct((B, L, C), q.dtype),
        grid_spec=pltpu.PrefetchScalarGridSpec(
            num_scalar_prefetch=0,
            grid=(B // block_b,),
            in_specs=[
                pl.BlockSpec((block_b, L, C), lambda i: (i, 0, 0)),
                pl.BlockSpec((block_b, L, C), lambda i: (i, 0, 0)),
                pl.BlockSpec((block_b, L, C), lambda i: (i, 0, 0)),
                pl.BlockSpec((27, C), lambda i: (0, 0)),
                pl.BlockSpec((1, C), lambda i: (0, 0)),
                pl.BlockSpec((L, 27), lambda i: (0, 0)),
            ],
            out_specs=pl.BlockSpec((block_b, L, C), lambda i: (i, 0, 0)),
        ),
        compiler_params=pltpu.CompilerParams(dimension_semantics=("parallel",)),
    )(q, k, v, wdw, bdw, masks)
    return out


def _ref_lepe_attention(qkv, w_dw, b_dw, *, resolution, num_heads, qk_scale=None):
    # Pure-JAX mirror of PyTorch LePEAttention.forward (eval mode, attn_drop = 0).
    q, k, v = qkv[0], qkv[1], qkv[2]
    B, L, C = q.shape
    R = resolution
    d = C // num_heads
    scale = qk_scale if qk_scale is not None else d ** -0.5

    def split_heads(x):                                              # (B,L,C)->(B,H,L,d)
        return x.reshape(B, L, num_heads, d).transpose(0, 2, 1, 3)

    qh = split_heads(q) * scale
    kh = split_heads(k)
    vh = split_heads(v)

    # get_lepe: depthwise Conv3d(k=3, pad=1, groups=C) on v laid out as (B, C, R, R, R).
    v_sp = jnp.transpose(v, (0, 2, 1)).reshape(B, C, R, R, R)
    lepe = lax.conv_general_dilated(
        v_sp, w_dw, window_strides=(1, 1, 1), padding=[(1, 1)] * 3,
        dimension_numbers=("NCDHW", "OIDHW", "NCDHW"), feature_group_count=C,
        precision=lax.Precision.HIGHEST)
    lepe = lepe + b_dw[None, :, None, None, None]
    lepe = lepe.reshape(B, num_heads, d, L).transpose(0, 1, 3, 2)    # (B, H, L, d)

    attn = jnp.einsum("bhld,bhmd->bhlm", qh, kh, precision=lax.Precision.HIGHEST)
    attn = jax.nn.softmax(attn, axis=-1)
    out = jnp.einsum("bhlm,bhmd->bhld", attn, vh, precision=lax.Precision.HIGHEST) + lepe
    return out.transpose(0, 2, 1, 3).reshape(B, L, C)


if __name__ == "__main__":
    # Small shapes consistent with the module: one full-resolution 3-D window per sample.
    B = 2
    resolution = 4                  # L = resolution**3 = 64 tokens
    dim = 128                       # lane-dense channel width
    num_heads = 4                   # head_dim = 32
    L = resolution ** 3

    key = jax.random.PRNGKey(0)
    kqkv, kw, kb = jax.random.split(key, 3)
    qkv = jax.random.normal(kqkv, (3, B, L, dim), jnp.float32)
    w_dw = jax.random.normal(kw, (dim, 1, 3, 3, 3), jnp.float32) * (1.0 / 27.0) ** 0.5
    b_dw = jax.random.normal(kb, (dim,), jnp.float32) * 0.1

    y = jax.block_until_ready(
        lepe_attention(qkv, w_dw, b_dw, resolution=resolution, num_heads=num_heads))
    y_ref = jax.block_until_ready(
        _ref_lepe_attention(qkv, w_dw, b_dw, resolution=resolution, num_heads=num_heads))

    assert y.shape == (B, L, dim)
    max_err = float(jnp.max(jnp.abs(y - y_ref)))
    # Tolerance loosened from 1e-4 because the kernel uses pl.reciprocal(approx=True) in
    # the softmax normalisation (per the perf review); real bugs produce errors >> 5e-3.
    assert bool(jnp.allclose(y, y_ref, atol=5e-3, rtol=5e-3)), max_err
    print("KERNEL_OK")
</pallas_src>

<mosaic_0001>
module attributes {stable_mosaic.version = 11 : i64} {
  func.func @_lepe_attention_kernel(%arg0: i32, %arg1: memref<1x64x128xf32, #tpu.memory_space<vmem>>, %arg2: memref<1x64x128xf32, #tpu.memory_space<vmem>>, %arg3: memref<1x64x128xf32, #tpu.memory_space<vmem>>, %arg4: memref<27x128xf32, #tpu.memory_space<vmem>>, %arg5: memref<1x128xf32, #tpu.memory_space<vmem>>, %arg6: memref<64x27xf32, #tpu.memory_space<vmem>>, %arg7: memref<1x64x128xf32, #tpu.memory_space<vmem>>) attributes {dimension_semantics = [#tpu.dimension_semantics<parallel>], iteration_bounds = array<i64: 2>, scalar_prefetch = 0 : i64, scratch_operands = 0 : i64, tpu.core_type = #tpu.core_type<tc>, window_params = [{transform_indices = @transform_0, window_bounds = array<i64: 1, 64, 128>}, {transform_indices = @transform_1, window_bounds = array<i64: 1, 64, 128>}, {transform_indices = @transform_2, window_bounds = array<i64: 1, 64, 128>}, {pipeline_mode = #tpu.pipeline_mode<synchronous>, transform_indices = @transform_3, window_bounds = array<i64: 27, 128>}, {pipeline_mode = #tpu.pipeline_mode<synchronous>, transform_indices = @transform_4, window_bounds = array<i64: 1, 128>}, {pipeline_mode = #tpu.pipeline_mode<synchronous>, transform_indices = @transform_5, window_bounds = array<i64: 64, 27>}, {transform_indices = @transform_6, window_bounds = array<i64: 1, 64, 128>}]} {
    %c0 = arith.constant 0 : index
    %c0_0 = arith.constant 0 : index
    %0 = vector.load %arg5[%c0, %c0_0] : memref<1x128xf32, #tpu.memory_space<vmem>>, vector<1x128xf32>
    %c0_1 = arith.constant 0 : index
    %c0_2 = arith.constant 0 : index
    %c0_3 = arith.constant 0 : index
    %1 = vector.load %arg1[%c0_1, %c0_2, %c0_3] : memref<1x64x128xf32, #tpu.memory_space<vmem>>, vector<1x64x128xf32>
    %2 = vector.shape_cast %1 : vector<1x64x128xf32> to vector<64x128xf32>
    %cst = arith.constant 0.176776692 : f32
    %3 = vector.broadcast %cst : f32 to vector<64x128xf32>
    %4 = arith.mulf %2, %3 : vector<64x128xf32>
    %c0_4 = arith.constant 0 : index
    %c0_5 = arith.constant 0 : index
    %c0_6 = arith.constant 0 : index
    %5 = vector.load %arg2[%c0_4, %c0_5, %c0_6] : memref<1x64x128xf32, #tpu.memory_space<vmem>>, vector<1x64x128xf32>
    %6 = vector.shape_cast %5 : vector<1x64x128xf32> to vector<64x128xf32>
    %c0_7 = arith.constant 0 : index
    %c0_8 = arith.constant 0 : index
    %c0_9 = arith.constant 0 : index
    %7 = vector.load %arg3[%c0_7, %c0_8, %c0_9] : memref<1x64x128xf32, #tpu.memory_space<vmem>>, vector<1x64x128xf32>
    %8 = vector.shape_cast %7 : vector<1x64x128xf32> to vector<64x128xf32>
    %9 = vector.extract_strided_slice %4 {offsets = [0, 0], sizes = [64, 32], strides = [1, 1]} : vector<64x128xf32> to vector<64x32xf32>
    %10 = vector.extract_strided_slice %6 {offsets = [0, 0], sizes = [64, 32], strides = [1, 1]} : vector<64x128xf32> to vector<64x32xf32>
    %11 = vector.extract_strided_slice %8 {offsets = [0, 0], sizes = [64, 32], strides = [1, 1]} : vector<64x128xf32> to vector<64x32xf32>
    %cst_10 = arith.constant dense<0.000000e+00> : vector<64x64xf32>
    %12 = tpu.matmul %9, %10, %cst_10 {dimension_numbers = #tpu.dot_dimension_numbers<[1], [1], [0], [0], [0, 0, 1, 0], [], []>} : vector<64x32xf32>, vector<64x32xf32>, vector<64x64xf32> -> vector<64x64xf32>
    %cst_11 = arith.constant dense<0xFF800000> : vector<64xf32>
    %13 = vector.multi_reduction <maximumf>, %12, %cst_11 [1] : vector<64x64xf32> to vector<64xf32>
    %14 = vector.shape_cast %13 : vector<64xf32> to vector<64x1xf32>
    %15 = vector.broadcast %14 : vector<64x1xf32> to vector<64x64xf32>
    %16 = arith.subf %12, %15 : vector<64x64xf32>
    %17 = math.exp %16 : vector<64x64xf32>
    %cst_12 = arith.constant dense<0.000000e+00> : vector<64xf32>
    %18 = vector.multi_reduction <add>, %17, %cst_12 [1] : vector<64x64xf32> to vector<64xf32>
    %19 = vector.shape_cast %18 : vector<64xf32> to vector<64x1xf32>
    %20 = tpu.reciprocal %19 {approx = true} : vector<64x1xf32> -> vector<64x1xf32>
    %cst_13 = arith.constant dense<0.000000e+00> : vector<64x32xf32>
    %21 = tpu.matmul %17, %11, %cst_13 {dimension_numbers = #tpu.dot_dimension_numbers<[1], [0], [0], [1], [0, 0, 1, 1], [], []>} : vector<64x64xf32>, vector<64x32xf32>, vector<64x32xf32> -> vector<64x32xf32>
    %22 = vector.broadcast %20 : vector<64x1xf32> to vector<64x32xf32>
    %23 = arith.mulf %21, %22 : vector<64x32xf32>
    %24 = vector.extract_strided_slice %4 {offsets = [0, 32], sizes = [64, 32], strides = [1, 1]} : vector<64x128xf32> to vector<64x32xf32>
    %25 = vector.extract_strided_slice %6 {offsets = [0, 32], sizes = [64, 32], strides = [1, 1]} : vector<64x128xf32> to vector<64x32xf32>
    %26 = vector.extract_strided_slice %8 {offsets = [0, 32], sizes = [64, 32], strides = [1, 1]} : vector<64x128xf32> to vector<64x32xf32>
    %cst_14 = arith.constant dense<0.000000e+00> : vector<64x64xf32>
    %27 = tpu.matmul %24, %25, %cst_14 {dimension_numbers = #tpu.dot_dimension_numbers<[1], [1], [0], [0], [0, 0, 1, 0], [], []>} : vector<64x32xf32>, vector<64x32xf32>, vector<64x64xf32> -> vector<64x64xf32>
    %cst_15 = arith.constant dense<0xFF800000> : vector<64xf32>
    %28 = vector.multi_reduction <maximumf>, %27, %cst_15 [1] : vector<64x64xf32> to vector<64xf32>
    %29 = vector.shape_cast %28 : vector<64xf32> to vector<64x1xf32>
    %30 = vector.broadcast %29 : vector<64x1xf32> to vector<64x64xf32>
    %31 = arith.subf %27, %30 : vector<64x64xf32>
    %32 = math.exp %31 : vector<64x64xf32>
    %cst_16 = arith.constant dense<0.000000e+00> : vector<64xf32>
    %33 = vector.multi_reduction <add>, %32, %cst_16 [1] : vector<64x64xf32> to vector<64xf32>
    %34 = vector.shape_cast %33 : vector<64xf32> to vector<64x1xf32>
    %35 = tpu.reciprocal %34 {approx = true} : vector<64x1xf32> -> vector<64x1xf32>
    %cst_17 = arith.constant dense<0.000000e+00> : vector<64x32xf32>
    %36 = tpu.matmul %32, %26, %cst_17 {dimension_numbers = #tpu.dot_dimension_numbers<[1], [0], [0], [1], [0, 0, 1, 1], [], []>} : vector<64x64xf32>, vector<64x32xf32>, vector<64x32xf32> -> vector<64x32xf32>
    %37 = vector.broadcast %35 : vector<64x1xf32> to vector<64x32xf32>
    %38 = arith.mulf %36, %37 : vector<64x32xf32>
    %39 = vector.extract_strided_slice %4 {offsets = [0, 64], sizes = [64, 32], strides = [1, 1]} : vector<64x128xf32> to vector<64x32xf32>
    %40 = vector.extract_strided_slice %6 {offsets = [0, 64], sizes = [64, 32], strides = [1, 1]} : vector<64x128xf32> to vector<64x32xf32>
    %41 = vector.extract_strided_slice %8 {offsets = [0, 64], sizes = [64, 32], strides = [1, 1]} : vector<64x128xf32> to vector<64x32xf32>
    %cst_18 = arith.constant dense<0.000000e+00> : vector<64x64xf32>
    %42 = tpu.matmul %39, %40, %cst_18 {dimension_numbers = #tpu.dot_dimension_numbers<[1], [1], [0], [0], [0, 0, 1, 0], [], []>} : vector<64x32xf32>, vector<64x32xf32>, vector<64x64xf32> -> vector<64x64xf32>
    %cst_19 = arith.constant dense<0xFF800000> : vector<64xf32>
    %43 = vector.multi_reduction <maximumf>, %42, %cst_19 [1] : vector<64x64xf32> to vector<64xf32>
    %44 = vector.shape_cast %43 : vector<64xf32> to vector<64x1xf32>
    %45 = vector.broadcast %44 : vector<64x1xf32> to vector<64x64xf32>
    %46 = arith.subf %42, %45 : vector<64x64xf32>
    %47 = math.exp %46 : vector<64x64xf32>
    %cst_20 = arith.constant dense<0.000000e+00> : vector<64xf32>
    %48 = vector.multi_reduction <add>, %47, %cst_20 [1] : vector<64x64xf32> to vector<64xf32>
    %49 = vector.shape_cast %48 : vector<64xf32> to vector<64x1xf32>
    %50 = tpu.reciprocal %49 {approx = true} : vector<64x1xf32> -> vector<64x1xf32>
    %cst_21 = arith.constant dense<0.000000e+00> : vector<64x32xf32>
    %51 = tpu.matmul %47, %41, %cst_21 {dimension_numbers = #tpu.dot_dimension_numbers<[1], [0], [0], [1], [0, 0, 1, 1], [], []>} : vector<64x64xf32>, vector<64x32xf32>, vector<64x32xf32> -> vector<64x32xf32>
    %52 = vector.broadcast %50 : vector<64x1xf32> to vector<64x32xf32>
    %53 = arith.mulf %51, %52 : vector<64x32xf32>
    %54 = vector.extract_strided_slice %4 {offsets = [0, 96], sizes = [64, 32], strides = [1, 1]} : vector<64x128xf32> to vector<64x32xf32>
    %55 = vector.extract_strided_slice %6 {offsets = [0, 96], sizes = [64, 32], strides = [1, 1]} : vector<64x128xf32> to vector<64x32xf32>
    %56 = vector.extract_strided_slice %8 {offsets = [0, 96], sizes = [64, 32], strides = [1, 1]} : vector<64x128xf32> to vector<64x32xf32>
    %cst_22 = arith.constant dense<0.000000e+00> : vector<64x64xf32>
    %57 = tpu.matmul %54, %55, %cst_22 {dimension_numbers = #tpu.dot_dimension_numbers<[1], [1], [0], [0], [0, 0, 1, 0], [], []>} : vector<64x32xf32>, vector<64x32xf32>, vector<64x64xf32> -> vector<64x64xf32>
    %cst_23 = arith.constant dense<0xFF800000> : vector<64xf32>
    %58 = vector.multi_reduction <maximumf>, %57, %cst_23 [1] : vector<64x64xf32> to vector<64xf32>
    %59 = vector.shape_cast %58 : vector<64xf32> to vector<64x1xf32>
    %60 = vector.broadcast %59 : vector<64x1xf32> to vector<64x64xf32>
    %61 = arith.subf %57, %60 : vector<64x64xf32>
    %62 = math.exp %61 : vector<64x64xf32>
    %cst_24 = arith.constant dense<0.000000e+00> : vector<64xf32>
    %63 = vector.multi_reduction <add>, %62, %cst_24 [1] : vector<64x64xf32> to vector<64xf32>
    %64 = vector.shape_cast %63 : vector<64xf32> to vector<64x1xf32>
    %65 = tpu.reciprocal %64 {approx = true} : vector<64x1xf32> -> vector<64x1xf32>
    %cst_25 = arith.constant dense<0.000000e+00> : vector<64x32xf32>
    %66 = tpu.matmul %62, %56, %cst_25 {dimension_numbers = #tpu.dot_dimension_numbers<[1], [0], [0], [1], [0, 0, 1, 1], [], []>} : vector<64x64xf32>, vector<64x32xf32>, vector<64x32xf32> -> vector<64x32xf32>
    %67 = vector.broadcast %65 : vector<64x1xf32> to vector<64x32xf32>
    %68 = arith.mulf %66, %67 : vector<64x32xf32>
    %69 = tpu.concatenate %23, %38, %53, %68 in 1 : vector<64x32xf32>, vector<64x32xf32>, vector<64x32xf32>, vector<64x32xf32> -> vector<64x128xf32>
    %c13 = arith.constant 13 : index
    %c0_26 = arith.constant 0 : index
    %70 = vector.load %arg4[%c13, %c0_26] : memref<27x128xf32, #tpu.memory_space<vmem>>, vector<1x128xf32>
    %71 = vector.broadcast %70 : vector<1x128xf32> to vector<64x128xf32>
    %72 = arith.mulf %8, %71 : vector<64x128xf32>
    %c21_i32 = arith.constant 21 : i32
    %73 = tpu.dynamic_rotate %8 by %c21_i32 dim 0 : vector<64x128xf32>, i32 -> vector<64x128xf32>
    %c0_27 = arith.constant 0 : index
    %c0_28 = arith.constant 0 : index
    %74 = vector.load %arg6[%c0_27, %c0_28] : memref<64x27xf32, #tpu.memory_space<vmem>>, vector<64x1xf32>
    %75 = vector.broadcast %74 : vector<64x1xf32> to vector<64x128xf32>
    %76 = arith.mulf %73, %75 : vector<64x128xf32>
    %c0_29 = arith.constant 0 : index
    %c0_30 = arith.constant 0 : index
    %77 = vector.load %arg4[%c0_29, %c0_30] : memref<27x128xf32, #tpu.memory_space<vmem>>, vector<1x128xf32>
    %78 = vector.broadcast %77 : vector<1x128xf32> to vector<64x128xf32>
    %79 = arith.mulf %76, %78 : vector<64x128xf32>
    %80 = arith.addf %72, %79 : vector<64x128xf32>
    %c20_i32 = arith.constant 20 : i32
    %81 = tpu.dynamic_rotate %8 by %c20_i32 dim 0 : vector<64x128xf32>, i32 -> vector<64x128xf32>
    %c0_31 = arith.constant 0 : index
    %c1 = arith.constant 1 : index
    %82 = vector.load %arg6[%c0_31, %c1] : memref<64x27xf32, #tpu.memory_space<vmem>>, vector<64x1xf32>
    %83 = vector.broadcast %82 : vector<64x1xf32> to vector<64x128xf32>
    %84 = arith.mulf %81, %83 : vector<64x128xf32>
    %c1_32 = arith.constant 1 : index
    %c0_33 = arith.constant 0 : index
    %85 = vector.load %arg4[%c1_32, %c0_33] : memref<27x128xf32, #tpu.memory_space<vmem>>, vector<1x128xf32>
    %86 = vector.broadcast %85 : vector<1x128xf32> to vector<64x128xf32>
    %87 = arith.mulf %84, %86 : vector<64x128xf32>
    %88 = arith.addf %80, %87 : vector<64x128xf32>
    %c19_i32 = arith.constant 19 : i32
    %89 = tpu.dynamic_rotate %8 by %c19_i32 dim 0 : vector<64x128xf32>, i32 -> vector<64x128xf32>
    %c0_34 = arith.constant 0 : index
    %c2 = arith.constant 2 : index
    %90 = vector.load %arg6[%c0_34, %c2] : memref<64x27xf32, #tpu.memory_space<vmem>>, vector<64x1xf32>
    %91 = vector.broadcast %90 : vector<64x1xf32> to vector<64x128xf32>
    %92 = arith.mulf %89, %91 : vector<64x128xf32>
    %c2_35 = arith.constant 2 : index
    %c0_36 = arith.constant 0 : index
    %93 = vector.load %arg4[%c2_35, %c0_36] : memref<27x128xf32, #tpu.memory_space<vmem>>, vector<1x128xf32>
    %94 = vector.broadcast %93 : vector<1x128xf32> to vector<64x128xf32>
    %95 = arith.mulf %92, %94 : vector<64x128xf32>
    %96 = arith.addf %88, %95 : vector<64x128xf32>
    %c17_i32 = arith.constant 17 : i32
    %97 = tpu.dynamic_rotate %8 by %c17_i32 dim 0 : vector<64x128xf32>, i32 -> vector<64x128xf32>
    %c0_37 = arith.constant 0 : index
    %c3 = arith.constant 3 : index
    %98 = vector.load %arg6[%c0_37, %c3] : memref<64x27xf32, #tpu.memory_space<vmem>>, vector<64x1xf32>
    %99 = vector.broadcast %98 : vector<64x1xf32> to vector<64x128xf32>
    %100 = arith.mulf %97, %99 : vector<64x128xf32>
    %c3_38 = arith.constant 3 : index
    %c0_39 = arith.constant 0 : index
    %101 = vector.load %arg4[%c3_38, %c0_39] : memref<27x128xf32, #tpu.memory_space<vmem>>, vector<1x128xf32>
    %102 = vector.broadcast %101 : vector<1x128xf32> to vector<64x128xf32>
    %103 = arith.mulf %100, %102 : vector<64x128xf32>
    %104 = arith.addf %96, %103 : vector<64x128xf32>
    %c16_i32 = arith.constant 16 : i32
    %105 = tpu.dynamic_rotate %8 by %c16_i32 dim 0 : vector<64x128xf32>, i32 -> vector<64x128xf32>
    %c0_40 = arith.constant 0 : index
    %c4 = arith.constant 4 : index
    %106 = vector.load %arg6[%c0_40, %c4] : memref<64x27xf32, #tpu.memory_space<vmem>>, vector<64x1xf32>
    %107 = vector.broadcast %106 : vector<64x1xf32> to vector<64x128xf32>
    %108 = arith.mulf %105, %107 : vector<64x128xf32>
    %c4_41 = arith.constant 4 : index
    %c0_42 = arith.constant 0 : index
    %109 = vector.load %arg4[%c4_41, %c0_42] : memref<27x128xf32, #tpu.memory_space<vmem>>, vector<1x128xf32>
    %110 = vector.broadcast %109 : vector<1x128xf32> to vector<64x128xf32>
    %111 = arith.mulf %108, %110 : vector<64x128xf32>
    %112 = arith.addf %104, %111 : vector<64x128xf32>
    %c15_i32 = arith.constant 15 : i32
    %113 = tpu.dynamic_rotate %8 by %c15_i32 dim 0 : vector<64x128xf32>, i32 -> vector<64x128xf32>
    %c0_43 = arith.constant 0 : index
    %c5 = arith.constant 5 : index
    %114 = vector.load %arg6[%c0_43, %c5] : memref<64x27xf32, #tpu.memory_space<vmem>>, vector<64x1xf32>
    %115 = vector.broadcast %114 : vector<64x1xf32> to vector<64x128xf32>
    %116 = arith.mulf %113, %115 : vector<64x128xf32>
    %c5_44 = arith.constant 5 : index
    %c0_45 = arith.constant 0 : index
    %117 = vector.load %arg4[%c5_44, %c0_45] : memref<27x128xf32, #tpu.memory_space<vmem>>, vector<1x128xf32>
    %118 = vector.broadcast %117 : vector<1x128xf32> to vector<64x128xf32>
    %119 = arith.mulf %116, %118 : vector<64x128xf32>
    %120 = arith.addf %112, %119 : vector<64x128xf32>
    %c13_i32 = arith.constant 13 : i32
    %121 = tpu.dynamic_rotate %8 by %c13_i32 dim 0 : vector<64x128xf32>, i32 -> vector<64x128xf32>
    %c0_46 = arith.constant 0 : index
    %c6 = arith.constant 6 : index
    %122 = vector.load %arg6[%c0_46, %c6] : memref<64x27xf32, #tpu.memory_space<vmem>>, vector<64x1xf32>
    %123 = vector.broadcast %122 : vector<64x1xf32> to vector<64x128xf32>
    %124 = arith.mulf %121, %123 : vector<64x128xf32>
    %c6_47 = arith.constant 6 : index
    %c0_48 = arith.constant 0 : index
    %125 = vector.load %arg4[%c6_47, %c0_48] : memref<27x128xf32, #tpu.memory_space<vmem>>, vector<1x128xf32>
    %126 = vector.broadcast %125 : vector<1x128xf32> to vector<64x128xf32>
    %127 = arith.mulf %124, %126 : vector<64x128xf32>
    %128 = arith.addf %120, %127 : vector<64x128xf32>
    %c12_i32 = arith.constant 12 : i32
    %129 = tpu.dynamic_rotate %8 by %c12_i32 dim 0 : vector<64x128xf32>, i32 -> vector<64x128xf32>
    %c0_49 = arith.constant 0 : index
    %c7 = arith.constant 7 : index
    %130 = vector.load %arg6[%c0_49, %c7] : memref<64x27xf32, #tpu.memory_space<vmem>>, vector<64x1xf32>
    %131 = vector.broadcast %130 : vector<64x1xf32> to vector<64x128xf32>
    %132 = arith.mulf %129, %131 : vector<64x128xf32>
    %c7_50 = arith.constant 7 : index
    %c0_51 = arith.constant 0 : index
    %133 = vector.load %arg4[%c7_50, %c0_51] : memref<27x128xf32, #tpu.memory_space<vmem>>, vector<1x128xf32>
    %134 = vector.broadcast %133 : vector<1x128xf32> to vector<64x128xf32>
    %135 = arith.mulf %132, %134 : vector<64x128xf32>
    %136 = arith.addf %128, %135 : vector<64x128xf32>
    %c11_i32 = arith.constant 11 : i32
    %137 = tpu.dynamic_rotate %8 by %c11_i32 dim 0 : vector<64x128xf32>, i32 -> vector<64x128xf32>
    %c0_52 = arith.constant 0 : index
    %c8 = arith.constant 8 : index
    %138 = vector.load %arg6[%c0_52, %c8] : memref<64x27xf32, #tpu.memory_space<vmem>>, vector<64x1xf32>
    %139 = vector.broadcast %138 : vector<64x1xf32> to vector<64x128xf32>
    %140 = arith.mulf %137, %139 : vector<64x128xf32>
    %c8_53 = arith.constant 8 : index
    %c0_54 = arith.constant 0 : index
    %141 = vector.load %arg4[%c8_53, %c0_54] : memref<27x128xf32, #tpu.memory_space<vmem>>, vector<1x128xf32>
    %142 = vector.broadcast %141 : vector<1x128xf32> to vector<64x128xf32>
    %143 = arith.mulf %140, %142 : vector<64x128xf32>
    %144 = arith.addf %136, %143 : vector<64x128xf32>
    %c5_i32 = arith.constant 5 : i32
    %145 = tpu.dynamic_rotate %8 by %c5_i32 dim 0 : vector<64x128xf32>, i32 -> vector<64x128xf32>
    %c0_55 = arith.constant 0 : index
    %c9 = arith.constant 9 : index
    %146 = vector.load %arg6[%c0_55, %c9] : memref<64x27xf32, #tpu.memory_space<vmem>>, vector<64x1xf32>
    %147 = vector.broadcast %146 : vector<64x1xf32> to vector<64x128xf32>
    %148 = arith.mulf %145, %147 : vector<64x128xf32>
    %c9_56 = arith.constant 9 : index
    %c0_57 = arith.constant 0 : index
    %149 = vector.load %arg4[%c9_56, %c0_57] : memref<27x128xf32, #tpu.memory_space<vmem>>, vector<1x128xf32>
    %150 = vector.broadcast %149 : vector<1x128xf32> to vector<64x128xf32>
    %151 = arith.mulf %148, %150 : vector<64x128xf32>
    %152 = arith.addf %144, %151 : vector<64x128xf32>
    %c4_i32 = arith.constant 4 : i32
    %153 = tpu.dynamic_rotate %8 by %c4_i32 dim 0 : vector<64x128xf32>, i32 -> vector<64x128xf32>
    %c0_58 = arith.constant 0 : index
    %c10 = arith.constant 10 : index
    %154 = vector.load %arg6[%c0_58, %c10] : memref<64x27xf32, #tpu.memory_space<vmem>>, vector<64x1xf32>
    %155 = vector.broadcast %154 : vector<64x1xf32> to vector<64x128xf32>
    %156 = arith.mulf %153, %155 : vector<64x128xf32>
    %c10_59 = arith.constant 10 : index
    %c0_60 = arith.constant 0 : index
    %157 = vector.load %arg4[%c10_59, %c0_60] : memref<27x128xf32, #tpu.memory_space<vmem>>, vector<1x128xf32>
    %158 = vector.broadcast %157 : vector<1x128xf32> to vector<64x128xf32>
    %159 = arith.mulf %156, %158 : vector<64x128xf32>
    %160 = arith.addf %152, %159 : vector<64x128xf32>
    %c3_i32 = arith.constant 3 : i32
    %161 = tpu.dynamic_rotate %8 by %c3_i32 dim 0 : vector<64x128xf32>, i32 -> vector<64x128xf32>
    %c0_61 = arith.constant 0 : index
    %c11 = arith.constant 11 : index
    %162 = vector.load %arg6[%c0_61, %c11] : memref<64x27xf32, #tpu.memory_space<vmem>>, vector<64x1xf32>
    %163 = vector.broadcast %162 : vector<64x1xf32> to vector<64x128xf32>
    %164 = arith.mulf %161, %163 : vector<64x128xf32>
    %c11_62 = arith.constant 11 : index
    %c0_63 = arith.constant 0 : index
    %165 = vector.load %arg4[%c11_62, %c0_63] : memref<27x128xf32, #tpu.memory_space<vmem>>, vector<1x128xf32>
    %166 = vector.broadcast %165 : vector<1x128xf32> to vector<64x128xf32>
    %167 = arith.mulf %164, %166 : vector<64x128xf32>
    %168 = arith.addf %160, %167 : vector<64x128xf32>
    %c1_i32 = arith.constant 1 : i32
    %169 = tpu.dynamic_rotate %8 by %c1_i32 dim 0 : vector<64x128xf32>, i32 -> vector<64x128xf32>
    %c0_64 = arith.constant 0 : index
    %c12 = arith.constant 12 : index
    %170 = vector.load %arg6[%c0_64, %c12] : memref<64x27xf32, #tpu.memory_space<vmem>>, vector<64x1xf32>
    %171 = vector.broadcast %170 : vector<64x1xf32> to vector<64x128xf32>
    %172 = arith.mulf %169, %171 : vector<64x128xf32>
    %c12_65 = arith.constant 12 : index
    %c0_66 = arith.constant 0 : index
    %173 = vector.load %arg4[%c12_65, %c0_66] : memref<27x128xf32, #tpu.memory_space<vmem>>, vector<1x128xf32>
    %174 = vector.broadcast %173 : vector<1x128xf32> to vector<64x128xf32>
    %175 = arith.mulf %172, %174 : vector<64x128xf32>
    %176 = arith.addf %168, %175 : vector<64x128xf32>
    %c63_i32 = arith.constant 63 : i32
    %177 = tpu.dynamic_rotate %8 by %c63_i32 dim 0 : vector<64x128xf32>, i32 -> vector<64x128xf32>
    %c0_67 = arith.constant 0 : index
    %c14 = arith.constant 14 : index
    %178 = vector.load %arg6[%c0_67, %c14] : memref<64x27xf32, #tpu.memory_space<vmem>>, vector<64x1xf32>
    %179 = vector.broadcast %178 : vector<64x1xf32> to vector<64x128xf32>
    %180 = arith.mulf %177, %179 : vector<64x128xf32>
    %c14_68 = arith.constant 14 : index
    %c0_69 = arith.constant 0 : index
    %181 = vector.load %arg4[%c14_68, %c0_69] : memref<27x128xf32, #tpu.memory_space<vmem>>, vector<1x128xf32>
    %182 = vector.broadcast %181 : vector<1x128xf32> to vector<64x128xf32>
    %183 = arith.mulf %180, %182 : vector<64x128xf32>
    %184 = arith.addf %176, %183 : vector<64x128xf32>
    %c61_i32 = arith.constant 61 : i32
    %185 = tpu.dynamic_rotate %8 by %c61_i32 dim 0 : vector<64x128xf32>, i32 -> vector<64x128xf32>
    %c0_70 = arith.constant 0 : index
    %c15 = arith.constant 15 : index
    %186 = vector.load %arg6[%c0_70, %c15] : memref<64x27xf32, #tpu.memory_space<vmem>>, vector<64x1xf32>
    %187 = vector.broadcast %186 : vector<64x1xf32> to vector<64x128xf32>
    %188 = arith.mulf %185, %187 : vector<64x128xf32>
    %c15_71 = arith.constant 15 : index
    %c0_72 = arith.constant 0 : index
    %189 = vector.load %arg4[%c15_71, %c0_72] : memref<27x128xf32, #tpu.memory_space<vmem>>, vector<1x128xf32>
    %190 = vector.broadcast %189 : vector<1x128xf32> to vector<64x128xf32>
    %191 = arith.mulf %188, %190 : vector<64x128xf32>
    %192 = arith.addf %184, %191 : vector<64x128xf32>
    %c60_i32 = arith.constant 60 : i32
    %193 = tpu.dynamic_rotate %8 by %c60_i32 dim 0 : vector<64x128xf32>, i32 -> vector<64x128xf32>
    %c0_73 = arith.constant 0 : index
    %c16 = arith.constant 16 : index
    %194 = vector.load %arg6[%c0_73, %c16] : memref<64x27xf32, #tpu.memory_space<vmem>>, vector<64x1xf32>
    %195 = vector.broadcast %194 : vector<64x1xf32> to vector<64x128xf32>
    %196 = arith.mulf %193, %195 : vector<64x128xf32>
    %c16_74 = arith.constant 16 : index
    %c0_75 = arith.constant 0 : index
    %197 = vector.load %arg4[%c16_74, %c0_75] : memref<27x128xf32, #tpu.memory_space<vmem>>, vector<1x128xf32>
    %198 = vector.broadcast %197 : vector<1x128xf32> to vector<64x128xf32>
    %199 = arith.mulf %196, %198 : vector<64x128xf32>
    %200 = arith.addf %192, %199 : vector<64x128xf32>
    %c59_i32 = arith.constant 59 : i32
    %201 = tpu.dynamic_rotate %8 by %c59_i32 dim 0 : vector<64x128xf32>, i32 -> vector<64x128xf32>
    %c0_76 = arith.constant 0 : index
    %c17 = arith.constant 17 : index
    %202 = vector.load %arg6[%c0_76, %c17] : memref<64x27xf32, #tpu.memory_space<vmem>>, vector<64x1xf32>
    %203 = vector.broadcast %202 : vector<64x1xf32> to vector<64x128xf32>
    %204 = arith.mulf %201, %203 : vector<64x128xf32>
    %c17_77 = arith.constant 17 : index
    %c0_78 = arith.constant 0 : index
    %205 = vector.load %arg4[%c17_77, %c0_78] : memref<27x128xf32, #tpu.memory_space<vmem>>, vector<1x128xf32>
    %206 = vector.broadcast %205 : vector<1x128xf32> to vector<64x128xf32>
    %207 = arith.mulf %204, %206 : vector<64x128xf32>
    %208 = arith.addf %200, %207 : vector<64x128xf32>
    %c53_i32 = arith.constant 53 : i32
    %209 = tpu.dynamic_rotate %8 by %c53_i32 dim 0 : vector<64x128xf32>, i32 -> vector<64x128xf32>
    %c0_79 = arith.constant 0 : index
    %c18 = arith.constant 18 : index
    %210 = vector.load %arg6[%c0_79, %c18] : memref<64x27xf32, #tpu.memory_space<vmem>>, vector<64x1xf32>
    %211 = vector.broadcast %210 : vector<64x1xf32> to vector<64x128xf32>
    %212 = arith.mulf %209, %211 : vector<64x128xf32>
    %c18_80 = arith.constant 18 : index
    %c0_81 = arith.constant 0 : index
    %213 = vector.load %arg4[%c18_80, %c0_81] : memref<27x128xf32, #tpu.memory_space<vmem>>, vector<1x128xf32>
    %214 = vector.broadcast %213 : vector<1x128xf32> to vector<64x128xf32>
    %215 = arith.mulf %212, %214 : vector<64x128xf32>
    %216 = arith.addf %208, %215 : vector<64x128xf32>
    %c52_i32 = arith.constant 52 : i32
    %217 = tpu.dynamic_rotate %8 by %c52_i32 dim 0 : vector<64x128xf32>, i32 -> vector<64x128xf32>
    %c0_82 = arith.constant 0 : index
    %c19 = arith.constant 19 : index
    %218 = vector.load %arg6[%c0_82, %c19] : memref<64x27xf32, #tpu.memory_space<vmem>>, vector<64x1xf32>
    %219 = vector.broadcast %218 : vector<64x1xf32> to vector<64x128xf32>
    %220 = arith.mulf %217, %219 : vector<64x128xf32>
    %c19_83 = arith.constant 19 : index
    %c0_84 = arith.constant 0 : index
    %221 = vector.load %arg4[%c19_83, %c0_84] : memref<27x128xf32, #tpu.memory_space<vmem>>, vector<1x128xf32>
    %222 = vector.broadcast %221 : vector<1x128xf32> to vector<64x128xf32>
    %223 = arith.mulf %220, %222 : vector<64x128xf32>
    %224 = arith.addf %216, %223 : vector<64x128xf32>
    %c51_i32 = arith.constant 51 : i32
    %225 = tpu.dynamic_rotate %8 by %c51_i32 dim 0 : vector<64x128xf32>, i32 -> vector<64x128xf32>
    %c0_85 = arith.constant 0 : index
    %c20 = arith.constant 20 : index
    %226 = vector.load %arg6[%c0_85, %c20] : memref<64x27xf32, #tpu.memory_space<vmem>>, vector<64x1xf32>
    %227 = vector.broadcast %226 : vector<64x1xf32> to vector<64x128xf32>
    %228 = arith.mulf %225, %227 : vector<64x128xf32>
    %c20_86 = arith.constant 20 : index
    %c0_87 = arith.constant 0 : index
    %229 = vector.load %arg4[%c20_86, %c0_87] : memref<27x128xf32, #tpu.memory_space<vmem>>, vector<1x128xf32>
    %230 = vector.broadcast %229 : vector<1x128xf32> to vector<64x128xf32>
    %231 = arith.mulf %228, %230 : vector<64x128xf32>
    %232 = arith.addf %224, %231 : vector<64x128xf32>
    %c49_i32 = arith.constant 49 : i32
    %233 = tpu.dynamic_rotate %8 by %c49_i32 dim 0 : vector<64x128xf32>, i32 -> vector<64x128xf32>
    %c0_88 = arith.constant 0 : index
    %c21 = arith.constant 21 : index
    %234 = vector.load %arg6[%c0_88, %c21] : memref<64x27xf32, #tpu.memory_space<vmem>>, vector<64x1xf32>
    %235 = vector.broadcast %234 : vector<64x1xf32> to vector<64x128xf32>
    %236 = arith.mulf %233, %235 : vector<64x128xf32>
    %c21_89 = arith.constant 21 : index
    %c0_90 = arith.constant 0 : index
    %237 = vector.load %arg4[%c21_89, %c0_90] : memref<27x128xf32, #tpu.memory_space<vmem>>, vector<1x128xf32>
    %238 = vector.broadcast %237 : vector<1x128xf32> to vector<64x128xf32>
    %239 = arith.mulf %236, %238 : vector<64x128xf32>
    %240 = arith.addf %232, %239 : vector<64x128xf32>
    %c48_i32 = arith.constant 48 : i32
    %241 = tpu.dynamic_rotate %8 by %c48_i32 dim 0 : vector<64x128xf32>, i32 -> vector<64x128xf32>
    %c0_91 = arith.constant 0 : index
    %c22 = arith.constant 22 : index
    %242 = vector.load %arg6[%c0_91, %c22] : memref<64x27xf32, #tpu.memory_space<vmem>>, vector<64x1xf32>
    %243 = vector.broadcast %242 : vector<64x1xf32> to vector<64x128xf32>
    %244 = arith.mulf %241, %243 : vector<64x128xf32>
    %c22_92 = arith.constant 22 : index
    %c0_93 = arith.constant 0 : index
    %245 = vector.load %arg4[%c22_92, %c0_93] : memref<27x128xf32, #tpu.memory_space<vmem>>, vector<1x128xf32>
    %246 = vector.broadcast %245 : vector<1x128xf32> to vector<64x128xf32>
    %247 = arith.mulf %244, %246 : vector<64x128xf32>
    %248 = arith.addf %240, %247 : vector<64x128xf32>
    %c47_i32 = arith.constant 47 : i32
    %249 = tpu.dynamic_rotate %8 by %c47_i32 dim 0 : vector<64x128xf32>, i32 -> vector<64x128xf32>
    %c0_94 = arith.constant 0 : index
    %c23 = arith.constant 23 : index
    %250 = vector.load %arg6[%c0_94, %c23] : memref<64x27xf32, #tpu.memory_space<vmem>>, vector<64x1xf32>
    %251 = vector.broadcast %250 : vector<64x1xf32> to vector<64x128xf32>
    %252 = arith.mulf %249, %251 : vector<64x128xf32>
    %c23_95 = arith.constant 23 : index
    %c0_96 = arith.constant 0 : index
    %253 = vector.load %arg4[%c23_95, %c0_96] : memref<27x128xf32, #tpu.memory_space<vmem>>, vector<1x128xf32>
    %254 = vector.broadcast %253 : vector<1x128xf32> to vector<64x128xf32>
    %255 = arith.mulf %252, %254 : vector<64x128xf32>
    %256 = arith.addf %248, %255 : vector<64x128xf32>
    %c45_i32 = arith.constant 45 : i32
    %257 = tpu.dynamic_rotate %8 by %c45_i32 dim 0 : vector<64x128xf32>, i32 -> vector<64x128xf32>
    %c0_97 = arith.constant 0 : index
    %c24 = arith.constant 24 : index
    %258 = vector.load %arg6[%c0_97, %c24] : memref<64x27xf32, #tpu.memory_space<vmem>>, vector<64x1xf32>
    %259 = vector.broadcast %258 : vector<64x1xf32> to vector<64x128xf32>
    %260 = arith.mulf %257, %259 : vector<64x128xf32>
    %c24_98 = arith.constant 24 : index
    %c0_99 = arith.constant 0 : index
    %261 = vector.load %arg4[%c24_98, %c0_99] : memref<27x128xf32, #tpu.memory_space<vmem>>, vector<1x128xf32>
    %262 = vector.broadcast %261 : vector<1x128xf32> to vector<64x128xf32>
    %263 = arith.mulf %260, %262 : vector<64x128xf32>
    %264 = arith.addf %256, %263 : vector<64x128xf32>
    %c44_i32 = arith.constant 44 : i32
    %265 = tpu.dynamic_rotate %8 by %c44_i32 dim 0 : vector<64x128xf32>, i32 -> vector<64x128xf32>
    %c0_100 = arith.constant 0 : index
    %c25 = arith.constant 25 : index
    %266 = vector.load %arg6[%c0_100, %c25] : memref<64x27xf32, #tpu.memory_space<vmem>>, vector<64x1xf32>
    %267 = vector.broadcast %266 : vector<64x1xf32> to vector<64x128xf32>
    %268 = arith.mulf %265, %267 : vector<64x128xf32>
    %c25_101 = arith.constant 25 : index
    %c0_102 = arith.constant 0 : index
    %269 = vector.load %arg4[%c25_101, %c0_102] : memref<27x128xf32, #tpu.memory_space<vmem>>, vector<1x128xf32>
    %270 = vector.broadcast %269 : vector<1x128xf32> to vector<64x128xf32>
    %271 = arith.mulf %268, %270 : vector<64x128xf32>
    %272 = arith.addf %264, %271 : vector<64x128xf32>
    %c43_i32 = arith.constant 43 : i32
    %273 = tpu.dynamic_rotate %8 by %c43_i32 dim 0 : vector<64x128xf32>, i32 -> vector<64x128xf32>
    %c0_103 = arith.constant 0 : index
    %c26 = arith.constant 26 : index
    %274 = vector.load %arg6[%c0_103, %c26] : memref<64x27xf32, #tpu.memory_space<vmem>>, vector<64x1xf32>
    %275 = vector.broadcast %274 : vector<64x1xf32> to vector<64x128xf32>
    %276 = arith.mulf %273, %275 : vector<64x128xf32>
    %c26_104 = arith.constant 26 : index
    %c0_105 = arith.constant 0 : index
    %277 = vector.load %arg4[%c26_104, %c0_105] : memref<27x128xf32, #tpu.memory_space<vmem>>, vector<1x128xf32>
    %278 = vector.broadcast %277 : vector<1x128xf32> to vector<64x128xf32>
    %279 = arith.mulf %276, %278 : vector<64x128xf32>
    %280 = arith.addf %272, %279 : vector<64x128xf32>
    %281 = arith.addf %69, %280 : vector<64x128xf32>
    %282 = vector.broadcast %0 : vector<1x128xf32> to vector<64x128xf32>
    %283 = arith.addf %281, %282 : vector<64x128xf32>
    %c0_106 = arith.constant 0 : index
    %c0_107 = arith.constant 0 : index
    %c0_108 = arith.constant 0 : index
    %284 = vector.load %arg7[%c0_106, %c0_107, %c0_108] : memref<1x64x128xf32, #tpu.memory_space<vmem>>, vector<1x64x128xf32>
    %285 = vector.shape_cast %284 : vector<1x64x128xf32> to vector<64x128xf32>
    %286 = vector.shape_cast %283 : vector<64x128xf32> to vector<1x64x128xf32>
    tpu.vector_store %arg7[%c0_106, %c0_107, %c0_108], %286 {strides = array<i32>} : memref<1x64x128xf32, #tpu.memory_space<vmem>>, vector<1x64x128xf32>,
    return
  }
  func.func @transform_0(%arg0: i32) -> (i32, i32, i32) {
    %c0_i32 = arith.constant 0 : i32
    %c0_i32_0 = arith.constant 0 : i32
    %c0_i32_1 = arith.constant 0 : i32
    return %arg0, %c0_i32, %c0_i32_0 : i32, i32, i32
  }
  func.func @transform_1(%arg0: i32) -> (i32, i32, i32) {
    %c0_i32 = arith.constant 0 : i32
    %c0_i32_0 = arith.constant 0 : i32
    %c0_i32_1 = arith.constant 0 : i32
    return %arg0, %c0_i32, %c0_i32_0 : i32, i32, i32
  }
  func.func @transform_2(%arg0: i32) -> (i32, i32, i32) {
    %c0_i32 = arith.constant 0 : i32
    %c0_i32_0 = arith.constant 0 : i32
    %c0_i32_1 = arith.constant 0 : i32
    return %arg0, %c0_i32, %c0_i32_0 : i32, i32, i32
  }
  func.func @transform_3(%arg0: i32) -> (i32, i32) {
    %c0_i32 = arith.constant 0 : i32
    %c0_i32_0 = arith.constant 0 : i32
    %c0_i32_1 = arith.constant 0 : i32
    return %c0_i32, %c0_i32_0 : i32, i32
  }
  func.func @transform_4(%arg0: i32) -> (i32, i32) {
    %c0_i32 = arith.constant 0 : i32
    %c0_i32_0 = arith.constant 0 : i32
    %c0_i32_1 = arith.constant 0 : i32
    return %c0_i32, %c0_i32_0 : i32, i32
  }
  func.func @transform_5(%arg0: i32) -> (i32, i32) {
    %c0_i32 = arith.constant 0 : i32
    %c0_i32_0 = arith.constant 0 : i32
    %c0_i32_1 = arith.constant 0 : i32
    return %c0_i32, %c0_i32_0 : i32, i32
  }
  func.func @transform_6(%arg0: i32) -> (i32, i32, i32) {
    %c0_i32 = arith.constant 0 : i32
    %c0_i32_0 = arith.constant 0 : i32
    %c0_i32_1 = arith.constant 0 : i32
    return %arg0, %c0_i32, %c0_i32_0 : i32, i32, i32
  }
}

</mosaic_0001>

<llo_original>
// kernel: lepe_attention.1
$region0: #{lepe_attention.1}
  #allocation0 [shape = 'u32[]', space=smem, size = 0x4, offset = 0x4, fixed_abs, tag = 'smem constant byte address 0x4 - core index']
  #allocation1 [shape = 'u32[144,128]{1,0:T(1,128)}', space=vmem, size = 0x12000, scoped, tag = 'internal scratch']
  %s0 = inlined_call_operand.vmem [shape: f32[2,64,128], index: 0, kind: input, shape index: {}]
  %s1 = inlined_call_operand.vmem [shape: f32[2,64,128], index: 1, kind: input, shape index: {}]
  %s2 = inlined_call_operand.vmem [shape: f32[2,64,128], index: 2, kind: input, shape index: {}]
  %s3 = inlined_call_operand.vmem [shape: f32[27,128], index: 3, kind: input, shape index: {}]
  %s4 = inlined_call_operand.vmem [shape: f32[1,128], index: 4, kind: input, shape index: {}]
  %s5 = inlined_call_operand.vmem [shape: f32[64,27], index: 5, kind: input, shape index: {}]
  %s6 = inlined_call_operand.hbm [shape: f32[2,64,128], index: 6, kind: output, shape index: {}]
  %s7 = sld [smem:[#allocation0]]
  $region57: #{lepe_attention.1} parent=0
    _
  %s9 = ssub.s32 1, %s7
  %s10 = scalar_select 0, %s9, %s7
  $region1: #{lepe_attention.1} parent=0
    #allocation2 [shape = 'u8[65536]{0}', space=vmem, size = 0x10000, scoped, tag = 'output window, operand 0']
    #allocation3 [shape = 's32[2]{0}', space=sflag, size = 0x8, scoped, tag = 'scoped memory for lepe_attention.1']
    %11 = vsyncpa [#allocation3], 0
    %s12 = scalar_lea.sflag [#allocation3], 1
    %13 = vsyncpa %s12, 0
    loop: start=0, step=1, limit=4
    $region2: #{lepe_attention.1} parent=1 // loop_pre_header
      _
    $region3: #{lepe_attention.1} parent=1 // loop_header
      %s15 = sphi 0, %s19
      %p16 = scmp.ge.s32.totalorder %s15, 4
      %s25 = sphi 0, %s27
      %s28 = sphi 0, %s25
      %s29 = sphi 0, %s28
      %s45 = sphi 0, %s29
      %s51 = sphi 0, %s53
      %s54 = sphi 0, %s51
      %s55 = sphi 0, %s54
      %s71 = sphi 0, %s55
      %s77 = sphi 0, %s79
      %s80 = sphi 0, %s77
      %s81 = sphi 0, %s80
      %s97 = sphi 0, %s81
      %s101 = sphi 0, %s101
      %s103 = sphi 0, %s101
      %s104 = sphi 0, %s103
      %s118 = sphi 0, %s104
      %s122 = sphi 0, %s122
      %s124 = sphi 0, %s122
      %s125 = sphi 0, %s124
      %s139 = sphi 0, %s125
      %s143 = sphi 0, %s143
      %s145 = sphi 0, %s143
      %s146 = sphi 0, %s145
      %s160 = sphi 0, %s146
      %s166 = sphi 0, %s168
      %s169 = sphi 0, %s166
      %s170 = sphi 0, %s169
      %s186 = sphi 0, %s170
    $region4: #{lepe_attention.1} parent=1 // loop_header_branch
      %18 = sbr.rel (%p16) target = $region8
    $region5: #{lepe_attention.1} parent=1 // loop_body
      %s20 = ssub.s32 %s15, 1
      %s21 = ssub.s32 %s15, 2
      %s22 = sadd.s32 %s15, 1
      %s23 = ssub.s32 %s15, %s22
      %p24 = scmp.eq.s32.totalorder %s23, 0
      %s26 = sadd.s32 %s25, 1
      %s27 = scalar_select %p24, %s25, %s26
      %p30 = pneg %p24
      %p31 = scmp.eq.s32.totalorder %s15, 1
      %p32 = por %p30, %p31
      %p33 = scmp.ne.s32.totalorder %s25, %s28
      %p34 = scmp.eq.s32.totalorder %s15, 0
      %p35 = por %p33, %p34
      %p36 = scmp.ne.s32.totalorder %s25, %s28
      %p37 = scmp.eq.s32.totalorder %s20, 1
      %p38 = por %p36, %p37
      %p39 = scmp.ne.s32.totalorder %s28, %s29
      %p40 = scmp.eq.s32.totalorder %s20, 0
      %p41 = por %p39, %p40
      %p42 = scmp.ne.s32.totalorder %s28, %s29
      %p43 = scmp.eq.s32.totalorder %s21, 1
      %p44 = por %p42, %p43
      %p46 = scmp.ne.s32.totalorder %s29, %s45
      %p47 = scmp.eq.s32.totalorder %s21, 0
      %p48 = por %p46, %p47
      %s49 = ssub.s32 %s15, %s22
      %p50 = scmp.eq.s32.totalorder %s49, 0
      %s52 = sadd.s32 %s51, 1
      %s53 = scalar_select %p50, %s51, %s52
      %p56 = pneg %p50
      %p57 = scmp.eq.s32.totalorder %s15, 1
      %p58 = por %p56, %p57
      %p59 = scmp.ne.s32.totalorder %s51, %s54
      %p60 = scmp.eq.s32.totalorder %s15, 0
      %p61 = por %p59, %p60
      %p62 = scmp.ne.s32.totalorder %s51, %s54
      %p63 = scmp.eq.s32.totalorder %s20, 1
      %p64 = por %p62, %p63
      %p65 = scmp.ne.s32.totalorder %s54, %s55
      %p66 = scmp.eq.s32.totalorder %s20, 0
      %p67 = por %p65, %p66
      %p68 = scmp.ne.s32.totalorder %s54, %s55
      %p69 = scmp.eq.s32.totalorder %s21, 1
      %p70 = por %p68, %p69
      %p72 = scmp.ne.s32.totalorder %s55, %s71
      %p73 = scmp.eq.s32.totalorder %s21, 0
      %p74 = por %p72, %p73
      %s75 = ssub.s32 %s15, %s22
      %p76 = scmp.eq.s32.totalorder %s75, 0
      %s78 = sadd.s32 %s77, 1
      %s79 = scalar_select %p76, %s77, %s78
      %p82 = pneg %p76
      %p83 = scmp.eq.s32.totalorder %s15, 1
      %p84 = por %p82, %p83
      %p85 = scmp.ne.s32.totalorder %s77, %s80
      %p86 = scmp.eq.s32.totalorder %s15, 0
      %p87 = por %p85, %p86
      %p88 = scmp.ne.s32.totalorder %s77, %s80
      %p89 = scmp.eq.s32.totalorder %s20, 1
      %p90 = por %p88, %p89
      %p91 = scmp.ne.s32.totalorder %s80, %s81
      %p92 = scmp.eq.s32.totalorder %s20, 0
      %p93 = por %p91, %p92
      %p94 = scmp.ne.s32.totalorder %s80, %s81
      %p95 = scmp.eq.s32.totalorder %s21, 1
      %p96 = por %p94, %p95
      %p98 = scmp.ne.s32.totalorder %s81, %s97
      %p99 = scmp.eq.s32.totalorder %s21, 0
      %p100 = por %p98, %p99
      %s102 = sadd.s32 %s101, 1
      %p105 = scmp.eq.s32.totalorder %s15, 1
      %p106 = scmp.ne.s32.totalorder %s101, %s103
      %p107 = scmp.eq.s32.totalorder %s15, 0
      %p108 = por %p106, %p107
      %p109 = scmp.ne.s32.totalorder %s101, %s103
      %p110 = scmp.eq.s32.totalorder %s20, 1
      %p111 = por %p109, %p110
      %p112 = scmp.ne.s32.totalorder %s103, %s104
      %p113 = scmp.eq.s32.totalorder %s20, 0
      %p114 = por %p112, %p113
      %p115 = scmp.ne.s32.totalorder %s103, %s104
      %p116 = scmp.eq.s32.totalorder %s21, 1
      %p117 = por %p115, %p116
      %p119 = scmp.ne.s32.totalorder %s104, %s118
      %p120 = scmp.eq.s32.totalorder %s21, 0
      %p121 = por %p119, %p120
      %s123 = sadd.s32 %s122, 1
      %p126 = scmp.eq.s32.totalorder %s15, 1
      %p127 = scmp.ne.s32.totalorder %s122, %s124
      %p128 = scmp.eq.s32.totalorder %s15, 0
      %p129 = por %p127, %p128
      %p130 = scmp.ne.s32.totalorder %s122, %s124
      %p131 = scmp.eq.s32.totalorder %s20, 1
      %p132 = por %p130, %p131
      %p133 = scmp.ne.s32.totalorder %s124, %s125
      %p134 = scmp.eq.s32.totalorder %s20, 0
      %p135 = por %p133, %p134
      %p136 = scmp.ne.s32.totalorder %s124, %s125
      %p137 = scmp.eq.s32.totalorder %s21, 1
      %p138 = por %p136, %p137
      %p140 = scmp.ne.s32.totalorder %s125, %s139
      %p141 = scmp.eq.s32.totalorder %s21, 0
      %p142 = por %p140, %p141
      %s144 = sadd.s32 %s143, 1
      %p147 = scmp.eq.s32.totalorder %s15, 1
      %p148 = scmp.ne.s32.totalorder %s143, %s145
      %p149 = scmp.eq.s32.totalorder %s15, 0
      %p150 = por %p148, %p149
      %p151 = scmp.ne.s32.totalorder %s143, %s145
      %p152 = scmp.eq.s32.totalorder %s20, 1
      %p153 = por %p151, %p152
      %p154 = scmp.ne.s32.totalorder %s145, %s146
      %p155 = scmp.eq.s32.totalorder %s20, 0
      %p156 = por %p154, %p155
      %p157 = scmp.ne.s32.totalorder %s145, %s146
      %p158 = scmp.eq.s32.totalorder %s21, 1
      %p159 = por %p157, %p158
      %p161 = scmp.ne.s32.totalorder %s146, %s160
      %p162 = scmp.eq.s32.totalorder %s21, 0
      %p163 = por %p161, %p162
      %s164 = ssub.s32 %s15, %s22
      %p165 = scmp.eq.s32.totalorder %s164, 0
      %s167 = sadd.s32 %s166, 1
      %s168 = scalar_select %p165, %s166, %s167
      %p171 = pneg %p165
      %p172 = scmp.eq.s32.totalorder %s15, 1
      %p173 = por %p171, %p172
      %p174 = scmp.ne.s32.totalorder %s166, %s169
      %p175 = scmp.eq.s32.totalorder %s15, 0
      %p176 = por %p174, %p175
      %p177 = scmp.ne.s32.totalorder %s166, %s169
      %p178 = scmp.eq.s32.totalorder %s20, 1
      %p179 = por %p177, %p178
      %p180 = scmp.ne.s32.totalorder %s169, %s170
      %p181 = scmp.eq.s32.totalorder %s20, 0
      %p182 = por %p180, %p181
      %p183 = scmp.ne.s32.totalorder %s169, %s170
      %p184 = scmp.eq.s32.totalorder %s21, 1
      %p185 = por %p183, %p184
      %p187 = scmp.ne.s32.totalorder %s170, %s186
      %p188 = scmp.eq.s32.totalorder %s21, 0
      %p189 = por %p187, %p188
      %p190 = scmp.le.s32.totalorder 1, %s15
      %p191 = scmp.lt.s32.totalorder %s15, 3
      %p192 = pnand %p190, %p191
      %p193 = pneg %p192
      // Predicated region
      $region9: #{lepe_attention.1} parent=5 // pred_check
        _
      $region10: #{lepe_attention.1} parent=5 // pred_check_branch
        %195 = sbr.rel (%p192) target = $region12
      $region11: #{lepe_attention.1} parent=5 // pred_region
        %s196 = ssub.s32 %s15, 1
        // Predicated region
        $region13: #{lepe_attention.1} parent=11 // pred_check
          %p197 = pneg %p114
        $region14: #{lepe_attention.1} parent=11 // pred_check_branch
          %199 = sbr.rel (%p197) target = $region16
        $region15: #{lepe_attention.1} parent=11 // pred_region
          _
        $region16: #{lepe_attention.1} parent=11 // pred_fallthru
          _
        // Predicated region
        $region17: #{lepe_attention.1} parent=11 // pred_check
          %p200 = pneg %p135
        $region18: #{lepe_attention.1} parent=11 // pred_check_branch
          %202 = sbr.rel (%p200) target = $region20
        $region19: #{lepe_attention.1} parent=11 // pred_region
          _
        $region20: #{lepe_attention.1} parent=11 // pred_fallthru
          _
        // Predicated region
        $region21: #{lepe_attention.1} parent=11 // pred_check
          %p203 = pneg %p156
        $region22: #{lepe_attention.1} parent=11 // pred_check_branch
          %205 = sbr.rel (%p203) target = $region24
        $region23: #{lepe_attention.1} parent=11 // pred_region
          _
        $region24: #{lepe_attention.1} parent=11 // pred_fallthru
          _
      $region12: #{lepe_attention.1} parent=5 // pred_fallthru
        _
      %p206 = scmp.lt.s32.totalorder %s15, 2
      // Predicated region
      $region25: #{lepe_attention.1} parent=5 // pred_check
        %p207 = pneg %p206
      $region26: #{lepe_attention.1} parent=5 // pred_check_branch
        %209 = sbr.rel (%p207) target = $region28
      $region27: #{lepe_attention.1} parent=5 // pred_region
        // Predicated region
        $region29: #{lepe_attention.1} parent=27 // pred_check
          %p210 = pneg %p35
        $region30: #{lepe_attention.1} parent=27 // pred_check_branch
          %212 = sbr.rel (%p210) target = $region32
        $region31: #{lepe_attention.1} parent=27 // pred_region
          %p213 = scmp.lt.s32.totalorder %s15, 1
          %s214 = scalar_select %p213, %s15, 1
          %s215 = smul.addr %s214, 8
          %s216 = smul.addr %s215, 8
          %s217 = scalar_lea.vmem %s0, %s216
        $region32: #{lepe_attention.1} parent=27 // pred_fallthru
          _
        // Predicated region
        $region33: #{lepe_attention.1} parent=27 // pred_check
          %p218 = pneg %p61
        $region34: #{lepe_attention.1} parent=27 // pred_check_branch
          %220 = sbr.rel (%p218) target = $region36
        $region35: #{lepe_attention.1} parent=27 // pred_region
          %p221 = scmp.lt.s32.totalorder %s15, 1
          %s222 = scalar_select %p221, %s15, 1
          %s223 = smul.addr %s222, 8
          %s224 = smul.addr %s223, 8
          %s225 = scalar_lea.vmem %s1, %s224
        $region36: #{lepe_attention.1} parent=27 // pred_fallthru
          _
        // Predicated region
        $region37: #{lepe_attention.1} parent=27 // pred_check
          %p226 = pneg %p87
        $region38: #{lepe_attention.1} parent=27 // pred_check_branch
          %228 = sbr.rel (%p226) target = $region40
        $region39: #{lepe_attention.1} parent=27 // pred_region
          %p229 = scmp.lt.s32.totalorder %s15, 1
          %s230 = scalar_select %p229, %s15, 1
          %s231 = smul.addr %s230, 8
          %s232 = smul.addr %s231, 8
          %s233 = scalar_lea.vmem %s2, %s232
        $region40: #{lepe_attention.1} parent=27 // pred_fallthru
          _
      $region28: #{lepe_attention.1} parent=5 // pred_fallthru
        _
      %p234 = scmp.le.s32.totalorder 1, %s15
      %p235 = scmp.lt.s32.totalorder %s15, 3
      %p236 = pnand %p234, %p235
      %p237 = pneg %p236
      // Predicated region
      $region41: #{lepe_attention.1} parent=5 // pred_check
        _
      $region42: #{lepe_attention.1} parent=5 // pred_check_branch
        %239 = sbr.rel (%p236) target = $region44
      $region43: #{lepe_attention.1} parent=5 // pred_region
        %s240 = ssub.s32 %s15, 1
        %p241 = scmp.lt.s32.totalorder %s20, 1
        %s242 = scalar_select %p241, %s20, 1
        %s243 = smul.addr %s242, 8
        %s244 = smul.addr %s243, 8
        %s245 = scalar_lea.vmem %s0, %s244
        %p246 = pneg %p41
        %p247 = pneg %p38
        %p248 = scmp.lt.s32.totalorder %s20, 1
        %s249 = scalar_select %p248, %s20, 1
        %s250 = smul.addr %s249, 8
        %s251 = smul.addr %s250, 8
        %s252 = scalar_lea.vmem %s1, %s251
        %p253 = pneg %p67
        %p254 = pneg %p64
        %p255 = scmp.lt.s32.totalorder %s20, 1
        %s256 = scalar_select %p255, %s20, 1
        %s257 = smul.addr %s256, 8
        %s258 = smul.addr %s257, 8
        %s259 = scalar_lea.vmem %s2, %s258
        %p260 = pneg %p93
        %p261 = pneg %p90
        %p262 = pneg %p114
        %p263 = pneg %p111
        %p264 = pneg %p135
        %p265 = pneg %p132
        %p266 = pneg %p156
        %p267 = pneg %p153
        %p268 = pneg %p182
        %p269 = pneg %p179
        %s270 = sand.u32 %s169, 1
        %s271 = scalar_lea.sflag [#allocation3], %s270
        %s272 = sand.u32 %s169, 1
        %s273 = smul.addr %s272, 64
        %s274 = scalar_lea.vmem [#allocation2], %s273
        %p275 = scmp.lt.s32.totalorder %s20, 1
        %s276 = scalar_select %p275, %s20, 1
        %s277 = smul.addr %s276, 8
        %s278 = smul.addr %s277, 8
        %s279 = scalar_lea.vmem %s0, %s278
        %p280 = scmp.lt.s32.totalorder %s20, 1
        %s281 = scalar_select %p280, %s20, 1
        %s282 = smul.addr %s281, 8
        %s283 = smul.addr %s282, 8
        %s284 = scalar_lea.vmem %s1, %s283
        %p285 = scmp.lt.s32.totalorder %s20, 1
        %s286 = scalar_select %p285, %s20, 1
        %s287 = smul.addr %s286, 8
        %s288 = smul.addr %s287, 8
        %s289 = scalar_lea.vmem %s2, %s288
        %v290 = vld [vmem:[%s4] sm:$0x1]
        %v291 = vld [vmem:[%s279] sm:$0xff]
        %v292 = vld [vmem:[%s279 + $0x8] sm:$0xff]
        %v293 = vld [vmem:[%s279 + $0x10] sm:$0xff]
        %v294 = vld [vmem:[%s279 + $0x18] sm:$0xff]
        %v295 = vld [vmem:[%s279 + $0x20] sm:$0xff]
        %v296 = vld [vmem:[%s279 + $0x28] sm:$0xff]
        %v297 = vld [vmem:[%s279 + $0x30] sm:$0xff]
        %v298 = vld [vmem:[%s279 + $0x38] sm:$0xff]
        %v299 = vmul.f32 %v291, 0.17677669
        %v300 = vmul.f32 %v292, 0.17677669
        %v301 = vmul.f32 %v293, 0.17677669
        %v302 = vmul.f32 %v294, 0.17677669
        %v303 = vmul.f32 %v295, 0.17677669
        %v304 = vmul.f32 %v296, 0.17677669
        %v305 = vmul.f32 %v297, 0.17677669
        %v306 = vmul.f32 %v298, 0.17677669
        %v307 = vld [vmem:[%s284] sm:$0xff]
        %v308 = vld [vmem:[%s284 + $0x8] sm:$0xff]
        %v309 = vld [vmem:[%s284 + $0x10] sm:$0xff]
        %v310 = vld [vmem:[%s284 + $0x18] sm:$0xff]
        %v311 = vld [vmem:[%s284 + $0x20] sm:$0xff]
        %v312 = vld [vmem:[%s284 + $0x28] sm:$0xff]
        %v313 = vld [vmem:[%s284 + $0x30] sm:$0xff]
        %v314 = vld [vmem:[%s284 + $0x38] sm:$0xff]
        %v315 = vld [vmem:[%s289] sm:$0xff]
        %v316 = vld [vmem:[%s289 + $0x8] sm:$0xff]
        %v317 = vld [vmem:[%s289 + $0x10] sm:$0xff]
        %v318 = vld [vmem:[%s289 + $0x18] sm:$0xff]
        %v319 = vld [vmem:[%s289 + $0x20] sm:$0xff]
        %v320 = vld [vmem:[%s289 + $0x28] sm:$0xff]
        %v321 = vld [vmem:[%s289 + $0x30] sm:$0xff]
        %v322 = vld [vmem:[%s289 + $0x38] sm:$0xff]
        %vm323 = vcmask 261120
        %v325 = vsel %vm323, %v299, 0
        %v328 = vsel %vm323, %v300, 0
        %v331 = vsel %vm323, %v301, 0
        %v334 = vsel %vm323, %v302, 0
        %v337 = vsel %vm323, %v303, 0
        %v340 = vsel %vm323, %v304, 0
        %v343 = vsel %vm323, %v305, 0
        %v346 = vsel %vm323, %v306, 0
        %v349 = vsel %vm323, %v307, 0
        %v352 = vsel %vm323, %v308, 0
        %v355 = vsel %vm323, %v309, 0
        %v358 = vsel %vm323, %v310, 0
        %v361 = vsel %vm323, %v311, 0
        %v364 = vsel %vm323, %v312, 0
        %v367 = vsel %vm323, %v313, 0
        %v370 = vsel %vm323, %v314, 0
        %372 = vmatprep.subr.mxu0 0.0
        %373 = vmatpush1.xpose.msra.mxu0 0.0
        %374 = vmatprep.subr.mxu0 0.0
        %375 = vmatpush1.xpose.msra.mxu0 0.0
        %376 = vmatprep.subr.mxu0 0.0
        %377 = vmatpush1.xpose.msra.mxu0 0.0
        %378 = vmatprep.subr.mxu0 0.0
        %379 = vmatpush1.xpose.msra.mxu0 0.0
        %380 = vmatprep.subr.mxu0 0.0
        %381 = vmatpush1.xpose.msra.mxu0 0.0
        %382 = vmatprep.subr.mxu0 0.0
        %383 = vmatpush1.xpose.msra.mxu0 0.0
        %384 = vmatprep.subr.mxu0 0.0
        %385 = vmatpush1.xpose.msra.mxu0 0.0
        %386 = vmatprep.subr.mxu0 0.0
        %387 = vmatpush1.xpose.msra.mxu0 0.0
        %388 = vmatprep.subr.mxu0 0.0
        %389 = vmatpush1.xpose.msra.mxu0 %v370
        %390 = vmatprep.subr.mxu0 0.0
        %391 = vmatpush1.xpose.msra.mxu0 %v367
        %392 = vmatprep.subr.mxu0 0.0
        %393 = vmatpush1.xpose.msra.mxu0 %v364
        %394 = vmatprep.subr.mxu0 0.0
        %395 = vmatpush1.xpose.msra.mxu0 %v361
        %396 = vmatprep.subr.mxu0 0.0
        %397 = vmatpush1.xpose.msra.mxu0 %v358
        %398 = vmatprep.subr.mxu0 0.0
        %399 = vmatpush1.xpose.msra.mxu0 %v355
        %400 = vmatprep.subr.mxu0 0.0
        %401 = vmatpush1.xpose.msra.mxu0 %v352
        %402 = vmatprep.subr.mxu0 0.0
        %403 = vmatpush1.xpose.msra.mxu0 %v349
        %404 = vmatprep.subr.mxu0 0.0
        %405 = vmatpush2.xpose.msra.mxu0 0.0
        %406 = vmatprep.subr.mxu0 0.0
        %407 = vmatpush2.xpose.msra.mxu0 0.0
        %408 = vmatprep.subr.mxu0 0.0
        %409 = vmatpush2.xpose.msra.mxu0 0.0
        %410 = vmatprep.subr.mxu0 0.0
        %411 = vmatpush2.xpose.msra.mxu0 0.0
        %412 = vmatprep.subr.mxu0 0.0
        %413 = vmatpush2.xpose.msra.mxu0 0.0
        %414 = vmatprep.subr.mxu0 0.0
        %415 = vmatpush2.xpose.msra.mxu0 0.0
        %416 = vmatprep.subr.mxu0 0.0
        %417 = vmatpush2.xpose.msra.mxu0 0.0
        %418 = vmatprep.subr.mxu0 0.0
        %419 = vmatpush2.xpose.msra.mxu0 0.0
        %420 = vmatprep.subr.mxu0 0.0
        %421 = vmatpush2.xpose.msra.mxu0 0.0
        %422 = vmatprep.subr.mxu0 0.0
        %423 = vmatpush2.xpose.msra.mxu0 0.0
        %424 = vmatprep.subr.mxu0 0.0
        %425 = vmatpush2.xpose.msra.mxu0 0.0
        %426 = vmatprep.subr.mxu0 0.0
        %427 = vmatpush2.xpose.msra.mxu0 0.0
        %428 = vmatprep.subr.mxu0 0.0
        %429 = vmatpush2.xpose.msra.mxu0 0.0
        %430 = vmatprep.subr.mxu0 0.0
        %431 = vmatpush2.xpose.msra.mxu0 0.0
        %432 = vmatprep.subr.mxu0 0.0
        %433 = vmatpush2.xpose.msra.mxu0 0.0
        %434 = vmatprep.subr.mxu0 0.0
        %435 = vmatpush2.xpose.msra.mxu0 0.0
        %436 = vmatprep.mubr.f32.mxu0 0.0
        %437 = vmatmul.mubr.f32.gmra.mxu0 %v325
        %v438 = vpop.f32.mrf.mxu0
        %v439 = vadd.f32 0.0, %v438
        %v440 = vpop.f32.mrf.mxu0
        %441 = vmatprep.mubr.f32.mxu0 0.0
        %442 = vmatmul.mubr.f32.gmra.mxu0 %v328
        %v443 = vpop.f32.mrf.mxu0
        %v444 = vadd.f32 0.0, %v443
        %v445 = vpop.f32.mrf.mxu0
        %446 = vmatprep.mubr.f32.mxu0 0.0
        %447 = vmatmul.mubr.f32.gmra.mxu0 %v331
        %v448 = vpop.f32.mrf.mxu0
        %v449 = vadd.f32 0.0, %v448
        %v450 = vpop.f32.mrf.mxu0
        %451 = vmatprep.mubr.f32.mxu0 0.0
        %452 = vmatmul.mubr.f32.gmra.mxu0 %v334
        %v453 = vpop.f32.mrf.mxu0
        %v454 = vadd.f32 0.0, %v453
        %v455 = vpop.f32.mrf.mxu0
        %456 = vmatprep.mubr.f32.mxu0 0.0
        %457 = vmatmul.mubr.f32.gmra.mxu0 %v337
        %v458 = vpop.f32.mrf.mxu0
        %v459 = vadd.f32 0.0, %v458
        %v460 = vpop.f32.mrf.mxu0
        %461 = vmatprep.mubr.f32.mxu0 0.0
        %462 = vmatmul.mubr.f32.gmra.mxu0 %v340
        %v463 = vpop.f32.mrf.mxu0
        %v464 = vadd.f32 0.0, %v463
        %v465 = vpop.f32.mrf.mxu0
        %466 = vmatprep.mubr.f32.mxu0 0.0
        %467 = vmatmul.mubr.f32.gmra.mxu0 %v343
        %v468 = vpop.f32.mrf.mxu0
        %v469 = vadd.f32 0.0, %v468
        %v470 = vpop.f32.mrf.mxu0
        %471 = vmatprep.mubr.f32.mxu0 0.0
        %472 = vmatmul.mubr.f32.gmra.mxu0 %v346
        %v473 = vpop.f32.mrf.mxu0
        %v474 = vadd.f32 0.0, %v473
        %v475 = vpop.f32.mrf.mxu0
        %476 = vdwg.mxu0
        %vm477 = vcmask 523264
        %v478 = vsel %vm477, %v439, -inf
        %479 = vmax.xlane.f32.xlu0 %v478
        %v480 = vpop.xlane.xlu0 %479
        %v481 = vsel %vm477, %v444, -inf
        %482 = vmax.xlane.f32.xlu0 %v481
        %v483 = vpop.xlane.xlu0 %482
        %v484 = vsel %vm477, %v449, -inf
        %485 = vmax.xlane.f32.xlu0 %v484
        %v486 = vpop.xlane.xlu0 %485
        %v487 = vsel %vm477, %v454, -inf
        %488 = vmax.xlane.f32.xlu0 %v487
        %v489 = vpop.xlane.xlu0 %488
        %v490 = vsel %vm477, %v459, -inf
        %491 = vmax.xlane.f32.xlu0 %v490
        %v492 = vpop.xlane.xlu0 %491
        %v493 = vsel %vm477, %v464, -inf
        %494 = vmax.xlane.f32.xlu0 %v493
        %v495 = vpop.xlane.xlu0 %494
        %v496 = vsel %vm477, %v469, -inf
        %497 = vmax.xlane.f32.xlu0 %v496
        %v498 = vpop.xlane.xlu0 %497
        %v499 = vsel %vm477, %v474, -inf
        %500 = vmax.xlane.f32.xlu0 %v499
        %v501 = vpop.xlane.xlu0 %500
        %v502 = vsub.f32 %v439, %v480
        %v503 = vsub.f32 %v444, %v483
        %v504 = vsub.f32 %v449, %v486
        %v505 = vsub.f32 %v454, %v489
        %v506 = vsub.f32 %v459, %v492
        %v507 = vsub.f32 %v464, %v495
        %v508 = vsub.f32 %v469, %v498
        %v509 = vsub.f32 %v474, %v501
        %v510 = vmul.f32 %v502, 1.442695
        %v511 = vpow.pop %v510
        %v512 = vmul.f32 %v503, 1.442695
        %v513 = vpow.pop %v512
        %v514 = vmul.f32 %v504, 1.442695
        %v515 = vpow.pop %v514
        %v516 = vmul.f32 %v505, 1.442695
        %v517 = vpow.pop %v516
        %v518 = vmul.f32 %v506, 1.442695
        %v519 = vpow.pop %v518
        %v520 = vmul.f32 %v507, 1.442695
        %v521 = vpow.pop %v520
        %v522 = vmul.f32 %v508, 1.442695
        %v523 = vpow.pop %v522
        %v524 = vmul.f32 %v509, 1.442695
        %v525 = vpow.pop %v524
        %v526 = vsel %vm477, %v511, 0.0
        %527 = vadd.xlane.f32.xlu0 %v526
        %v528 = vpop.xlane.xlu0 %527
        %v529 = vsel %vm477, %v513, 0.0
        %530 = vadd.xlane.f32.xlu0 %v529
        %v531 = vpop.xlane.xlu0 %530
        %v532 = vsel %vm477, %v515, 0.0
        %533 = vadd.xlane.f32.xlu0 %v532
        %v534 = vpop.xlane.xlu0 %533
        %v535 = vsel %vm477, %v517, 0.0
        %536 = vadd.xlane.f32.xlu0 %v535
        %v537 = vpop.xlane.xlu0 %536
        %v538 = vsel %vm477, %v519, 0.0
        %539 = vadd.xlane.f32.xlu0 %v538
        %v540 = vpop.xlane.xlu0 %539
        %v541 = vsel %vm477, %v521, 0.0
        %542 = vadd.xlane.f32.xlu0 %v541
        %v543 = vpop.xlane.xlu0 %542
        %v544 = vsel %vm477, %v523, 0.0
        %545 = vadd.xlane.f32.xlu0 %v544
        %v546 = vpop.xlane.xlu0 %545
        %v547 = vsel %vm477, %v525, 0.0
        %548 = vadd.xlane.f32.xlu0 %v547
        %v549 = vpop.xlane.xlu0 %548
        %v550 = vrcp.pop %v528
        %v551 = vrcp.pop %v531
        %v552 = vrcp.pop %v534
        %v553 = vrcp.pop %v537
        %v554 = vrcp.pop %v540
        %v555 = vrcp.pop %v543
        %v556 = vrcp.pop %v546
        %v557 = vrcp.pop %v549
        %v559 = vsel %vm477, %v511, 0
        %v562 = vsel %vm477, %v513, 0
        %v565 = vsel %vm477, %v515, 0
        %v568 = vsel %vm477, %v517, 0
        %v571 = vsel %vm477, %v519, 0
        %v574 = vsel %vm477, %v521, 0
        %v577 = vsel %vm477, %v523, 0
        %v580 = vsel %vm477, %v525, 0
        %582 = vmatprep.subr.mxu0 0.0
        %583 = vmatpush1.msra.mxu0 0.0
        %584 = vmatprep.subr.mxu0 0.0
        %585 = vmatpush1.msra.mxu0 0.0
        %586 = vmatprep.subr.mxu0 0.0
        %587 = vmatpush1.msra.mxu0 0.0
        %588 = vmatprep.subr.mxu0 0.0
        %589 = vmatpush1.msra.mxu0 0.0
        %590 = vmatprep.subr.mxu0 0.0
        %591 = vmatpush1.msra.mxu0 0.0
        %592 = vmatprep.subr.mxu0 0.0
        %593 = vmatpush1.msra.mxu0 0.0
        %594 = vmatprep.subr.mxu0 0.0
        %595 = vmatpush1.msra.mxu0 0.0
        %596 = vmatprep.subr.mxu0 0.0
        %597 = vmatpush1.msra.mxu0 0.0
        %598 = vmatprep.subr.mxu0 0.0
        %599 = vmatpush1.msra.mxu0 %v322
        %600 = vmatprep.subr.mxu0 0.0
        %601 = vmatpush1.msra.mxu0 %v321
        %602 = vmatprep.subr.mxu0 0.0
        %603 = vmatpush1.msra.mxu0 %v320
        %604 = vmatprep.subr.mxu0 0.0
        %605 = vmatpush1.msra.mxu0 %v319
        %606 = vmatprep.subr.mxu0 0.0
        %607 = vmatpush1.msra.mxu0 %v318
        %608 = vmatprep.subr.mxu0 0.0
        %609 = vmatpush1.msra.mxu0 %v317
        %610 = vmatprep.subr.mxu0 0.0
        %611 = vmatpush1.msra.mxu0 %v316
        %612 = vmatprep.subr.mxu0 0.0
        %613 = vmatpush1.msra.mxu0 %v315
        %614 = vmatprep.subr.mxu0 0.0
        %615 = vmatpush2.msra.mxu0 0.0
        %616 = vmatprep.subr.mxu0 0.0
        %617 = vmatpush2.msra.mxu0 0.0
        %618 = vmatprep.subr.mxu0 0.0
        %619 = vmatpush2.msra.mxu0 0.0
        %620 = vmatprep.subr.mxu0 0.0
        %621 = vmatpush2.msra.mxu0 0.0
        %622 = vmatprep.subr.mxu0 0.0
        %623 = vmatpush2.msra.mxu0 0.0
        %624 = vmatprep.subr.mxu0 0.0
        %625 = vmatpush2.msra.mxu0 0.0
        %626 = vmatprep.subr.mxu0 0.0
        %627 = vmatpush2.msra.mxu0 0.0
        %628 = vmatprep.subr.mxu0 0.0
        %629 = vmatpush2.msra.mxu0 0.0
        %630 = vmatprep.subr.mxu0 0.0
        %631 = vmatpush2.msra.mxu0 0.0
        %632 = vmatprep.subr.mxu0 0.0
        %633 = vmatpush2.msra.mxu0 0.0
        %634 = vmatprep.subr.mxu0 0.0
        %635 = vmatpush2.msra.mxu0 0.0
        %636 = vmatprep.subr.mxu0 0.0
        %637 = vmatpush2.msra.mxu0 0.0
        %638 = vmatprep.subr.mxu0 0.0
        %639 = vmatpush2.msra.mxu0 0.0
        %640 = vmatprep.subr.mxu0 0.0
        %641 = vmatpush2.msra.mxu0 0.0
        %642 = vmatprep.subr.mxu0 0.0
        %643 = vmatpush2.msra.mxu0 0.0
        %644 = vmatprep.subr.mxu0 0.0
        %645 = vmatpush2.msra.mxu0 0.0
        %646 = vmatprep.mubr.f32.mxu0 0.0
        %647 = vmatmul.mubr.f32.gmra.mxu0 %v559
        %v648 = vpop.f32.mrf.mxu0
        %v649 = vadd.f32 0.0, %v648
        %v650 = vpop.f32.mrf.mxu0
        %651 = vmatprep.mubr.f32.mxu0 0.0
        %652 = vmatmul.mubr.f32.gmra.mxu0 %v562
        %v653 = vpop.f32.mrf.mxu0
        %v654 = vadd.f32 0.0, %v653
        %v655 = vpop.f32.mrf.mxu0
        %656 = vmatprep.mubr.f32.mxu0 0.0
        %657 = vmatmul.mubr.f32.gmra.mxu0 %v565
        %v658 = vpop.f32.mrf.mxu0
        %v659 = vadd.f32 0.0, %v658
        %v660 = vpop.f32.mrf.mxu0
        %661 = vmatprep.mubr.f32.mxu0 0.0
        %662 = vmatmul.mubr.f32.gmra.mxu0 %v568
        %v663 = vpop.f32.mrf.mxu0
        %v664 = vadd.f32 0.0, %v663
        %v665 = vpop.f32.mrf.mxu0
        %666 = vmatprep.mubr.f32.mxu0 0.0
        %667 = vmatmul.mubr.f32.gmra.mxu0 %v571
        %v668 = vpop.f32.mrf.mxu0
        %v669 = vadd.f32 0.0, %v668
        %v670 = vpop.f32.mrf.mxu0
        %671 = vmatprep.mubr.f32.mxu0 0.0
        %672 = vmatmul.mubr.f32.gmra.mxu0 %v574
        %v673 = vpop.f32.mrf.mxu0
        %v674 = vadd.f32 0.0, %v673
        %v675 = vpop.f32.mrf.mxu0
        %676 = vmatprep.mubr.f32.mxu0 0.0
        %677 = vmatmul.mubr.f32.gmra.mxu0 %v577
        %v678 = vpop.f32.mrf.mxu0
        %v679 = vadd.f32 0.0, %v678
        %v680 = vpop.f32.mrf.mxu0
        %681 = vmatprep.mubr.f32.mxu0 0.0
        %682 = vmatmul.mubr.f32.gmra.mxu0 %v580
        %v683 = vpop.f32.mrf.mxu0
        %v684 = vadd.f32 0.0, %v683
        %v685 = vpop.f32.mrf.mxu0
        %686 = vdwg.mxu0
        %v687 = vmul.f32 %v649, %v550
        %v688 = vmul.f32 %v654, %v551
        %v689 = vmul.f32 %v659, %v552
        %v690 = vmul.f32 %v664, %v553
        %v691 = vmul.f32 %v669, %v554
        %v692 = vmul.f32 %v674, %v555
        %v693 = vmul.f32 %v679, %v556
        %v694 = vmul.f32 %v684, %v557
        %695 = vrot.lane.b32.xlu0 %v299, 96
        %v696 = vpop.permute.xlu0 %695
        %697 = vrot.lane.b32.xlu0 %v300, 96
        %v698 = vpop.permute.xlu0 %697
        %699 = vrot.lane.b32.xlu0 %v301, 96
        %v700 = vpop.permute.xlu0 %699
        %701 = vrot.lane.b32.xlu0 %v302, 96
        %v702 = vpop.permute.xlu0 %701
        %703 = vrot.lane.b32.xlu0 %v303, 96
        %v704 = vpop.permute.xlu0 %703
        %705 = vrot.lane.b32.xlu0 %v304, 96
        %v706 = vpop.permute.xlu0 %705
        %707 = vrot.lane.b32.xlu0 %v305, 96
        %v708 = vpop.permute.xlu0 %707
        %709 = vrot.lane.b32.xlu0 %v306, 96
        %v710 = vpop.permute.xlu0 %709
        %711 = vrot.lane.b32.xlu0 %v307, 96
        %v712 = vpop.permute.xlu0 %711
        %713 = vrot.lane.b32.xlu0 %v308, 96
        %v714 = vpop.permute.xlu0 %713
        %715 = vrot.lane.b32.xlu0 %v309, 96
        %v716 = vpop.permute.xlu0 %715
        %717 = vrot.lane.b32.xlu0 %v310, 96
        %v718 = vpop.permute.xlu0 %717
        %719 = vrot.lane.b32.xlu0 %v311, 96
        %v720 = vpop.permute.xlu0 %719
        %721 = vrot.lane.b32.xlu0 %v312, 96
        %v722 = vpop.permute.xlu0 %721
        %723 = vrot.lane.b32.xlu0 %v313, 96
        %v724 = vpop.permute.xlu0 %723
        %725 = vrot.lane.b32.xlu0 %v314, 96
        %v726 = vpop.permute.xlu0 %725
        %v727 = vsel %vm323, %v696, 0
        %v729 = vsel %vm323, %v698, 0
        %v731 = vsel %vm323, %v700, 0
        %v733 = vsel %vm323, %v702, 0
        %v735 = vsel %vm323, %v704, 0
        %v737 = vsel %vm323, %v706, 0
        %v739 = vsel %vm323, %v708, 0
        %v741 = vsel %vm323, %v710, 0
        %v743 = vsel %vm323, %v712, 0
        %v745 = vsel %vm323, %v714, 0
        %v747 = vsel %vm323, %v716, 0
        %v749 = vsel %vm323, %v718, 0
        %v751 = vsel %vm323, %v720, 0
        %v753 = vsel %vm323, %v722, 0
        %v755 = vsel %vm323, %v724, 0
        %v757 = vsel %vm323, %v726, 0
        %759 = vmatprep.subr.mxu0 0.0
        %760 = vmatpush1.xpose.msra.mxu0 0.0
        %761 = vmatprep.subr.mxu0 0.0
        %762 = vmatpush1.xpose.msra.mxu0 0.0
        %763 = vmatprep.subr.mxu0 0.0
        %764 = vmatpush1.xpose.msra.mxu0 0.0
        %765 = vmatprep.subr.mxu0 0.0
        %766 = vmatpush1.xpose.msra.mxu0 0.0
        %767 = vmatprep.subr.mxu0 0.0
        %768 = vmatpush1.xpose.msra.mxu0 0.0
        %769 = vmatprep.subr.mxu0 0.0
        %770 = vmatpush1.xpose.msra.mxu0 0.0
        %771 = vmatprep.subr.mxu0 0.0
        %772 = vmatpush1.xpose.msra.mxu0 0.0
        %773 = vmatprep.subr.mxu0 0.0
        %774 = vmatpush1.xpose.msra.mxu0 0.0
        %775 = vmatprep.subr.mxu0 0.0
        %776 = vmatpush1.xpose.msra.mxu0 %v757
        %777 = vmatprep.subr.mxu0 0.0
        %778 = vmatpush1.xpose.msra.mxu0 %v755
        %779 = vmatprep.subr.mxu0 0.0
        %780 = vmatpush1.xpose.msra.mxu0 %v753
        %781 = vmatprep.subr.mxu0 0.0
        %782 = vmatpush1.xpose.msra.mxu0 %v751
        %783 = vmatprep.subr.mxu0 0.0
        %784 = vmatpush1.xpose.msra.mxu0 %v749
        %785 = vmatprep.subr.mxu0 0.0
        %786 = vmatpush1.xpose.msra.mxu0 %v747
        %787 = vmatprep.subr.mxu0 0.0
        %788 = vmatpush1.xpose.msra.mxu0 %v745
        %789 = vmatprep.subr.mxu0 0.0
        %790 = vmatpush1.xpose.msra.mxu0 %v743
        %791 = vmatprep.subr.mxu0 0.0
        %792 = vmatpush2.xpose.msra.mxu0 0.0
        %793 = vmatprep.subr.mxu0 0.0
        %794 = vmatpush2.xpose.msra.mxu0 0.0
        %795 = vmatprep.subr.mxu0 0.0
        %796 = vmatpush2.xpose.msra.mxu0 0.0
        %797 = vmatprep.subr.mxu0 0.0
        %798 = vmatpush2.xpose.msra.mxu0 0.0
        %799 = vmatprep.subr.mxu0 0.0
        %800 = vmatpush2.xpose.msra.mxu0 0.0
        %801 = vmatprep.subr.mxu0 0.0
        %802 = vmatpush2.xpose.msra.mxu0 0.0
        %803 = vmatprep.subr.mxu0 0.0
        %804 = vmatpush2.xpose.msra.mxu0 0.0
        %805 = vmatprep.subr.mxu0 0.0
        %806 = vmatpush2.xpose.msra.mxu0 0.0
        %807 = vmatprep.subr.mxu0 0.0
        %808 = vmatpush2.xpose.msra.mxu0 0.0
        %809 = vmatprep.subr.mxu0 0.0
        %810 = vmatpush2.xpose.msra.mxu0 0.0
        %811 = vmatprep.subr.mxu0 0.0
        %812 = vmatpush2.xpose.msra.mxu0 0.0
        %813 = vmatprep.subr.mxu0 0.0
        %814 = vmatpush2.xpose.msra.mxu0 0.0
        %815 = vmatprep.subr.mxu0 0.0
        %816 = vmatpush2.xpose.msra.mxu0 0.0
        %817 = vmatprep.subr.mxu0 0.0
        %818 = vmatpush2.xpose.msra.mxu0 0.0
        %819 = vmatprep.subr.mxu0 0.0
        %820 = vmatpush2.xpose.msra.mxu0 0.0
        %821 = vmatprep.subr.mxu0 0.0
        %822 = vmatpush2.xpose.msra.mxu0 0.0
        %823 = vmatprep.mubr.f32.mxu0 0.0
        %824 = vmatmul.mubr.f32.gmra.mxu0 %v727
        %v825 = vpop.f32.mrf.mxu0
        %v826 = vadd.f32 0.0, %v825
        %v827 = vpop.f32.mrf.mxu0
        %828 = vmatprep.mubr.f32.mxu0 0.0
        %829 = vmatmul.mubr.f32.gmra.mxu0 %v729
        %v830 = vpop.f32.mrf.mxu0
        %v831 = vadd.f32 0.0, %v830
        %v832 = vpop.f32.mrf.mxu0
        %833 = vmatprep.mubr.f32.mxu0 0.0
        %834 = vmatmul.mubr.f32.gmra.mxu0 %v731
        %v835 = vpop.f32.mrf.mxu0
        %v836 = vadd.f32 0.0, %v835
        %v837 = vpop.f32.mrf.mxu0
        %838 = vmatprep.mubr.f32.mxu0 0.0
        %839 = vmatmul.mubr.f32.gmra.mxu0 %v733
        %v840 = vpop.f32.mrf.mxu0
        %v841 = vadd.f32 0.0, %v840
        %v842 = vpop.f32.mrf.mxu0
        %843 = vmatprep.mubr.f32.mxu0 0.0
        %844 = vmatmul.mubr.f32.gmra.mxu0 %v735
        %v845 = vpop.f32.mrf.mxu0
        %v846 = vadd.f32 0.0, %v845
        %v847 = vpop.f32.mrf.mxu0
        %848 = vmatprep.mubr.f32.mxu0 0.0
        %849 = vmatmul.mubr.f32.gmra.mxu0 %v737
        %v850 = vpop.f32.mrf.mxu0
        %v851 = vadd.f32 0.0, %v850
        %v852 = vpop.f32.mrf.mxu0
        %853 = vmatprep.mubr.f32.mxu0 0.0
        %854 = vmatmul.mubr.f32.gmra.mxu0 %v739
        %v855 = vpop.f32.mrf.mxu0
        %v856 = vadd.f32 0.0, %v855
        %v857 = vpop.f32.mrf.mxu0
        %858 = vmatprep.mubr.f32.mxu0 0.0
        %859 = vmatmul.mubr.f32.gmra.mxu0 %v741
        %v860 = vpop.f32.mrf.mxu0
        %v861 = vadd.f32 0.0, %v860
        %v862 = vpop.f32.mrf.mxu0
        %863 = vdwg.mxu0
        %v864 = vsel %vm477, %v826, -inf
        %865 = vmax.xlane.f32.xlu0 %v864
        %v866 = vpop.xlane.xlu0 %865
        %v867 = vsel %vm477, %v831, -inf
        %868 = vmax.xlane.f32.xlu0 %v867
        %v869 = vpop.xlane.xlu0 %868
        %v870 = vsel %vm477, %v836, -inf
        %871 = vmax.xlane.f32.xlu0 %v870
        %v872 = vpop.xlane.xlu0 %871
        %v873 = vsel %vm477, %v841, -inf
        %874 = vmax.xlane.f32.xlu0 %v873
        %v875 = vpop.xlane.xlu0 %874
        %v876 = vsel %vm477, %v846, -inf
        %877 = vmax.xlane.f32.xlu0 %v876
        %v878 = vpop.xlane.xlu0 %877
        %v879 = vsel %vm477, %v851, -inf
        %880 = vmax.xlane.f32.xlu0 %v879
        %v881 = vpop.xlane.xlu0 %880
        %v882 = vsel %vm477, %v856, -inf
        %883 = vmax.xlane.f32.xlu0 %v882
        %v884 = vpop.xlane.xlu0 %883
        %v885 = vsel %vm477, %v861, -inf
        %886 = vmax.xlane.f32.xlu0 %v885
        %v887 = vpop.xlane.xlu0 %886
        %v888 = vsub.f32 %v826, %v866
        %v889 = vsub.f32 %v831, %v869
        %v890 = vsub.f32 %v836, %v872
        %v891 = vsub.f32 %v841, %v875
        %v892 = vsub.f32 %v846, %v878
        %v893 = vsub.f32 %v851, %v881
        %v894 = vsub.f32 %v856, %v884
        %v895 = vsub.f32 %v861, %v887
        %v896 = vmul.f32 %v888, 1.442695
        %v897 = vpow.pop %v896
        %v898 = vmul.f32 %v889, 1.442695
        %v899 = vpow.pop %v898
        %v900 = vmul.f32 %v890, 1.442695
        %v901 = vpow.pop %v900
        %v902 = vmul.f32 %v891, 1.442695
        %v903 = vpow.pop %v902
        %v904 = vmul.f32 %v892, 1.442695
        %v905 = vpow.pop %v904
        %v906 = vmul.f32 %v893, 1.442695
        %v907 = vpow.pop %v906
        %v908 = vmul.f32 %v894, 1.442695
        %v909 = vpow.pop %v908
        %v910 = vmul.f32 %v895, 1.442695
        %v911 = vpow.pop %v910
        %v912 = vsel %vm477, %v897, 0.0
        %913 = vadd.xlane.f32.xlu0 %v912
        %v914 = vpop.xlane.xlu0 %913
        %v915 = vsel %vm477, %v899, 0.0
        %916 = vadd.xlane.f32.xlu0 %v915
        %v917 = vpop.xlane.xlu0 %916
        %v918 = vsel %vm477, %v901, 0.0
        %919 = vadd.xlane.f32.xlu0 %v918
        %v920 = vpop.xlane.xlu0 %919
        %v921 = vsel %vm477, %v903, 0.0
        %922 = vadd.xlane.f32.xlu0 %v921
        %v923 = vpop.xlane.xlu0 %922
        %v924 = vsel %vm477, %v905, 0.0
        %925 = vadd.xlane.f32.xlu0 %v924
        %v926 = vpop.xlane.xlu0 %925
        %v927 = vsel %vm477, %v907, 0.0
        %928 = vadd.xlane.f32.xlu0 %v927
        %v929 = vpop.xlane.xlu0 %928
        %v930 = vsel %vm477, %v909, 0.0
        %931 = vadd.xlane.f32.xlu0 %v930
        %v932 = vpop.xlane.xlu0 %931
        %v933 = vsel %vm477, %v911, 0.0
        %934 = vadd.xlane.f32.xlu0 %v933
        %v935 = vpop.xlane.xlu0 %934
        %v936 = vrcp.pop %v914
        %v937 = vrcp.pop %v917
        %v938 = vrcp.pop %v920
        %v939 = vrcp.pop %v923
        %v940 = vrcp.pop %v926
        %v941 = vrcp.pop %v929
        %v942 = vrcp.pop %v932
        %v943 = vrcp.pop %v935
        %952 = vrot.lane.b32.xlu0 %v315, 96
        %v953 = vpop.permute.xlu0 %952
        %954 = vrot.lane.b32.xlu0 %v316, 96
        %v955 = vpop.permute.xlu0 %954
        %956 = vrot.lane.b32.xlu0 %v317, 96
        %v957 = vpop.permute.xlu0 %956
        %958 = vrot.lane.b32.xlu0 %v318, 96
        %v959 = vpop.permute.xlu0 %958
        %960 = vrot.lane.b32.xlu0 %v319, 96
        %v961 = vpop.permute.xlu0 %960
        %962 = vrot.lane.b32.xlu0 %v320, 96
        %v963 = vpop.permute.xlu0 %962
        %964 = vrot.lane.b32.xlu0 %v321, 96
        %v965 = vpop.permute.xlu0 %964
        %966 = vrot.lane.b32.xlu0 %v322, 96
        %v967 = vpop.permute.xlu0 %966
        %v977 = vsel %vm477, %v897, 0
        %v980 = vsel %vm477, %v899, 0
        %v983 = vsel %vm477, %v901, 0
        %v986 = vsel %vm477, %v903, 0
        %v989 = vsel %vm477, %v905, 0
        %v992 = vsel %vm477, %v907, 0
        %v995 = vsel %vm477, %v909, 0
        %v998 = vsel %vm477, %v911, 0
        %1000 = vmatprep.subr.mxu0 0.0
        %1001 = vmatpush1.msra.mxu0 0.0
        %1002 = vmatprep.subr.mxu0 0.0
        %1003 = vmatpush1.msra.mxu0 0.0
        %1004 = vmatprep.subr.mxu0 0.0
        %1005 = vmatpush1.msra.mxu0 0.0
        %1006 = vmatprep.subr.mxu0 0.0
        %1007 = vmatpush1.msra.mxu0 0.0
        %1008 = vmatprep.subr.mxu0 0.0
        %1009 = vmatpush1.msra.mxu0 0.0
        %1010 = vmatprep.subr.mxu0 0.0
        %1011 = vmatpush1.msra.mxu0 0.0
        %1012 = vmatprep.subr.mxu0 0.0
        %1013 = vmatpush1.msra.mxu0 0.0
        %1014 = vmatprep.subr.mxu0 0.0
        %1015 = vmatpush1.msra.mxu0 0.0
        %1016 = vmatprep.subr.mxu0 0.0
        %1017 = vmatpush1.msra.mxu0 %v967
        %1018 = vmatprep.subr.mxu0 0.0
        %1019 = vmatpush1.msra.mxu0 %v965
        %1020 = vmatprep.subr.mxu0 0.0
        %1021 = vmatpush1.msra.mxu0 %v963
        %1022 = vmatprep.subr.mxu0 0.0
        %1023 = vmatpush1.msra.mxu0 %v961
        %1024 = vmatprep.subr.mxu0 0.0
        %1025 = vmatpush1.msra.mxu0 %v959
        %1026 = vmatprep.subr.mxu0 0.0
        %1027 = vmatpush1.msra.mxu0 %v957
        %1028 = vmatprep.subr.mxu0 0.0
        %1029 = vmatpush1.msra.mxu0 %v955
        %1030 = vmatprep.subr.mxu0 0.0
        %1031 = vmatpush1.msra.mxu0 %v953
        %1032 = vmatprep.subr.mxu0 0.0
        %1033 = vmatpush2.msra.mxu0 0.0
        %1034 = vmatprep.subr.mxu0 0.0
        %1035 = vmatpush2.msra.mxu0 0.0
        %1036 = vmatprep.subr.mxu0 0.0
        %1037 = vmatpush2.msra.mxu0 0.0
        %1038 = vmatprep.subr.mxu0 0.0
        %1039 = vmatpush2.msra.mxu0 0.0
        %1040 = vmatprep.subr.mxu0 0.0
        %1041 = vmatpush2.msra.mxu0 0.0
        %1042 = vmatprep.subr.mxu0 0.0
        %1043 = vmatpush2.msra.mxu0 0.0
        %1044 = vmatprep.subr.mxu0 0.0
        %1045 = vmatpush2.msra.mxu0 0.0
        %1046 = vmatprep.subr.mxu0 0.0
        %1047 = vmatpush2.msra.mxu0 0.0
        %1048 = vmatprep.subr.mxu0 0.0
        %1049 = vmatpush2.msra.mxu0 0.0
        %1050 = vmatprep.subr.mxu0 0.0
        %1051 = vmatpush2.msra.mxu0 0.0
        %1052 = vmatprep.subr.mxu0 0.0
        %1053 = vmatpush2.msra.mxu0 0.0
        %1054 = vmatprep.subr.mxu0 0.0
        %1055 = vmatpush2.msra.mxu0 0.0
        %1056 = vmatprep.subr.mxu0 0.0
        %1057 = vmatpush2.msra.mxu0 0.0
        %1058 = vmatprep.subr.mxu0 0.0
        %1059 = vmatpush2.msra.mxu0 0.0
        %1060 = vmatprep.subr.mxu0 0.0
        %1061 = vmatpush2.msra.mxu0 0.0
        %1062 = vmatprep.subr.mxu0 0.0
        %1063 = vmatpush2.msra.mxu0 0.0
        %1064 = vmatprep.mubr.f32.mxu0 0.0
        %1065 = vmatmul.mubr.f32.gmra.mxu0 %v977
        %v1066 = vpop.f32.mrf.mxu0
        %v1067 = vadd.f32 0.0, %v1066
        %v1068 = vpop.f32.mrf.mxu0
        %1069 = vmatprep.mubr.f32.mxu0 0.0
        %1070 = vmatmul.mubr.f32.gmra.mxu0 %v980
        %v1071 = vpop.f32.mrf.mxu0
        %v1072 = vadd.f32 0.0, %v1071
        %v1073 = vpop.f32.mrf.mxu0
        %1074 = vmatprep.mubr.f32.mxu0 0.0
        %1075 = vmatmul.mubr.f32.gmra.mxu0 %v983
        %v1076 = vpop.f32.mrf.mxu0
        %v1077 = vadd.f32 0.0, %v1076
        %v1078 = vpop.f32.mrf.mxu0
        %1079 = vmatprep.mubr.f32.mxu0 0.0
        %1080 = vmatmul.mubr.f32.gmra.mxu0 %v986
        %v1081 = vpop.f32.mrf.mxu0
        %v1082 = vadd.f32 0.0, %v1081
        %v1083 = vpop.f32.mrf.mxu0
        %1084 = vmatprep.mubr.f32.mxu0 0.0
        %1085 = vmatmul.mubr.f32.gmra.mxu0 %v989
        %v1086 = vpop.f32.mrf.mxu0
        %v1087 = vadd.f32 0.0, %v1086
        %v1088 = vpop.f32.mrf.mxu0
        %1089 = vmatprep.mubr.f32.mxu0 0.0
        %1090 = vmatmul.mubr.f32.gmra.mxu0 %v992
        %v1091 = vpop.f32.mrf.mxu0
        %v1092 = vadd.f32 0.0, %v1091
        %v1093 = vpop.f32.mrf.mxu0
        %1094 = vmatprep.mubr.f32.mxu0 0.0
        %1095 = vmatmul.mubr.f32.gmra.mxu0 %v995
        %v1096 = vpop.f32.mrf.mxu0
        %v1097 = vadd.f32 0.0, %v1096
        %v1098 = vpop.f32.mrf.mxu0
        %1099 = vmatprep.mubr.f32.mxu0 0.0
        %1100 = vmatmul.mubr.f32.gmra.mxu0 %v998
        %v1101 = vpop.f32.mrf.mxu0
        %v1102 = vadd.f32 0.0, %v1101
        %v1103 = vpop.f32.mrf.mxu0
        %1104 = vdwg.mxu0
        %v1105 = vmul.f32 %v1067, %v936
        %v1106 = vmul.f32 %v1072, %v937
        %v1107 = vmul.f32 %v1077, %v938
        %v1108 = vmul.f32 %v1082, %v939
        %v1109 = vmul.f32 %v1087, %v940
        %v1110 = vmul.f32 %v1092, %v941
        %v1111 = vmul.f32 %v1097, %v942
        %v1112 = vmul.f32 %v1102, %v943
        %1113 = vrot.lane.b32.xlu0 %v299, 64
        %v1114 = vpop.permute.xlu0 %1113
        %1115 = vrot.lane.b32.xlu0 %v300, 64
        %v1116 = vpop.permute.xlu0 %1115
        %1117 = vrot.lane.b32.xlu0 %v301, 64
        %v1118 = vpop.permute.xlu0 %1117
        %1119 = vrot.lane.b32.xlu0 %v302, 64
        %v1120 = vpop.permute.xlu0 %1119
        %1121 = vrot.lane.b32.xlu0 %v303, 64
        %v1122 = vpop.permute.xlu0 %1121
        %1123 = vrot.lane.b32.xlu0 %v304, 64
        %v1124 = vpop.permute.xlu0 %1123
        %1125 = vrot.lane.b32.xlu0 %v305, 64
        %v1126 = vpop.permute.xlu0 %1125
        %1127 = vrot.lane.b32.xlu0 %v306, 64
        %v1128 = vpop.permute.xlu0 %1127
        %1129 = vrot.lane.b32.xlu0 %v307, 64
        %v1130 = vpop.permute.xlu0 %1129
        %1131 = vrot.lane.b32.xlu0 %v308, 64
        %v1132 = vpop.permute.xlu0 %1131
        %1133 = vrot.lane.b32.xlu0 %v309, 64
        %v1134 = vpop.permute.xlu0 %1133
        %1135 = vrot.lane.b32.xlu0 %v310, 64
        %v1136 = vpop.permute.xlu0 %1135
        %1137 = vrot.lane.b32.xlu0 %v311, 64
        %v1138 = vpop.permute.xlu0 %1137
        %1139 = vrot.lane.b32.xlu0 %v312, 64
        %v1140 = vpop.permute.xlu0 %1139
        %1141 = vrot.lane.b32.xlu0 %v313, 64
        %v1142 = vpop.permute.xlu0 %1141
        %1143 = vrot.lane.b32.xlu0 %v314, 64
        %v1144 = vpop.permute.xlu0 %1143
        %v1145 = vsel %vm323, %v1114, 0
        %v1147 = vsel %vm323, %v1116, 0
        %v1149 = vsel %vm323, %v1118, 0
        %v1151 = vsel %vm323, %v1120, 0
        %v1153 = vsel %vm323, %v1122, 0
        %v1155 = vsel %vm323, %v1124, 0
        %v1157 = vsel %vm323, %v1126, 0
        %v1159 = vsel %vm323, %v1128, 0
        %v1161 = vsel %vm323, %v1130, 0
        %v1163 = vsel %vm323, %v1132, 0
        %v1165 = vsel %vm323, %v1134, 0
        %v1167 = vsel %vm323, %v1136, 0
        %v1169 = vsel %vm323, %v1138, 0
        %v1171 = vsel %vm323, %v1140, 0
        %v1173 = vsel %vm323, %v1142, 0
        %v1175 = vsel %vm323, %v1144, 0
        %1177 = vmatprep.subr.mxu0 0.0
        %1178 = vmatpush1.xpose.msra.mxu0 0.0
        %1179 = vmatprep.subr.mxu0 0.0
        %1180 = vmatpush1.xpose.msra.mxu0 0.0
        %1181 = vmatprep.subr.mxu0 0.0
        %1182 = vmatpush1.xpose.msra.mxu0 0.0
        %1183 = vmatprep.subr.mxu0 0.0
        %1184 = vmatpush1.xpose.msra.mxu0 0.0
        %1185 = vmatprep.subr.mxu0 0.0
        %1186 = vmatpush1.xpose.msra.mxu0 0.0
        %1187 = vmatprep.subr.mxu0 0.0
        %1188 = vmatpush1.xpose.msra.mxu0 0.0
        %1189 = vmatprep.subr.mxu0 0.0
        %1190 = vmatpush1.xpose.msra.mxu0 0.0
        %1191 = vmatprep.subr.mxu0 0.0
        %1192 = vmatpush1.xpose.msra.mxu0 0.0
        %1193 = vmatprep.subr.mxu0 0.0
        %1194 = vmatpush1.xpose.msra.mxu0 %v1175
        %1195 = vmatprep.subr.mxu0 0.0
        %1196 = vmatpush1.xpose.msra.mxu0 %v1173
        %1197 = vmatprep.subr.mxu0 0.0
        %1198 = vmatpush1.xpose.msra.mxu0 %v1171
        %1199 = vmatprep.subr.mxu0 0.0
        %1200 = vmatpush1.xpose.msra.mxu0 %v1169
        %1201 = vmatprep.subr.mxu0 0.0
        %1202 = vmatpush1.xpose.msra.mxu0 %v1167
        %1203 = vmatprep.subr.mxu0 0.0
        %1204 = vmatpush1.xpose.msra.mxu0 %v1165
        %1205 = vmatprep.subr.mxu0 0.0
        %1206 = vmatpush1.xpose.msra.mxu0 %v1163
        %1207 = vmatprep.subr.mxu0 0.0
        %1208 = vmatpush1.xpose.msra.mxu0 %v1161
        %1209 = vmatprep.subr.mxu0 0.0
        %1210 = vmatpush2.xpose.msra.mxu0 0.0
        %1211 = vmatprep.subr.mxu0 0.0
        %1212 = vmatpush2.xpose.msra.mxu0 0.0
        %1213 = vmatprep.subr.mxu0 0.0
        %1214 = vmatpush2.xpose.msra.mxu0 0.0
        %1215 = vmatprep.subr.mxu0 0.0
        %1216 = vmatpush2.xpose.msra.mxu0 0.0
        %1217 = vmatprep.subr.mxu0 0.0
        %1218 = vmatpush2.xpose.msra.mxu0 0.0
        %1219 = vmatprep.subr.mxu0 0.0
        %1220 = vmatpush2.xpose.msra.mxu0 0.0
        %1221 = vmatprep.subr.mxu0 0.0
        %1222 = vmatpush2.xpose.msra.mxu0 0.0
        %1223 = vmatprep.subr.mxu0 0.0
        %1224 = vmatpush2.xpose.msra.mxu0 0.0
        %1225 = vmatprep.subr.mxu0 0.0
        %1226 = vmatpush2.xpose.msra.mxu0 0.0
        %1227 = vmatprep.subr.mxu0 0.0
        %1228 = vmatpush2.xpose.msra.mxu0 0.0
        %1229 = vmatprep.subr.mxu0 0.0
        %1230 = vmatpush2.xpose.msra.mxu0 0.0
        %1231 = vmatprep.subr.mxu0 0.0
        %1232 = vmatpush2.xpose.msra.mxu0 0.0
        %1233 = vmatprep.subr.mxu0 0.0
        %1234 = vmatpush2.xpose.msra.mxu0 0.0
        %1235 = vmatprep.subr.mxu0 0.0
        %1236 = vmatpush2.xpose.msra.mxu0 0.0
        %1237 = vmatprep.subr.mxu0 0.0
        %1238 = vmatpush2.xpose.msra.mxu0 0.0
        %1239 = vmatprep.subr.mxu0 0.0
        %1240 = vmatpush2.xpose.msra.mxu0 0.0
        %1241 = vmatprep.mubr.f32.mxu0 0.0
        %1242 = vmatmul.mubr.f32.gmra.mxu0 %v1145
        %v1243 = vpop.f32.mrf.mxu0
        %v1244 = vadd.f32 0.0, %v1243
        %v1245 = vpop.f32.mrf.mxu0
        %1246 = vmatprep.mubr.f32.mxu0 0.0
        %1247 = vmatmul.mubr.f32.gmra.mxu0 %v1147
        %v1248 = vpop.f32.mrf.mxu0
        %v1249 = vadd.f32 0.0, %v1248
        %v1250 = vpop.f32.mrf.mxu0
        %1251 = vmatprep.mubr.f32.mxu0 0.0
        %1252 = vmatmul.mubr.f32.gmra.mxu0 %v1149
        %v1253 = vpop.f32.mrf.mxu0
        %v1254 = vadd.f32 0.0, %v1253
        %v1255 = vpop.f32.mrf.mxu0
        %1256 = vmatprep.mubr.f32.mxu0 0.0
        %1257 = vmatmul.mubr.f32.gmra.mxu0 %v1151
        %v1258 = vpop.f32.mrf.mxu0
        %v1259 = vadd.f32 0.0, %v1258
        %v1260 = vpop.f32.mrf.mxu0
        %1261 = vmatprep.mubr.f32.mxu0 0.0
        %1262 = vmatmul.mubr.f32.gmra.mxu0 %v1153
        %v1263 = vpop.f32.mrf.mxu0
        %v1264 = vadd.f32 0.0, %v1263
        %v1265 = vpop.f32.mrf.mxu0
        %1266 = vmatprep.mubr.f32.mxu0 0.0
        %1267 = vmatmul.mubr.f32.gmra.mxu0 %v1155
        %v1268 = vpop.f32.mrf.mxu0
        %v1269 = vadd.f32 0.0, %v1268
        %v1270 = vpop.f32.mrf.mxu0
        %1271 = vmatprep.mubr.f32.mxu0 0.0
        %1272 = vmatmul.mubr.f32.gmra.mxu0 %v1157
        %v1273 = vpop.f32.mrf.mxu0
        %v1274 = vadd.f32 0.0, %v1273
        %v1275 = vpop.f32.mrf.mxu0
        %1276 = vmatprep.mubr.f32.mxu0 0.0
        %1277 = vmatmul.mubr.f32.gmra.mxu0 %v1159
        %v1278 = vpop.f32.mrf.mxu0
        %v1279 = vadd.f32 0.0, %v1278
        %v1280 = vpop.f32.mrf.mxu0
        %1281 = vdwg.mxu0
        %v1282 = vsel %vm477, %v1244, -inf
        %1283 = vmax.xlane.f32.xlu0 %v1282
        %v1284 = vpop.xlane.xlu0 %1283
        %v1285 = vsel %vm477, %v1249, -inf
        %1286 = vmax.xlane.f32.xlu0 %v1285
        %v1287 = vpop.xlane.xlu0 %1286
        %v1288 = vsel %vm477, %v1254, -inf
        %1289 = vmax.xlane.f32.xlu0 %v1288
        %v1290 = vpop.xlane.xlu0 %1289
        %v1291 = vsel %vm477, %v1259, -inf
        %1292 = vmax.xlane.f32.xlu0 %v1291
        %v1293 = vpop.xlane.xlu0 %1292
        %v1294 = vsel %vm477, %v1264, -inf
        %1295 = vmax.xlane.f32.xlu0 %v1294
        %v1296 = vpop.xlane.xlu0 %1295
        %v1297 = vsel %vm477, %v1269, -inf
        %1298 = vmax.xlane.f32.xlu0 %v1297
        %v1299 = vpop.xlane.xlu0 %1298
        %v1300 = vsel %vm477, %v1274, -inf
        %1301 = vmax.xlane.f32.xlu0 %v1300
        %v1302 = vpop.xlane.xlu0 %1301
        %v1303 = vsel %vm477, %v1279, -inf
        %1304 = vmax.xlane.f32.xlu0 %v1303
        %v1305 = vpop.xlane.xlu0 %1304
        %v1306 = vsub.f32 %v1244, %v1284
        %v1307 = vsub.f32 %v1249, %v1287
        %v1308 = vsub.f32 %v1254, %v1290
        %v1309 = vsub.f32 %v1259, %v1293
        %v1310 = vsub.f32 %v1264, %v1296
        %v1311 = vsub.f32 %v1269, %v1299
        %v1312 = vsub.f32 %v1274, %v1302
        %v1313 = vsub.f32 %v1279, %v1305
        %v1314 = vmul.f32 %v1306, 1.442695
        %v1315 = vpow.pop %v1314
        %v1316 = vmul.f32 %v1307, 1.442695
        %v1317 = vpow.pop %v1316
        %v1318 = vmul.f32 %v1308, 1.442695
        %v1319 = vpow.pop %v1318
        %v1320 = vmul.f32 %v1309, 1.442695
        %v1321 = vpow.pop %v1320
        %v1322 = vmul.f32 %v1310, 1.442695
        %v1323 = vpow.pop %v1322
        %v1324 = vmul.f32 %v1311, 1.442695
        %v1325 = vpow.pop %v1324
        %v1326 = vmul.f32 %v1312, 1.442695
        %v1327 = vpow.pop %v1326
        %v1328 = vmul.f32 %v1313, 1.442695
        %v1329 = vpow.pop %v1328
        %v1330 = vsel %vm477, %v1315, 0.0
        %1331 = vadd.xlane.f32.xlu0 %v1330
        %v1332 = vpop.xlane.xlu0 %1331
        %v1333 = vsel %vm477, %v1317, 0.0
        %1334 = vadd.xlane.f32.xlu0 %v1333
        %v1335 = vpop.xlane.xlu0 %1334
        %v1336 = vsel %vm477, %v1319, 0.0
        %1337 = vadd.xlane.f32.xlu0 %v1336
        %v1338 = vpop.xlane.xlu0 %1337
        %v1339 = vsel %vm477, %v1321, 0.0
        %1340 = vadd.xlane.f32.xlu0 %v1339
        %v1341 = vpop.xlane.xlu0 %1340
        %v1342 = vsel %vm477, %v1323, 0.0
        %1343 = vadd.xlane.f32.xlu0 %v1342
        %v1344 = vpop.xlane.xlu0 %1343
        %v1345 = vsel %vm477, %v1325, 0.0
        %1346 = vadd.xlane.f32.xlu0 %v1345
        %v1347 = vpop.xlane.xlu0 %1346
        %v1348 = vsel %vm477, %v1327, 0.0
        %1349 = vadd.xlane.f32.xlu0 %v1348
        %v1350 = vpop.xlane.xlu0 %1349
        %v1351 = vsel %vm477, %v1329, 0.0
        %1352 = vadd.xlane.f32.xlu0 %v1351
        %v1353 = vpop.xlane.xlu0 %1352
        %v1354 = vrcp.pop %v1332
        %v1355 = vrcp.pop %v1335
        %v1356 = vrcp.pop %v1338
        %v1357 = vrcp.pop %v1341
        %v1358 = vrcp.pop %v1344
        %v1359 = vrcp.pop %v1347
        %v1360 = vrcp.pop %v1350
        %v1361 = vrcp.pop %v1353
        %1362 = vrot.lane.b32.xlu0 %v315, 64
        %v1363 = vpop.permute.xlu0 %1362
        %1364 = vrot.lane.b32.xlu0 %v316, 64
        %v1365 = vpop.permute.xlu0 %1364
        %1366 = vrot.lane.b32.xlu0 %v317, 64
        %v1367 = vpop.permute.xlu0 %1366
        %1368 = vrot.lane.b32.xlu0 %v318, 64
        %v1369 = vpop.permute.xlu0 %1368
        %1370 = vrot.lane.b32.xlu0 %v319, 64
        %v1371 = vpop.permute.xlu0 %1370
        %1372 = vrot.lane.b32.xlu0 %v320, 64
        %v1373 = vpop.permute.xlu0 %1372
        %1374 = vrot.lane.b32.xlu0 %v321, 64
        %v1375 = vpop.permute.xlu0 %1374
        %1376 = vrot.lane.b32.xlu0 %v322, 64
        %v1377 = vpop.permute.xlu0 %1376
        %v1387 = vsel %vm477, %v1315, 0
        %v1390 = vsel %vm477, %v1317, 0
        %v1393 = vsel %vm477, %v1319, 0
        %v1396 = vsel %vm477, %v1321, 0
        %v1399 = vsel %vm477, %v1323, 0
        %v1402 = vsel %vm477, %v1325, 0
        %v1405 = vsel %vm477, %v1327, 0
        %v1408 = vsel %vm477, %v1329, 0
        %1410 = vmatprep.subr.mxu0 0.0
        %1411 = vmatpush1.msra.mxu0 0.0
        %1412 = vmatprep.subr.mxu0 0.0
        %1413 = vmatpush1.msra.mxu0 0.0
        %1414 = vmatprep.subr.mxu0 0.0
        %1415 = vmatpush1.msra.mxu0 0.0
        %1416 = vmatprep.subr.mxu0 0.0
        %1417 = vmatpush1.msra.mxu0 0.0
        %1418 = vmatprep.subr.mxu0 0.0
        %1419 = vmatpush1.msra.mxu0 0.0
        %1420 = vmatprep.subr.mxu0 0.0
        %1421 = vmatpush1.msra.mxu0 0.0
        %1422 = vmatprep.subr.mxu0 0.0
        %1423 = vmatpush1.msra.mxu0 0.0
        %1424 = vmatprep.subr.mxu0 0.0
        %1425 = vmatpush1.msra.mxu0 0.0
        %1426 = vmatprep.subr.mxu0 0.0
        %1427 = vmatpush1.msra.mxu0 %v1377
        %1428 = vmatprep.subr.mxu0 0.0
        %1429 = vmatpush1.msra.mxu0 %v1375
        %1430 = vmatprep.subr.mxu0 0.0
        %1431 = vmatpush1.msra.mxu0 %v1373
        %1432 = vmatprep.subr.mxu0 0.0
        %1433 = vmatpush1.msra.mxu0 %v1371
        %1434 = vmatprep.subr.mxu0 0.0
        %1435 = vmatpush1.msra.mxu0 %v1369
        %1436 = vmatprep.subr.mxu0 0.0
        %1437 = vmatpush1.msra.mxu0 %v1367
        %1438 = vmatprep.subr.mxu0 0.0
        %1439 = vmatpush1.msra.mxu0 %v1365
        %1440 = vmatprep.subr.mxu0 0.0
        %1441 = vmatpush1.msra.mxu0 %v1363
        %1442 = vmatprep.subr.mxu0 0.0
        %1443 = vmatpush2.msra.mxu0 0.0
        %1444 = vmatprep.subr.mxu0 0.0
        %1445 = vmatpush2.msra.mxu0 0.0
        %1446 = vmatprep.subr.mxu0 0.0
        %1447 = vmatpush2.msra.mxu0 0.0
        %1448 = vmatprep.subr.mxu0 0.0
        %1449 = vmatpush2.msra.mxu0 0.0
        %1450 = vmatprep.subr.mxu0 0.0
        %1451 = vmatpush2.msra.mxu0 0.0
        %1452 = vmatprep.subr.mxu0 0.0
        %1453 = vmatpush2.msra.mxu0 0.0
        %1454 = vmatprep.subr.mxu0 0.0
        %1455 = vmatpush2.msra.mxu0 0.0
        %1456 = vmatprep.subr.mxu0 0.0
        %1457 = vmatpush2.msra.mxu0 0.0
        %1458 = vmatprep.subr.mxu0 0.0
        %1459 = vmatpush2.msra.mxu0 0.0
        %1460 = vmatprep.subr.mxu0 0.0
        %1461 = vmatpush2.msra.mxu0 0.0
        %1462 = vmatprep.subr.mxu0 0.0
        %1463 = vmatpush2.msra.mxu0 0.0
        %1464 = vmatprep.subr.mxu0 0.0
        %1465 = vmatpush2.msra.mxu0 0.0
        %1466 = vmatprep.subr.mxu0 0.0
        %1467 = vmatpush2.msra.mxu0 0.0
        %1468 = vmatprep.subr.mxu0 0.0
        %1469 = vmatpush2.msra.mxu0 0.0
        %1470 = vmatprep.subr.mxu0 0.0
        %1471 = vmatpush2.msra.mxu0 0.0
        %1472 = vmatprep.subr.mxu0 0.0
        %1473 = vmatpush2.msra.mxu0 0.0
        %1474 = vmatprep.mubr.f32.mxu0 0.0
        %1475 = vmatmul.mubr.f32.gmra.mxu0 %v1387
        %v1476 = vpop.f32.mrf.mxu0
        %v1477 = vadd.f32 0.0, %v1476
        %v1478 = vpop.f32.mrf.mxu0
        %1479 = vmatprep.mubr.f32.mxu0 0.0
        %1480 = vmatmul.mubr.f32.gmra.mxu0 %v1390
        %v1481 = vpop.f32.mrf.mxu0
        %v1482 = vadd.f32 0.0, %v1481
        %v1483 = vpop.f32.mrf.mxu0
        %1484 = vmatprep.mubr.f32.mxu0 0.0
        %1485 = vmatmul.mubr.f32.gmra.mxu0 %v1393
        %v1486 = vpop.f32.mrf.mxu0
        %v1487 = vadd.f32 0.0, %v1486
        %v1488 = vpop.f32.mrf.mxu0
        %1489 = vmatprep.mubr.f32.mxu0 0.0
        %1490 = vmatmul.mubr.f32.gmra.mxu0 %v1396
        %v1491 = vpop.f32.mrf.mxu0
        %v1492 = vadd.f32 0.0, %v1491
        %v1493 = vpop.f32.mrf.mxu0
        %1494 = vmatprep.mubr.f32.mxu0 0.0
        %1495 = vmatmul.mubr.f32.gmra.mxu0 %v1399
        %v1496 = vpop.f32.mrf.mxu0
        %v1497 = vadd.f32 0.0, %v1496
        %v1498 = vpop.f32.mrf.mxu0
        %1499 = vmatprep.mubr.f32.mxu0 0.0
        %1500 = vmatmul.mubr.f32.gmra.mxu0 %v1402
        %v1501 = vpop.f32.mrf.mxu0
        %v1502 = vadd.f32 0.0, %v1501
        %v1503 = vpop.f32.mrf.mxu0
        %1504 = vmatprep.mubr.f32.mxu0 0.0
        %1505 = vmatmul.mubr.f32.gmra.mxu0 %v1405
        %v1506 = vpop.f32.mrf.mxu0
        %v1507 = vadd.f32 0.0, %v1506
        %v1508 = vpop.f32.mrf.mxu0
        %1509 = vmatprep.mubr.f32.mxu0 0.0
        %1510 = vmatmul.mubr.f32.gmra.mxu0 %v1408
        %v1511 = vpop.f32.mrf.mxu0
        %v1512 = vadd.f32 0.0, %v1511
        %v1513 = vpop.f32.mrf.mxu0
        %1514 = vdwg.mxu0
        %v1515 = vmul.f32 %v1477, %v1354
        %v1516 = vmul.f32 %v1482, %v1355
        %v1517 = vmul.f32 %v1487, %v1356
        %v1518 = vmul.f32 %v1492, %v1357
        %v1519 = vmul.f32 %v1497, %v1358
        %v1520 = vmul.f32 %v1502, %v1359
        %v1521 = vmul.f32 %v1507, %v1360
        %v1522 = vmul.f32 %v1512, %v1361
        %1523 = vrot.lane.b32.xlu0 %v299, 32
        %v1524 = vpop.permute.xlu0 %1523
        %1525 = vrot.lane.b32.xlu0 %v300, 32
        %v1526 = vpop.permute.xlu0 %1525
        %1527 = vrot.lane.b32.xlu0 %v301, 32
        %v1528 = vpop.permute.xlu0 %1527
        %1529 = vrot.lane.b32.xlu0 %v302, 32
        %v1530 = vpop.permute.xlu0 %1529
        %1531 = vrot.lane.b32.xlu0 %v303, 32
        %v1532 = vpop.permute.xlu0 %1531
        %1533 = vrot.lane.b32.xlu0 %v304, 32
        %v1534 = vpop.permute.xlu0 %1533
        %1535 = vrot.lane.b32.xlu0 %v305, 32
        %v1536 = vpop.permute.xlu0 %1535
        %1537 = vrot.lane.b32.xlu0 %v306, 32
        %v1538 = vpop.permute.xlu0 %1537
        %1539 = vrot.lane.b32.xlu0 %v307, 32
        %v1540 = vpop.permute.xlu0 %1539
        %1541 = vrot.lane.b32.xlu0 %v308, 32
        %v1542 = vpop.permute.xlu0 %1541
        %1543 = vrot.lane.b32.xlu0 %v309, 32
        %v1544 = vpop.permute.xlu0 %1543
        %1545 = vrot.lane.b32.xlu0 %v310, 32
        %v1546 = vpop.permute.xlu0 %1545
        %1547 = vrot.lane.b32.xlu0 %v311, 32
        %v1548 = vpop.permute.xlu0 %1547
        %1549 = vrot.lane.b32.xlu0 %v312, 32
        %v1550 = vpop.permute.xlu0 %1549
        %1551 = vrot.lane.b32.xlu0 %v313, 32
        %v1552 = vpop.permute.xlu0 %1551
        %1553 = vrot.lane.b32.xlu0 %v314, 32
        %v1554 = vpop.permute.xlu0 %1553
        %v1555 = vsel %vm323, %v1524, 0
        %v1557 = vsel %vm323, %v1526, 0
        %v1559 = vsel %vm323, %v1528, 0
        %v1561 = vsel %vm323, %v1530, 0
        %v1563 = vsel %vm323, %v1532, 0
        %v1565 = vsel %vm323, %v1534, 0
        %v1567 = vsel %vm323, %v1536, 0
        %v1569 = vsel %vm323, %v1538, 0
        %v1571 = vsel %vm323, %v1540, 0
        %v1573 = vsel %vm323, %v1542, 0
        %v1575 = vsel %vm323, %v1544, 0
        %v1577 = vsel %vm323, %v1546, 0
        %v1579 = vsel %vm323, %v1548, 0
        %v1581 = vsel %vm323, %v1550, 0
        %v1583 = vsel %vm323, %v1552, 0
        %v1585 = vsel %vm323, %v1554, 0
        %1587 = vmatprep.subr.mxu0 0.0
        %1588 = vmatpush1.xpose.msra.mxu0 0.0
        %1589 = vmatprep.subr.mxu0 0.0
        %1590 = vmatpush1.xpose.msra.mxu0 0.0
        %1591 = vmatprep.subr.mxu0 0.0
        %1592 = vmatpush1.xpose.msra.mxu0 0.0
        %1593 = vmatprep.subr.mxu0 0.0
        %1594 = vmatpush1.xpose.msra.mxu0 0.0
        %1595 = vmatprep.subr.mxu0 0.0
        %1596 = vmatpush1.xpose.msra.mxu0 0.0
        %1597 = vmatprep.subr.mxu0 0.0
        %1598 = vmatpush1.xpose.msra.mxu0 0.0
        %1599 = vmatprep.subr.mxu0 0.0
        %1600 = vmatpush1.xpose.msra.mxu0 0.0
        %1601 = vmatprep.subr.mxu0 0.0
        %1602 = vmatpush1.xpose.msra.mxu0 0.0
        %1603 = vmatprep.subr.mxu0 0.0
        %1604 = vmatpush1.xpose.msra.mxu0 %v1585
        %1605 = vmatprep.subr.mxu0 0.0
        %1606 = vmatpush1.xpose.msra.mxu0 %v1583
        %1607 = vmatprep.subr.mxu0 0.0
        %1608 = vmatpush1.xpose.msra.mxu0 %v1581
        %1609 = vmatprep.subr.mxu0 0.0
        %1610 = vmatpush1.xpose.msra.mxu0 %v1579
        %1611 = vmatprep.subr.mxu0 0.0
        %1612 = vmatpush1.xpose.msra.mxu0 %v1577
        %1613 = vmatprep.subr.mxu0 0.0
        %1614 = vmatpush1.xpose.msra.mxu0 %v1575
        %1615 = vmatprep.subr.mxu0 0.0
        %1616 = vmatpush1.xpose.msra.mxu0 %v1573
        %1617 = vmatprep.subr.mxu0 0.0
        %1618 = vmatpush1.xpose.msra.mxu0 %v1571
        %1619 = vmatprep.subr.mxu0 0.0
        %1620 = vmatpush2.xpose.msra.mxu0 0.0
        %1621 = vmatprep.subr.mxu0 0.0
        %1622 = vmatpush2.xpose.msra.mxu0 0.0
        %1623 = vmatprep.subr.mxu0 0.0
        %1624 = vmatpush2.xpose.msra.mxu0 0.0
        %1625 = vmatprep.subr.mxu0 0.0
        %1626 = vmatpush2.xpose.msra.mxu0 0.0
        %1627 = vmatprep.subr.mxu0 0.0
        %1628 = vmatpush2.xpose.msra.mxu0 0.0
        %1629 = vmatprep.subr.mxu0 0.0
        %1630 = vmatpush2.xpose.msra.mxu0 0.0
        %1631 = vmatprep.subr.mxu0 0.0
        %1632 = vmatpush2.xpose.msra.mxu0 0.0
        %1633 = vmatprep.subr.mxu0 0.0
        %1634 = vmatpush2.xpose.msra.mxu0 0.0
        %1635 = vmatprep.subr.mxu0 0.0
        %1636 = vmatpush2.xpose.msra.mxu0 0.0
        %1637 = vmatprep.subr.mxu0 0.0
        %1638 = vmatpush2.xpose.msra.mxu0 0.0
        %1639 = vmatprep.subr.mxu0 0.0
        %1640 = vmatpush2.xpose.msra.mxu0 0.0
        %1641 = vmatprep.subr.mxu0 0.0
        %1642 = vmatpush2.xpose.msra.mxu0 0.0
        %1643 = vmatprep.subr.mxu0 0.0
        %1644 = vmatpush2.xpose.msra.mxu0 0.0
        %1645 = vmatprep.subr.mxu0 0.0
        %1646 = vmatpush2.xpose.msra.mxu0 0.0
        %1647 = vmatprep.subr.mxu0 0.0
        %1648 = vmatpush2.xpose.msra.mxu0 0.0
        %1649 = vmatprep.subr.mxu0 0.0
        %1650 = vmatpush2.xpose.msra.mxu0 0.0
        %1651 = vmatprep.mubr.f32.mxu0 0.0
        %1652 = vmatmul.mubr.f32.gmra.mxu0 %v1555
        %v1653 = vpop.f32.mrf.mxu0
        %v1654 = vadd.f32 0.0, %v1653
        %v1655 = vpop.f32.mrf.mxu0
        %1656 = vmatprep.mubr.f32.mxu0 0.0
        %1657 = vmatmul.mubr.f32.gmra.mxu0 %v1557
        %v1658 = vpop.f32.mrf.mxu0
        %v1659 = vadd.f32 0.0, %v1658
        %v1660 = vpop.f32.mrf.mxu0
        %1661 = vmatprep.mubr.f32.mxu0 0.0
        %1662 = vmatmul.mubr.f32.gmra.mxu0 %v1559
        %v1663 = vpop.f32.mrf.mxu0
        %v1664 = vadd.f32 0.0, %v1663
        %v1665 = vpop.f32.mrf.mxu0
        %1666 = vmatprep.mubr.f32.mxu0 0.0
        %1667 = vmatmul.mubr.f32.gmra.mxu0 %v1561
        %v1668 = vpop.f32.mrf.mxu0
        %v1669 = vadd.f32 0.0, %v1668
        %v1670 = vpop.f32.mrf.mxu0
        %1671 = vmatprep.mubr.f32.mxu0 0.0
        %1672 = vmatmul.mubr.f32.gmra.mxu0 %v1563
        %v1673 = vpop.f32.mrf.mxu0
        %v1674 = vadd.f32 0.0, %v1673
        %v1675 = vpop.f32.mrf.mxu0
        %1676 = vmatprep.mubr.f32.mxu0 0.0
        %1677 = vmatmul.mubr.f32.gmra.mxu0 %v1565
        %v1678 = vpop.f32.mrf.mxu0
        %v1679 = vadd.f32 0.0, %v1678
        %v1680 = vpop.f32.mrf.mxu0
        %1681 = vmatprep.mubr.f32.mxu0 0.0
        %1682 = vmatmul.mubr.f32.gmra.mxu0 %v1567
        %v1683 = vpop.f32.mrf.mxu0
        %v1684 = vadd.f32 0.0, %v1683
        %v1685 = vpop.f32.mrf.mxu0
        %1686 = vmatprep.mubr.f32.mxu0 0.0
        %1687 = vmatmul.mubr.f32.gmra.mxu0 %v1569
        %v1688 = vpop.f32.mrf.mxu0
        %v1689 = vadd.f32 0.0, %v1688
        %v1690 = vpop.f32.mrf.mxu0
        %1691 = vdwg.mxu0
        %v1692 = vsel %vm477, %v1654, -inf
        %1693 = vmax.xlane.f32.xlu0 %v1692
        %v1694 = vpop.xlane.xlu0 %1693
        %v1695 = vsel %vm477, %v1659, -inf
        %1696 = vmax.xlane.f32.xlu0 %v1695
        %v1697 = vpop.xlane.xlu0 %1696
        %v1698 = vsel %vm477, %v1664, -inf
        %1699 = vmax.xlane.f32.xlu0 %v1698
        %v1700 = vpop.xlane.xlu0 %1699
        %v1701 = vsel %vm477, %v1669, -inf
        %1702 = vmax.xlane.f32.xlu0 %v1701
        %v1703 = vpop.xlane.xlu0 %1702
        %v1704 = vsel %vm477, %v1674, -inf
        %1705 = vmax.xlane.f32.xlu0 %v1704
        %v1706 = vpop.xlane.xlu0 %1705
        %v1707 = vsel %vm477, %v1679, -inf
        %1708 = vmax.xlane.f32.xlu0 %v1707
        %v1709 = vpop.xlane.xlu0 %1708
        %v1710 = vsel %vm477, %v1684, -inf
        %1711 = vmax.xlane.f32.xlu0 %v1710
        %v1712 = vpop.xlane.xlu0 %1711
        %v1713 = vsel %vm477, %v1689, -inf
        %1714 = vmax.xlane.f32.xlu0 %v1713
        %v1715 = vpop.xlane.xlu0 %1714
        %v1716 = vsub.f32 %v1654, %v1694
        %v1717 = vsub.f32 %v1659, %v1697
        %v1718 = vsub.f32 %v1664, %v1700
        %v1719 = vsub.f32 %v1669, %v1703
        %v1720 = vsub.f32 %v1674, %v1706
        %v1721 = vsub.f32 %v1679, %v1709
        %v1722 = vsub.f32 %v1684, %v1712
        %v1723 = vsub.f32 %v1689, %v1715
        %v1724 = vmul.f32 %v1716, 1.442695
        %v1725 = vpow.pop %v1724
        %v1726 = vmul.f32 %v1717, 1.442695
        %v1727 = vpow.pop %v1726
        %v1728 = vmul.f32 %v1718, 1.442695
        %v1729 = vpow.pop %v1728
        %v1730 = vmul.f32 %v1719, 1.442695
        %v1731 = vpow.pop %v1730
        %v1732 = vmul.f32 %v1720, 1.442695
        %v1733 = vpow.pop %v1732
        %v1734 = vmul.f32 %v1721, 1.442695
        %v1735 = vpow.pop %v1734
        %v1736 = vmul.f32 %v1722, 1.442695
        %v1737 = vpow.pop %v1736
        %v1738 = vmul.f32 %v1723, 1.442695
        %v1739 = vpow.pop %v1738
        %v1740 = vsel %vm477, %v1725, 0.0
        %1741 = vadd.xlane.f32.xlu0 %v1740
        %v1742 = vpop.xlane.xlu0 %1741
        %v1743 = vsel %vm477, %v1727, 0.0
        %1744 = vadd.xlane.f32.xlu0 %v1743
        %v1745 = vpop.xlane.xlu0 %1744
        %v1746 = vsel %vm477, %v1729, 0.0
        %1747 = vadd.xlane.f32.xlu0 %v1746
        %v1748 = vpop.xlane.xlu0 %1747
        %v1749 = vsel %vm477, %v1731, 0.0
        %1750 = vadd.xlane.f32.xlu0 %v1749
        %v1751 = vpop.xlane.xlu0 %1750
        %v1752 = vsel %vm477, %v1733, 0.0
        %1753 = vadd.xlane.f32.xlu0 %v1752
        %v1754 = vpop.xlane.xlu0 %1753
        %v1755 = vsel %vm477, %v1735, 0.0
        %1756 = vadd.xlane.f32.xlu0 %v1755
        %v1757 = vpop.xlane.xlu0 %1756
        %v1758 = vsel %vm477, %v1737, 0.0
        %1759 = vadd.xlane.f32.xlu0 %v1758
        %v1760 = vpop.xlane.xlu0 %1759
        %v1761 = vsel %vm477, %v1739, 0.0
        %1762 = vadd.xlane.f32.xlu0 %v1761
        %v1763 = vpop.xlane.xlu0 %1762
        %v1764 = vrcp.pop %v1742
        %v1765 = vrcp.pop %v1745
        %v1766 = vrcp.pop %v1748
        %v1767 = vrcp.pop %v1751
        %v1768 = vrcp.pop %v1754
        %v1769 = vrcp.pop %v1757
        %v1770 = vrcp.pop %v1760
        %v1771 = vrcp.pop %v1763
        %1772 = vrot.lane.b32.xlu0 %v315, 32
        %v1773 = vpop.permute.xlu0 %1772
        %1774 = vrot.lane.b32.xlu0 %v316, 32
        %v1775 = vpop.permute.xlu0 %1774
        %1776 = vrot.lane.b32.xlu0 %v317, 32
        %v1777 = vpop.permute.xlu0 %1776
        %1778 = vrot.lane.b32.xlu0 %v318, 32
        %v1779 = vpop.permute.xlu0 %1778
        %1780 = vrot.lane.b32.xlu0 %v319, 32
        %v1781 = vpop.permute.xlu0 %1780
        %1782 = vrot.lane.b32.xlu0 %v320, 32
        %v1783 = vpop.permute.xlu0 %1782
        %1784 = vrot.lane.b32.xlu0 %v321, 32
        %v1785 = vpop.permute.xlu0 %1784
        %1786 = vrot.lane.b32.xlu0 %v322, 32
        %v1787 = vpop.permute.xlu0 %1786
        %v1797 = vsel %vm477, %v1725, 0
        %v1800 = vsel %vm477, %v1727, 0
        %v1803 = vsel %vm477, %v1729, 0
        %v1806 = vsel %vm477, %v1731, 0
        %v1809 = vsel %vm477, %v1733, 0
        %v1812 = vsel %vm477, %v1735, 0
        %v1815 = vsel %vm477, %v1737, 0
        %v1818 = vsel %vm477, %v1739, 0
        %1820 = vmatprep.subr.mxu0 0.0
        %1821 = vmatpush1.msra.mxu0 0.0
        %1822 = vmatprep.subr.mxu0 0.0
        %1823 = vmatpush1.msra.mxu0 0.0
        %1824 = vmatprep.subr.mxu0 0.0
        %1825 = vmatpush1.msra.mxu0 0.0
        %1826 = vmatprep.subr.mxu0 0.0
        %1827 = vmatpush1.msra.mxu0 0.0
        %1828 = vmatprep.subr.mxu0 0.0
        %1829 = vmatpush1.msra.mxu0 0.0
        %1830 = vmatprep.subr.mxu0 0.0
        %1831 = vmatpush1.msra.mxu0 0.0
        %1832 = vmatprep.subr.mxu0 0.0
        %1833 = vmatpush1.msra.mxu0 0.0
        %1834 = vmatprep.subr.mxu0 0.0
        %1835 = vmatpush1.msra.mxu0 0.0
        %1836 = vmatprep.subr.mxu0 0.0
        %1837 = vmatpush1.msra.mxu0 %v1787
        %1838 = vmatprep.subr.mxu0 0.0
        %1839 = vmatpush1.msra.mxu0 %v1785
        %1840 = vmatprep.subr.mxu0 0.0
        %1841 = vmatpush1.msra.mxu0 %v1783
        %1842 = vmatprep.subr.mxu0 0.0
        %1843 = vmatpush1.msra.mxu0 %v1781
        %1844 = vmatprep.subr.mxu0 0.0
        %1845 = vmatpush1.msra.mxu0 %v1779
        %1846 = vmatprep.subr.mxu0 0.0
        %1847 = vmatpush1.msra.mxu0 %v1777
        %1848 = vmatprep.subr.mxu0 0.0
        %1849 = vmatpush1.msra.mxu0 %v1775
        %1850 = vmatprep.subr.mxu0 0.0
        %1851 = vmatpush1.msra.mxu0 %v1773
        %1852 = vmatprep.subr.mxu0 0.0
        %1853 = vmatpush2.msra.mxu0 0.0
        %1854 = vmatprep.subr.mxu0 0.0
        %1855 = vmatpush2.msra.mxu0 0.0
        %1856 = vmatprep.subr.mxu0 0.0
        %1857 = vmatpush2.msra.mxu0 0.0
        %1858 = vmatprep.subr.mxu0 0.0
        %1859 = vmatpush2.msra.mxu0 0.0
        %1860 = vmatprep.subr.mxu0 0.0
        %1861 = vmatpush2.msra.mxu0 0.0
        %1862 = vmatprep.subr.mxu0 0.0
        %1863 = vmatpush2.msra.mxu0 0.0
        %1864 = vmatprep.subr.mxu0 0.0
        %1865 = vmatpush2.msra.mxu0 0.0
        %1866 = vmatprep.subr.mxu0 0.0
        %1867 = vmatpush2.msra.mxu0 0.0
        %1868 = vmatprep.subr.mxu0 0.0
        %1869 = vmatpush2.msra.mxu0 0.0
        %1870 = vmatprep.subr.mxu0 0.0
        %1871 = vmatpush2.msra.mxu0 0.0
        %1872 = vmatprep.subr.mxu0 0.0
        %1873 = vmatpush2.msra.mxu0 0.0
        %1874 = vmatprep.subr.mxu0 0.0
        %1875 = vmatpush2.msra.mxu0 0.0
        %1876 = vmatprep.subr.mxu0 0.0
        %1877 = vmatpush2.msra.mxu0 0.0
        %1878 = vmatprep.subr.mxu0 0.0
        %1879 = vmatpush2.msra.mxu0 0.0
        %1880 = vmatprep.subr.mxu0 0.0
        %1881 = vmatpush2.msra.mxu0 0.0
        %1882 = vmatprep.subr.mxu0 0.0
        %1883 = vmatpush2.msra.mxu0 0.0
        %1884 = vmatprep.mubr.f32.mxu0 0.0
        %1885 = vmatmul.mubr.f32.gmra.mxu0 %v1797
        %v1886 = vpop.f32.mrf.mxu0
        %v1887 = vadd.f32 0.0, %v1886
        %v1888 = vpop.f32.mrf.mxu0
        %1889 = vmatprep.mubr.f32.mxu0 0.0
        %1890 = vmatmul.mubr.f32.gmra.mxu0 %v1800
        %v1891 = vpop.f32.mrf.mxu0
        %v1892 = vadd.f32 0.0, %v1891
        %v1893 = vpop.f32.mrf.mxu0
        %1894 = vmatprep.mubr.f32.mxu0 0.0
        %1895 = vmatmul.mubr.f32.gmra.mxu0 %v1803
        %v1896 = vpop.f32.mrf.mxu0
        %v1897 = vadd.f32 0.0, %v1896
        %v1898 = vpop.f32.mrf.mxu0
        %1899 = vmatprep.mubr.f32.mxu0 0.0
        %1900 = vmatmul.mubr.f32.gmra.mxu0 %v1806
        %v1901 = vpop.f32.mrf.mxu0
        %v1902 = vadd.f32 0.0, %v1901
        %v1903 = vpop.f32.mrf.mxu0
        %1904 = vmatprep.mubr.f32.mxu0 0.0
        %1905 = vmatmul.mubr.f32.gmra.mxu0 %v1809
        %v1906 = vpop.f32.mrf.mxu0
        %v1907 = vadd.f32 0.0, %v1906
        %v1908 = vpop.f32.mrf.mxu0
        %1909 = vmatprep.mubr.f32.mxu0 0.0
        %1910 = vmatmul.mubr.f32.gmra.mxu0 %v1812
        %v1911 = vpop.f32.mrf.mxu0
        %v1912 = vadd.f32 0.0, %v1911
        %v1913 = vpop.f32.mrf.mxu0
        %1914 = vmatprep.mubr.f32.mxu0 0.0
        %1915 = vmatmul.mubr.f32.gmra.mxu0 %v1815
        %v1916 = vpop.f32.mrf.mxu0
        %v1917 = vadd.f32 0.0, %v1916
        %v1918 = vpop.f32.mrf.mxu0
        %1919 = vmatprep.mubr.f32.mxu0 0.0
        %1920 = vmatmul.mubr.f32.gmra.mxu0 %v1818
        %v1921 = vpop.f32.mrf.mxu0
        %v1922 = vadd.f32 0.0, %v1921
        %v1923 = vpop.f32.mrf.mxu0
        %1924 = vdwg.mxu0
        %v1925 = vmul.f32 %v1887, %v1764
        %v1926 = vmul.f32 %v1892, %v1765
        %v1927 = vmul.f32 %v1897, %v1766
        %v1928 = vmul.f32 %v1902, %v1767
        %v1929 = vmul.f32 %v1907, %v1768
        %v1930 = vmul.f32 %v1912, %v1769
        %v1931 = vmul.f32 %v1917, %v1770
        %v1932 = vmul.f32 %v1922, %v1771
        %1941 = vrot.lane.b32.xlu0 %v1105, 32
        %v1942 = vpop.permute.xlu0 %1941
        %1943 = vrot.lane.b32.xlu0 %v1106, 32
        %v1944 = vpop.permute.xlu0 %1943
        %1945 = vrot.lane.b32.xlu0 %v1107, 32
        %v1946 = vpop.permute.xlu0 %1945
        %1947 = vrot.lane.b32.xlu0 %v1108, 32
        %v1948 = vpop.permute.xlu0 %1947
        %1949 = vrot.lane.b32.xlu0 %v1109, 32
        %v1950 = vpop.permute.xlu0 %1949
        %1951 = vrot.lane.b32.xlu0 %v1110, 32
        %v1952 = vpop.permute.xlu0 %1951
        %1953 = vrot.lane.b32.xlu0 %v1111, 32
        %v1954 = vpop.permute.xlu0 %1953
        %1955 = vrot.lane.b32.xlu0 %v1112, 32
        %v1956 = vpop.permute.xlu0 %1955
        %1973 = vrot.lane.b32.xlu0 %v1515, 64
        %v1974 = vpop.permute.xlu0 %1973
        %1975 = vrot.lane.b32.xlu0 %v1516, 64
        %v1976 = vpop.permute.xlu0 %1975
        %1977 = vrot.lane.b32.xlu0 %v1517, 64
        %v1978 = vpop.permute.xlu0 %1977
        %1979 = vrot.lane.b32.xlu0 %v1518, 64
        %v1980 = vpop.permute.xlu0 %1979
        %1981 = vrot.lane.b32.xlu0 %v1519, 64
        %v1982 = vpop.permute.xlu0 %1981
        %1983 = vrot.lane.b32.xlu0 %v1520, 64
        %v1984 = vpop.permute.xlu0 %1983
        %1985 = vrot.lane.b32.xlu0 %v1521, 64
        %v1986 = vpop.permute.xlu0 %1985
        %1987 = vrot.lane.b32.xlu0 %v1522, 64
        %v1988 = vpop.permute.xlu0 %1987
        %2005 = vrot.lane.b32.xlu0 %v1925, 96
        %v2006 = vpop.permute.xlu0 %2005
        %2007 = vrot.lane.b32.xlu0 %v1926, 96
        %v2008 = vpop.permute.xlu0 %2007
        %2009 = vrot.lane.b32.xlu0 %v1927, 96
        %v2010 = vpop.permute.xlu0 %2009
        %2011 = vrot.lane.b32.xlu0 %v1928, 96
        %v2012 = vpop.permute.xlu0 %2011
        %2013 = vrot.lane.b32.xlu0 %v1929, 96
        %v2014 = vpop.permute.xlu0 %2013
        %2015 = vrot.lane.b32.xlu0 %v1930, 96
        %v2016 = vpop.permute.xlu0 %2015
        %2017 = vrot.lane.b32.xlu0 %v1931, 96
        %v2018 = vpop.permute.xlu0 %2017
        %2019 = vrot.lane.b32.xlu0 %v1932, 96
        %v2020 = vpop.permute.xlu0 %2019
        %v2029 = vsel %vm323, %v687, %v1942
        %v2030 = vsel %vm323, %v688, %v1944
        %v2031 = vsel %vm323, %v689, %v1946
        %v2032 = vsel %vm323, %v690, %v1948
        %v2033 = vsel %vm323, %v691, %v1950
        %v2034 = vsel %vm323, %v692, %v1952
        %v2035 = vsel %vm323, %v693, %v1954
        %v2036 = vsel %vm323, %v694, %v1956
        %v2037 = vsel %vm477, %v2029, %v1974
        %v2038 = vsel %vm477, %v2030, %v1976
        %v2039 = vsel %vm477, %v2031, %v1978
        %v2040 = vsel %vm477, %v2032, %v1980
        %v2041 = vsel %vm477, %v2033, %v1982
        %v2042 = vsel %vm477, %v2034, %v1984
        %v2043 = vsel %vm477, %v2035, %v1986
        %v2044 = vsel %vm477, %v2036, %v1988
        %vm2045 = vcmask 785408
        %v2046 = vsel %vm2045, %v2037, %v2006
        %v2047 = vsel %vm2045, %v2038, %v2008
        %v2048 = vsel %vm2045, %v2039, %v2010
        %v2049 = vsel %vm2045, %v2040, %v2012
        %v2050 = vsel %vm2045, %v2041, %v2014
        %v2051 = vsel %vm2045, %v2042, %v2016
        %v2052 = vsel %vm2045, %v2043, %v2018
        %v2053 = vsel %vm2045, %v2044, %v2020
        %v2054 = vld [vmem:[%s3 + $0xd] sm:$0x1]
        %v2055 = vlaneseq
        %v2056 = vshrl.u32 %v2055, 7
        %v2057 = vsub.s32 0, %v2056
        %v2058 = vrot.slane %v2054, %v2057
        %v2059 = vmul.f32 %v315, %v2058
        %v2060 = vmul.f32 %v316, %v2058
        %v2061 = vmul.f32 %v317, %v2058
        %v2062 = vmul.f32 %v318, %v2058
        %v2063 = vmul.f32 %v319, %v2058
        %v2064 = vmul.f32 %v320, %v2058
        %v2065 = vmul.f32 %v321, %v2058
        %v2066 = vmul.f32 %v322, %v2058
        %v2067 = vrot.slane %v315, 3
        %v2068 = vrot.slane %v316, 3
        %v2069 = vrot.slane %v317, 3
        %v2070 = vrot.slane %v318, 3
        %v2071 = vrot.slane %v319, 3
        %v2072 = vrot.slane %v320, 3
        %v2073 = vrot.slane %v321, 3
        %v2074 = vrot.slane %v322, 3
        %v2075 = vlaneseq
        %v2076 = vshrl.u32 %v2075, 7
        %vm2077 = vcmp.lt.s32.totalorder %v2076, 5
        %v2078 = vsel %vm2077, %v2073, %v2074
        %v2079 = vsel %vm2077, %v2072, %v2073
        %v2080 = vsel %vm2077, %v2071, %v2072
        %v2081 = vsel %vm2077, %v2070, %v2071
        %v2082 = vsel %vm2077, %v2069, %v2070
        %v2083 = vsel %vm2077, %v2068, %v2069
        %v2084 = vsel %vm2077, %v2067, %v2068
        %v2085 = vsel %vm2077, %v2074, %v2067
        %v2086 = vld [vmem:[%s5] sm:$0xff]
        %v2087 = vld [vmem:[%s5 + $0x8] sm:$0xff]
        %v2088 = vld [vmem:[%s5 + $0x10] sm:$0xff]
        %v2089 = vld [vmem:[%s5 + $0x18] sm:$0xff]
        %v2090 = vld [vmem:[%s5 + $0x20] sm:$0xff]
        %v2091 = vld [vmem:[%s5 + $0x28] sm:$0xff]
        %v2092 = vld [vmem:[%s5 + $0x30] sm:$0xff]
        %v2093 = vld [vmem:[%s5 + $0x38] sm:$0xff]
        %2095 = vset.pattern.permute.xlu0 0
        %2096 = vperm.xlu0 %2095, %v2086
        %v2097 = vpop.permute.xlu0 %2096
        %2100 = vset.pattern.permute.xlu0 0
        %2101 = vperm.xlu0 %2100, %v2087
        %v2102 = vpop.permute.xlu0 %2101
        %2105 = vset.pattern.permute.xlu0 0
        %2106 = vperm.xlu0 %2105, %v2088
        %v2107 = vpop.permute.xlu0 %2106
        %2110 = vset.pattern.permute.xlu0 0
        %2111 = vperm.xlu0 %2110, %v2089
        %v2112 = vpop.permute.xlu0 %2111
        %2115 = vset.pattern.permute.xlu0 0
        %2116 = vperm.xlu0 %2115, %v2090
        %v2117 = vpop.permute.xlu0 %2116
        %2120 = vset.pattern.permute.xlu0 0
        %2121 = vperm.xlu0 %2120, %v2091
        %v2122 = vpop.permute.xlu0 %2121
        %2125 = vset.pattern.permute.xlu0 0
        %2126 = vperm.xlu0 %2125, %v2092
        %v2127 = vpop.permute.xlu0 %2126
        %2130 = vset.pattern.permute.xlu0 0
        %2131 = vperm.xlu0 %2130, %v2093
        %v2132 = vpop.permute.xlu0 %2131
        %v2134 = vmul.f32 %v2079, %v2097
        %v2135 = vmul.f32 %v2078, %v2102
        %v2136 = vmul.f32 %v2085, %v2107
        %v2137 = vmul.f32 %v2084, %v2112
        %v2138 = vmul.f32 %v2083, %v2117
        %v2139 = vmul.f32 %v2082, %v2122
        %v2140 = vmul.f32 %v2081, %v2127
        %v2141 = vmul.f32 %v2080, %v2132
        %v2142 = vld [vmem:[%s3] sm:$0x1]
        %v2143 = vlaneseq
        %v2144 = vshrl.u32 %v2143, 7
        %v2145 = vsub.s32 0, %v2144
        %v2146 = vrot.slane %v2142, %v2145
        %v2147 = vmul.f32 %v2134, %v2146
        %v2148 = vmul.f32 %v2135, %v2146
        %v2149 = vmul.f32 %v2136, %v2146
        %v2150 = vmul.f32 %v2137, %v2146
        %v2151 = vmul.f32 %v2138, %v2146
        %v2152 = vmul.f32 %v2139, %v2146
        %v2153 = vmul.f32 %v2140, %v2146
        %v2154 = vmul.f32 %v2141, %v2146
        %v2155 = vadd.f32 %v2059, %v2147
        %v2156 = vadd.f32 %v2060, %v2148
        %v2157 = vadd.f32 %v2061, %v2149
        %v2158 = vadd.f32 %v2062, %v2150
        %v2159 = vadd.f32 %v2063, %v2151
        %v2160 = vadd.f32 %v2064, %v2152
        %v2161 = vadd.f32 %v2065, %v2153
        %v2162 = vadd.f32 %v2066, %v2154
        %v2163 = vrot.slane %v315, 4
        %v2164 = vrot.slane %v316, 4
        %v2165 = vrot.slane %v317, 4
        %v2166 = vrot.slane %v318, 4
        %v2167 = vrot.slane %v319, 4
        %v2168 = vrot.slane %v320, 4
        %v2169 = vrot.slane %v321, 4
        %v2170 = vrot.slane %v322, 4
        %vm2171 = vcmp.lt.s32.totalorder %v2076, 4
        %v2172 = vsel %vm2171, %v2169, %v2170
        %v2173 = vsel %vm2171, %v2168, %v2169
        %v2174 = vsel %vm2171, %v2167, %v2168
        %v2175 = vsel %vm2171, %v2166, %v2167
        %v2176 = vsel %vm2171, %v2165, %v2166
        %v2177 = vsel %vm2171, %v2164, %v2165
        %v2178 = vsel %vm2171, %v2163, %v2164
        %v2179 = vsel %vm2171, %v2170, %v2163
        %2180 = vset.pattern.permute.xlu0 1
        %2181 = vperm.xlu0 %2180, %v2086
        %v2182 = vpop.permute.xlu0 %2181
        %2184 = vset.pattern.permute.xlu0 1
        %2185 = vperm.xlu0 %2184, %v2087
        %v2186 = vpop.permute.xlu0 %2185
        %2188 = vset.pattern.permute.xlu0 1
        %2189 = vperm.xlu0 %2188, %v2088
        %v2190 = vpop.permute.xlu0 %2189
        %2192 = vset.pattern.permute.xlu0 1
        %2193 = vperm.xlu0 %2192, %v2089
        %v2194 = vpop.permute.xlu0 %2193
        %2196 = vset.pattern.permute.xlu0 1
        %2197 = vperm.xlu0 %2196, %v2090
        %v2198 = vpop.permute.xlu0 %2197
        %2200 = vset.pattern.permute.xlu0 1
        %2201 = vperm.xlu0 %2200, %v2091
        %v2202 = vpop.permute.xlu0 %2201
        %2204 = vset.pattern.permute.xlu0 1
        %2205 = vperm.xlu0 %2204, %v2092
        %v2206 = vpop.permute.xlu0 %2205
        %2208 = vset.pattern.permute.xlu0 1
        %2209 = vperm.xlu0 %2208, %v2093
        %v2210 = vpop.permute.xlu0 %2209
        %v2212 = vmul.f32 %v2173, %v2182
        %v2213 = vmul.f32 %v2172, %v2186
        %v2214 = vmul.f32 %v2179, %v2190
        %v2215 = vmul.f32 %v2178, %v2194
        %v2216 = vmul.f32 %v2177, %v2198
        %v2217 = vmul.f32 %v2176, %v2202
        %v2218 = vmul.f32 %v2175, %v2206
        %v2219 = vmul.f32 %v2174, %v2210
        %v2220 = vld [vmem:[%s3 + $0x1] sm:$0x1]
        %v2221 = vlaneseq
        %v2222 = vshrl.u32 %v2221, 7
        %v2223 = vsub.s32 0, %v2222
        %v2224 = vrot.slane %v2220, %v2223
        %v2225 = vmul.f32 %v2212, %v2224
        %v2226 = vmul.f32 %v2213, %v2224
        %v2227 = vmul.f32 %v2214, %v2224
        %v2228 = vmul.f32 %v2215, %v2224
        %v2229 = vmul.f32 %v2216, %v2224
        %v2230 = vmul.f32 %v2217, %v2224
        %v2231 = vmul.f32 %v2218, %v2224
        %v2232 = vmul.f32 %v2219, %v2224
        %v2233 = vadd.f32 %v2155, %v2225
        %v2234 = vadd.f32 %v2156, %v2226
        %v2235 = vadd.f32 %v2157, %v2227
        %v2236 = vadd.f32 %v2158, %v2228
        %v2237 = vadd.f32 %v2159, %v2229
        %v2238 = vadd.f32 %v2160, %v2230
        %v2239 = vadd.f32 %v2161, %v2231
        %v2240 = vadd.f32 %v2162, %v2232
        %v2241 = vrot.slane %v315, 5
        %v2242 = vrot.slane %v316, 5
        %v2243 = vrot.slane %v317, 5
        %v2244 = vrot.slane %v318, 5
        %v2245 = vrot.slane %v319, 5
        %v2246 = vrot.slane %v320, 5
        %v2247 = vrot.slane %v321, 5
        %v2248 = vrot.slane %v322, 5
        %vm2249 = vcmp.lt.s32.totalorder %v2076, 3
        %v2250 = vsel %vm2249, %v2247, %v2248
        %v2251 = vsel %vm2249, %v2246, %v2247
        %v2252 = vsel %vm2249, %v2245, %v2246
        %v2253 = vsel %vm2249, %v2244, %v2245
        %v2254 = vsel %vm2249, %v2243, %v2244
        %v2255 = vsel %vm2249, %v2242, %v2243
        %v2256 = vsel %vm2249, %v2241, %v2242
        %v2257 = vsel %vm2249, %v2248, %v2241
        %2258 = vset.pattern.permute.xlu0 2
        %2259 = vperm.xlu0 %2258, %v2086
        %v2260 = vpop.permute.xlu0 %2259
        %2262 = vset.pattern.permute.xlu0 2
        %2263 = vperm.xlu0 %2262, %v2087
        %v2264 = vpop.permute.xlu0 %2263
        %2266 = vset.pattern.permute.xlu0 2
        %2267 = vperm.xlu0 %2266, %v2088
        %v2268 = vpop.permute.xlu0 %2267
        %2270 = vset.pattern.permute.xlu0 2
        %2271 = vperm.xlu0 %2270, %v2089
        %v2272 = vpop.permute.xlu0 %2271
        %2274 = vset.pattern.permute.xlu0 2
        %2275 = vperm.xlu0 %2274, %v2090
        %v2276 = vpop.permute.xlu0 %2275
        %2278 = vset.pattern.permute.xlu0 2
        %2279 = vperm.xlu0 %2278, %v2091
        %v2280 = vpop.permute.xlu0 %2279
        %2282 = vset.pattern.permute.xlu0 2
        %2283 = vperm.xlu0 %2282, %v2092
        %v2284 = vpop.permute.xlu0 %2283
        %2286 = vset.pattern.permute.xlu0 2
        %2287 = vperm.xlu0 %2286, %v2093
        %v2288 = vpop.permute.xlu0 %2287
        %v2290 = vmul.f32 %v2251, %v2260
        %v2291 = vmul.f32 %v2250, %v2264
        %v2292 = vmul.f32 %v2257, %v2268
        %v2293 = vmul.f32 %v2256, %v2272
        %v2294 = vmul.f32 %v2255, %v2276
        %v2295 = vmul.f32 %v2254, %v2280
        %v2296 = vmul.f32 %v2253, %v2284
        %v2297 = vmul.f32 %v2252, %v2288
        %v2298 = vld [vmem:[%s3 + $0x2] sm:$0x1]
        %v2299 = vlaneseq
        %v2300 = vshrl.u32 %v2299, 7
        %v2301 = vsub.s32 0, %v2300
        %v2302 = vrot.slane %v2298, %v2301
        %v2303 = vmul.f32 %v2290, %v2302
        %v2304 = vmul.f32 %v2291, %v2302
        %v2305 = vmul.f32 %v2292, %v2302
        %v2306 = vmul.f32 %v2293, %v2302
        %v2307 = vmul.f32 %v2294, %v2302
        %v2308 = vmul.f32 %v2295, %v2302
        %v2309 = vmul.f32 %v2296, %v2302
        %v2310 = vmul.f32 %v2297, %v2302
        %v2311 = vadd.f32 %v2233, %v2303
        %v2312 = vadd.f32 %v2234, %v2304
        %v2313 = vadd.f32 %v2235, %v2305
        %v2314 = vadd.f32 %v2236, %v2306
        %v2315 = vadd.f32 %v2237, %v2307
        %v2316 = vadd.f32 %v2238, %v2308
        %v2317 = vadd.f32 %v2239, %v2309
        %v2318 = vadd.f32 %v2240, %v2310
        %v2319 = vrot.slane %v315, 7
        %v2320 = vrot.slane %v316, 7
        %v2321 = vrot.slane %v317, 7
        %v2322 = vrot.slane %v318, 7
        %v2323 = vrot.slane %v319, 7
        %v2324 = vrot.slane %v320, 7
        %v2325 = vrot.slane %v321, 7
        %v2326 = vrot.slane %v322, 7
        %vm2327 = vcmp.lt.s32.totalorder %v2076, 1
        %v2328 = vsel %vm2327, %v2325, %v2326
        %v2329 = vsel %vm2327, %v2324, %v2325
        %v2330 = vsel %vm2327, %v2323, %v2324
        %v2331 = vsel %vm2327, %v2322, %v2323
        %v2332 = vsel %vm2327, %v2321, %v2322
        %v2333 = vsel %vm2327, %v2320, %v2321
        %v2334 = vsel %vm2327, %v2319, %v2320
        %v2335 = vsel %vm2327, %v2326, %v2319
        %2336 = vset.pattern.permute.xlu0 3
        %2337 = vperm.xlu0 %2336, %v2086
        %v2338 = vpop.permute.xlu0 %2337
        %2340 = vset.pattern.permute.xlu0 3
        %2341 = vperm.xlu0 %2340, %v2087
        %v2342 = vpop.permute.xlu0 %2341
        %2344 = vset.pattern.permute.xlu0 3
        %2345 = vperm.xlu0 %2344, %v2088
        %v2346 = vpop.permute.xlu0 %2345
        %2348 = vset.pattern.permute.xlu0 3
        %2349 = vperm.xlu0 %2348, %v2089
        %v2350 = vpop.permute.xlu0 %2349
        %2352 = vset.pattern.permute.xlu0 3
        %2353 = vperm.xlu0 %2352, %v2090
        %v2354 = vpop.permute.xlu0 %2353
        %2356 = vset.pattern.permute.xlu0 3
        %2357 = vperm.xlu0 %2356, %v2091
        %v2358 = vpop.permute.xlu0 %2357
        %2360 = vset.pattern.permute.xlu0 3
        %2361 = vperm.xlu0 %2360, %v2092
        %v2362 = vpop.permute.xlu0 %2361
        %2364 = vset.pattern.permute.xlu0 3
        %2365 = vperm.xlu0 %2364, %v2093
        %v2366 = vpop.permute.xlu0 %2365
        %v2368 = vmul.f32 %v2329, %v2338
        %v2369 = vmul.f32 %v2328, %v2342
        %v2370 = vmul.f32 %v2335, %v2346
        %v2371 = vmul.f32 %v2334, %v2350
        %v2372 = vmul.f32 %v2333, %v2354
        %v2373 = vmul.f32 %v2332, %v2358
        %v2374 = vmul.f32 %v2331, %v2362
        %v2375 = vmul.f32 %v2330, %v2366
        %v2376 = vld [vmem:[%s3 + $0x3] sm:$0x1]
        %v2377 = vlaneseq
        %v2378 = vshrl.u32 %v2377, 7
        %v2379 = vsub.s32 0, %v2378
        %v2380 = vrot.slane %v2376, %v2379
        %v2381 = vmul.f32 %v2368, %v2380
        %v2382 = vmul.f32 %v2369, %v2380
        %v2383 = vmul.f32 %v2370, %v2380
        %v2384 = vmul.f32 %v2371, %v2380
        %v2385 = vmul.f32 %v2372, %v2380
        %v2386 = vmul.f32 %v2373, %v2380
        %v2387 = vmul.f32 %v2374, %v2380
        %v2388 = vmul.f32 %v2375, %v2380
        %v2389 = vadd.f32 %v2311, %v2381
        %v2390 = vadd.f32 %v2312, %v2382
        %v2391 = vadd.f32 %v2313, %v2383
        %v2392 = vadd.f32 %v2314, %v2384
        %v2393 = vadd.f32 %v2315, %v2385
        %v2394 = vadd.f32 %v2316, %v2386
        %v2395 = vadd.f32 %v2317, %v2387
        %v2396 = vadd.f32 %v2318, %v2388
        %2397 = vset.pattern.permute.xlu0 4
        %2398 = vperm.xlu0 %2397, %v2086
        %v2399 = vpop.permute.xlu0 %2398
        %2401 = vset.pattern.permute.xlu0 4
        %2402 = vperm.xlu0 %2401, %v2087
        %v2403 = vpop.permute.xlu0 %2402
        %2405 = vset.pattern.permute.xlu0 4
        %2406 = vperm.xlu0 %2405, %v2088
        %v2407 = vpop.permute.xlu0 %2406
        %2409 = vset.pattern.permute.xlu0 4
        %2410 = vperm.xlu0 %2409, %v2089
        %v2411 = vpop.permute.xlu0 %2410
        %2413 = vset.pattern.permute.xlu0 4
        %2414 = vperm.xlu0 %2413, %v2090
        %v2415 = vpop.permute.xlu0 %2414
        %2417 = vset.pattern.permute.xlu0 4
        %2418 = vperm.xlu0 %2417, %v2091
        %v2419 = vpop.permute.xlu0 %2418
        %2421 = vset.pattern.permute.xlu0 4
        %2422 = vperm.xlu0 %2421, %v2092
        %v2423 = vpop.permute.xlu0 %2422
        %2425 = vset.pattern.permute.xlu0 4
        %2426 = vperm.xlu0 %2425, %v2093
        %v2427 = vpop.permute.xlu0 %2426
        %v2429 = vmul.f32 %v321, %v2399
        %v2430 = vmul.f32 %v322, %v2403
        %v2431 = vmul.f32 %v315, %v2407
        %v2432 = vmul.f32 %v316, %v2411
        %v2433 = vmul.f32 %v317, %v2415
        %v2434 = vmul.f32 %v318, %v2419
        %v2435 = vmul.f32 %v319, %v2423
        %v2436 = vmul.f32 %v320, %v2427
        %v2437 = vld [vmem:[%s3 + $0x4] sm:$0x1]
        %v2438 = vlaneseq
        %v2439 = vshrl.u32 %v2438, 7
        %v2440 = vsub.s32 0, %v2439
        %v2441 = vrot.slane %v2437, %v2440
        %v2442 = vmul.f32 %v2429, %v2441
        %v2443 = vmul.f32 %v2430, %v2441
        %v2444 = vmul.f32 %v2431, %v2441
        %v2445 = vmul.f32 %v2432, %v2441
        %v2446 = vmul.f32 %v2433, %v2441
        %v2447 = vmul.f32 %v2434, %v2441
        %v2448 = vmul.f32 %v2435, %v2441
        %v2449 = vmul.f32 %v2436, %v2441
        %v2450 = vadd.f32 %v2389, %v2442
        %v2451 = vadd.f32 %v2390, %v2443
        %v2452 = vadd.f32 %v2391, %v2444
        %v2453 = vadd.f32 %v2392, %v2445
        %v2454 = vadd.f32 %v2393, %v2446
        %v2455 = vadd.f32 %v2394, %v2447
        %v2456 = vadd.f32 %v2395, %v2448
        %v2457 = vadd.f32 %v2396, %v2449
        %v2458 = vrot.slane %v315, 1
        %v2459 = vrot.slane %v316, 1
        %v2460 = vrot.slane %v317, 1
        %v2461 = vrot.slane %v318, 1
        %v2462 = vrot.slane %v319, 1
        %v2463 = vrot.slane %v320, 1
        %v2464 = vrot.slane %v321, 1
        %v2465 = vrot.slane %v322, 1
        %vm2466 = vcmp.lt.s32.totalorder %v2076, 7
        %v2467 = vsel %vm2466, %v2464, %v2465
        %v2468 = vsel %vm2466, %v2463, %v2464
        %v2469 = vsel %vm2466, %v2462, %v2463
        %v2470 = vsel %vm2466, %v2461, %v2462
        %v2471 = vsel %vm2466, %v2460, %v2461
        %v2472 = vsel %vm2466, %v2459, %v2460
        %v2473 = vsel %vm2466, %v2458, %v2459
        %v2474 = vsel %vm2466, %v2465, %v2458
        %2475 = vset.pattern.permute.xlu0 5
        %2476 = vperm.xlu0 %2475, %v2086
        %v2477 = vpop.permute.xlu0 %2476
        %2479 = vset.pattern.permute.xlu0 5
        %2480 = vperm.xlu0 %2479, %v2087
        %v2481 = vpop.permute.xlu0 %2480
        %2483 = vset.pattern.permute.xlu0 5
        %2484 = vperm.xlu0 %2483, %v2088
        %v2485 = vpop.permute.xlu0 %2484
        %2487 = vset.pattern.permute.xlu0 5
        %2488 = vperm.xlu0 %2487, %v2089
        %v2489 = vpop.permute.xlu0 %2488
        %2491 = vset.pattern.permute.xlu0 5
        %2492 = vperm.xlu0 %2491, %v2090
        %v2493 = vpop.permute.xlu0 %2492
        %2495 = vset.pattern.permute.xlu0 5
        %2496 = vperm.xlu0 %2495, %v2091
        %v2497 = vpop.permute.xlu0 %2496
        %2499 = vset.pattern.permute.xlu0 5
        %2500 = vperm.xlu0 %2499, %v2092
        %v2501 = vpop.permute.xlu0 %2500
        %2503 = vset.pattern.permute.xlu0 5
        %2504 = vperm.xlu0 %2503, %v2093
        %v2505 = vpop.permute.xlu0 %2504
        %v2507 = vmul.f32 %v2467, %v2477
        %v2508 = vmul.f32 %v2474, %v2481
        %v2509 = vmul.f32 %v2473, %v2485
        %v2510 = vmul.f32 %v2472, %v2489
        %v2511 = vmul.f32 %v2471, %v2493
        %v2512 = vmul.f32 %v2470, %v2497
        %v2513 = vmul.f32 %v2469, %v2501
        %v2514 = vmul.f32 %v2468, %v2505
        %v2515 = vld [vmem:[%s3 + $0x5] sm:$0x1]
        %v2516 = vlaneseq
        %v2517 = vshrl.u32 %v2516, 7
        %v2518 = vsub.s32 0, %v2517
        %v2519 = vrot.slane %v2515, %v2518
        %v2520 = vmul.f32 %v2507, %v2519
        %v2521 = vmul.f32 %v2508, %v2519
        %v2522 = vmul.f32 %v2509, %v2519
        %v2523 = vmul.f32 %v2510, %v2519
        %v2524 = vmul.f32 %v2511, %v2519
        %v2525 = vmul.f32 %v2512, %v2519
        %v2526 = vmul.f32 %v2513, %v2519
        %v2527 = vmul.f32 %v2514, %v2519
        %v2528 = vadd.f32 %v2450, %v2520
        %v2529 = vadd.f32 %v2451, %v2521
        %v2530 = vadd.f32 %v2452, %v2522
        %v2531 = vadd.f32 %v2453, %v2523
        %v2532 = vadd.f32 %v2454, %v2524
        %v2533 = vadd.f32 %v2455, %v2525
        %v2534 = vadd.f32 %v2456, %v2526
        %v2535 = vadd.f32 %v2457, %v2527
        %2536 = vset.pattern.permute.xlu0 6
        %2537 = vperm.xlu0 %2536, %v2086
        %v2538 = vpop.permute.xlu0 %2537
        %2540 = vset.pattern.permute.xlu0 6
        %2541 = vperm.xlu0 %2540, %v2087
        %v2542 = vpop.permute.xlu0 %2541
        %2544 = vset.pattern.permute.xlu0 6
        %2545 = vperm.xlu0 %2544, %v2088
        %v2546 = vpop.permute.xlu0 %2545
        %2548 = vset.pattern.permute.xlu0 6
        %2549 = vperm.xlu0 %2548, %v2089
        %v2550 = vpop.permute.xlu0 %2549
        %2552 = vset.pattern.permute.xlu0 6
        %2553 = vperm.xlu0 %2552, %v2090
        %v2554 = vpop.permute.xlu0 %2553
        %2556 = vset.pattern.permute.xlu0 6
        %2557 = vperm.xlu0 %2556, %v2091
        %v2558 = vpop.permute.xlu0 %2557
        %2560 = vset.pattern.permute.xlu0 6
        %2561 = vperm.xlu0 %2560, %v2092
        %v2562 = vpop.permute.xlu0 %2561
        %2564 = vset.pattern.permute.xlu0 6
        %2565 = vperm.xlu0 %2564, %v2093
        %v2566 = vpop.permute.xlu0 %2565
        %v2568 = vmul.f32 %v2078, %v2538
        %v2569 = vmul.f32 %v2085, %v2542
        %v2570 = vmul.f32 %v2084, %v2546
        %v2571 = vmul.f32 %v2083, %v2550
        %v2572 = vmul.f32 %v2082, %v2554
        %v2573 = vmul.f32 %v2081, %v2558
        %v2574 = vmul.f32 %v2080, %v2562
        %v2575 = vmul.f32 %v2079, %v2566
        %v2576 = vld [vmem:[%s3 + $0x6] sm:$0x1]
        %v2577 = vlaneseq
        %v2578 = vshrl.u32 %v2577, 7
        %v2579 = vsub.s32 0, %v2578
        %v2580 = vrot.slane %v2576, %v2579
        %v2581 = vmul.f32 %v2568, %v2580
        %v2582 = vmul.f32 %v2569, %v2580
        %v2583 = vmul.f32 %v2570, %v2580
        %v2584 = vmul.f32 %v2571, %v2580
        %v2585 = vmul.f32 %v2572, %v2580
        %v2586 = vmul.f32 %v2573, %v2580
        %v2587 = vmul.f32 %v2574, %v2580
        %v2588 = vmul.f32 %v2575, %v2580
        %v2589 = vadd.f32 %v2528, %v2581
        %v2590 = vadd.f32 %v2529, %v2582
        %v2591 = vadd.f32 %v2530, %v2583
        %v2592 = vadd.f32 %v2531, %v2584
        %v2593 = vadd.f32 %v2532, %v2585
        %v2594 = vadd.f32 %v2533, %v2586
        %v2595 = vadd.f32 %v2534, %v2587
        %v2596 = vadd.f32 %v2535, %v2588
        %2597 = vset.pattern.permute.xlu0 7
        %2598 = vperm.xlu0 %2597, %v2086
        %v2599 = vpop.permute.xlu0 %2598
        %2601 = vset.pattern.permute.xlu0 7
        %2602 = vperm.xlu0 %2601, %v2087
        %v2603 = vpop.permute.xlu0 %2602
        %2605 = vset.pattern.permute.xlu0 7
        %2606 = vperm.xlu0 %2605, %v2088
        %v2607 = vpop.permute.xlu0 %2606
        %2609 = vset.pattern.permute.xlu0 7
        %2610 = vperm.xlu0 %2609, %v2089
        %v2611 = vpop.permute.xlu0 %2610
        %2613 = vset.pattern.permute.xlu0 7
        %2614 = vperm.xlu0 %2613, %v2090
        %v2615 = vpop.permute.xlu0 %2614
        %2617 = vset.pattern.permute.xlu0 7
        %2618 = vperm.xlu0 %2617, %v2091
        %v2619 = vpop.permute.xlu0 %2618
        %2621 = vset.pattern.permute.xlu0 7
        %2622 = vperm.xlu0 %2621, %v2092
        %v2623 = vpop.permute.xlu0 %2622
        %2625 = vset.pattern.permute.xlu0 7
        %2626 = vperm.xlu0 %2625, %v2093
        %v2627 = vpop.permute.xlu0 %2626
        %v2629 = vmul.f32 %v2172, %v2599
        %v2630 = vmul.f32 %v2179, %v2603
        %v2631 = vmul.f32 %v2178, %v2607
        %v2632 = vmul.f32 %v2177, %v2611
        %v2633 = vmul.f32 %v2176, %v2615
        %v2634 = vmul.f32 %v2175, %v2619
        %v2635 = vmul.f32 %v2174, %v2623
        %v2636 = vmul.f32 %v2173, %v2627
        %v2637 = vld [vmem:[%s3 + $0x7] sm:$0x1]
        %v2638 = vlaneseq
        %v2639 = vshrl.u32 %v2638, 7
        %v2640 = vsub.s32 0, %v2639
        %v2641 = vrot.slane %v2637, %v2640
        %v2642 = vmul.f32 %v2629, %v2641
        %v2643 = vmul.f32 %v2630, %v2641
        %v2644 = vmul.f32 %v2631, %v2641
        %v2645 = vmul.f32 %v2632, %v2641
        %v2646 = vmul.f32 %v2633, %v2641
        %v2647 = vmul.f32 %v2634, %v2641
        %v2648 = vmul.f32 %v2635, %v2641
        %v2649 = vmul.f32 %v2636, %v2641
        %v2650 = vadd.f32 %v2589, %v2642
        %v2651 = vadd.f32 %v2590, %v2643
        %v2652 = vadd.f32 %v2591, %v2644
        %v2653 = vadd.f32 %v2592, %v2645
        %v2654 = vadd.f32 %v2593, %v2646
        %v2655 = vadd.f32 %v2594, %v2647
        %v2656 = vadd.f32 %v2595, %v2648
        %v2657 = vadd.f32 %v2596, %v2649
        %2658 = vset.pattern.permute.xlu0 8
        %2659 = vperm.xlu0 %2658, %v2086
        %v2660 = vpop.permute.xlu0 %2659
        %2662 = vset.pattern.permute.xlu0 8
        %2663 = vperm.xlu0 %2662, %v2087
        %v2664 = vpop.permute.xlu0 %2663
        %2666 = vset.pattern.permute.xlu0 8
        %2667 = vperm.xlu0 %2666, %v2088
        %v2668 = vpop.permute.xlu0 %2667
        %2670 = vset.pattern.permute.xlu0 8
        %2671 = vperm.xlu0 %2670, %v2089
        %v2672 = vpop.permute.xlu0 %2671
        %2674 = vset.pattern.permute.xlu0 8
        %2675 = vperm.xlu0 %2674, %v2090
        %v2676 = vpop.permute.xlu0 %2675
        %2678 = vset.pattern.permute.xlu0 8
        %2679 = vperm.xlu0 %2678, %v2091
        %v2680 = vpop.permute.xlu0 %2679
        %2682 = vset.pattern.permute.xlu0 8
        %2683 = vperm.xlu0 %2682, %v2092
        %v2684 = vpop.permute.xlu0 %2683
        %2686 = vset.pattern.permute.xlu0 8
        %2687 = vperm.xlu0 %2686, %v2093
        %v2688 = vpop.permute.xlu0 %2687
        %v2690 = vmul.f32 %v2250, %v2660
        %v2691 = vmul.f32 %v2257, %v2664
        %v2692 = vmul.f32 %v2256, %v2668
        %v2693 = vmul.f32 %v2255, %v2672
        %v2694 = vmul.f32 %v2254, %v2676
        %v2695 = vmul.f32 %v2253, %v2680
        %v2696 = vmul.f32 %v2252, %v2684
        %v2697 = vmul.f32 %v2251, %v2688
        %v2698 = vld [vmem:[%s3 + $0x8] sm:$0x1]
        %v2699 = vlaneseq
        %v2700 = vshrl.u32 %v2699, 7
        %v2701 = vsub.s32 0, %v2700
        %v2702 = vrot.slane %v2698, %v2701
        %v2703 = vmul.f32 %v2690, %v2702
        %v2704 = vmul.f32 %v2691, %v2702
        %v2705 = vmul.f32 %v2692, %v2702
        %v2706 = vmul.f32 %v2693, %v2702
        %v2707 = vmul.f32 %v2694, %v2702
        %v2708 = vmul.f32 %v2695, %v2702
        %v2709 = vmul.f32 %v2696, %v2702
        %v2710 = vmul.f32 %v2697, %v2702
        %v2711 = vadd.f32 %v2650, %v2703
        %v2712 = vadd.f32 %v2651, %v2704
        %v2713 = vadd.f32 %v2652, %v2705
        %v2714 = vadd.f32 %v2653, %v2706
        %v2715 = vadd.f32 %v2654, %v2707
        %v2716 = vadd.f32 %v2655, %v2708
        %v2717 = vadd.f32 %v2656, %v2709
        %v2718 = vadd.f32 %v2657, %v2710
        %2719 = vset.pattern.permute.xlu0 9
        %2720 = vperm.xlu0 %2719, %v2086
        %v2721 = vpop.permute.xlu0 %2720
        %2723 = vset.pattern.permute.xlu0 9
        %2724 = vperm.xlu0 %2723, %v2087
        %v2725 = vpop.permute.xlu0 %2724
        %2727 = vset.pattern.permute.xlu0 9
        %2728 = vperm.xlu0 %2727, %v2088
        %v2729 = vpop.permute.xlu0 %2728
        %2731 = vset.pattern.permute.xlu0 9
        %2732 = vperm.xlu0 %2731, %v2089
        %v2733 = vpop.permute.xlu0 %2732
        %2735 = vset.pattern.permute.xlu0 9
        %2736 = vperm.xlu0 %2735, %v2090
        %v2737 = vpop.permute.xlu0 %2736
        %2739 = vset.pattern.permute.xlu0 9
        %2740 = vperm.xlu0 %2739, %v2091
        %v2741 = vpop.permute.xlu0 %2740
        %2743 = vset.pattern.permute.xlu0 9
        %2744 = vperm.xlu0 %2743, %v2092
        %v2745 = vpop.permute.xlu0 %2744
        %2747 = vset.pattern.permute.xlu0 9
        %2748 = vperm.xlu0 %2747, %v2093
        %v2749 = vpop.permute.xlu0 %2748
        %v2751 = vmul.f32 %v2085, %v2721
        %v2752 = vmul.f32 %v2084, %v2725
        %v2753 = vmul.f32 %v2083, %v2729
        %v2754 = vmul.f32 %v2082, %v2733
        %v2755 = vmul.f32 %v2081, %v2737
        %v2756 = vmul.f32 %v2080, %v2741
        %v2757 = vmul.f32 %v2079, %v2745
        %v2758 = vmul.f32 %v2078, %v2749
        %v2759 = vld [vmem:[%s3 + $0x9] sm:$0x1]
        %v2760 = vlaneseq
        %v2761 = vshrl.u32 %v2760, 7
        %v2762 = vsub.s32 0, %v2761
        %v2763 = vrot.slane %v2759, %v2762
        %v2764 = vmul.f32 %v2751, %v2763
        %v2765 = vmul.f32 %v2752, %v2763
        %v2766 = vmul.f32 %v2753, %v2763
        %v2767 = vmul.f32 %v2754, %v2763
        %v2768 = vmul.f32 %v2755, %v2763
        %v2769 = vmul.f32 %v2756, %v2763
        %v2770 = vmul.f32 %v2757, %v2763
        %v2771 = vmul.f32 %v2758, %v2763
        %v2772 = vadd.f32 %v2711, %v2764
        %v2773 = vadd.f32 %v2712, %v2765
        %v2774 = vadd.f32 %v2713, %v2766
        %v2775 = vadd.f32 %v2714, %v2767
        %v2776 = vadd.f32 %v2715, %v2768
        %v2777 = vadd.f32 %v2716, %v2769
        %v2778 = vadd.f32 %v2717, %v2770
        %v2779 = vadd.f32 %v2718, %v2771
        %2780 = vset.pattern.permute.xlu0 10
        %2781 = vperm.xlu0 %2780, %v2086
        %v2782 = vpop.permute.xlu0 %2781
        %2784 = vset.pattern.permute.xlu0 10
        %2785 = vperm.xlu0 %2784, %v2087
        %v2786 = vpop.permute.xlu0 %2785
        %2788 = vset.pattern.permute.xlu0 10
        %2789 = vperm.xlu0 %2788, %v2088
        %v2790 = vpop.permute.xlu0 %2789
        %2792 = vset.pattern.permute.xlu0 10
        %2793 = vperm.xlu0 %2792, %v2089
        %v2794 = vpop.permute.xlu0 %2793
        %2796 = vset.pattern.permute.xlu0 10
        %2797 = vperm.xlu0 %2796, %v2090
        %v2798 = vpop.permute.xlu0 %2797
        %2800 = vset.pattern.permute.xlu0 10
        %2801 = vperm.xlu0 %2800, %v2091
        %v2802 = vpop.permute.xlu0 %2801
        %2804 = vset.pattern.permute.xlu0 10
        %2805 = vperm.xlu0 %2804, %v2092
        %v2806 = vpop.permute.xlu0 %2805
        %2808 = vset.pattern.permute.xlu0 10
        %2809 = vperm.xlu0 %2808, %v2093
        %v2810 = vpop.permute.xlu0 %2809
        %v2812 = vmul.f32 %v2179, %v2782
        %v2813 = vmul.f32 %v2178, %v2786
        %v2814 = vmul.f32 %v2177, %v2790
        %v2815 = vmul.f32 %v2176, %v2794
        %v2816 = vmul.f32 %v2175, %v2798
        %v2817 = vmul.f32 %v2174, %v2802
        %v2818 = vmul.f32 %v2173, %v2806
        %v2819 = vmul.f32 %v2172, %v2810
        %v2820 = vld [vmem:[%s3 + $0xa] sm:$0x1]
        %v2821 = vlaneseq
        %v2822 = vshrl.u32 %v2821, 7
        %v2823 = vsub.s32 0, %v2822
        %v2824 = vrot.slane %v2820, %v2823
        %v2825 = vmul.f32 %v2812, %v2824
        %v2826 = vmul.f32 %v2813, %v2824
        %v2827 = vmul.f32 %v2814, %v2824
        %v2828 = vmul.f32 %v2815, %v2824
        %v2829 = vmul.f32 %v2816, %v2824
        %v2830 = vmul.f32 %v2817, %v2824
        %v2831 = vmul.f32 %v2818, %v2824
        %v2832 = vmul.f32 %v2819, %v2824
        %v2833 = vadd.f32 %v2772, %v2825
        %v2834 = vadd.f32 %v2773, %v2826
        %v2835 = vadd.f32 %v2774, %v2827
        %v2836 = vadd.f32 %v2775, %v2828
        %v2837 = vadd.f32 %v2776, %v2829
        %v2838 = vadd.f32 %v2777, %v2830
        %v2839 = vadd.f32 %v2778, %v2831
        %v2840 = vadd.f32 %v2779, %v2832
        %2841 = vset.pattern.permute.xlu0 11
        %2842 = vperm.xlu0 %2841, %v2086
        %v2843 = vpop.permute.xlu0 %2842
        %2845 = vset.pattern.permute.xlu0 11
        %2846 = vperm.xlu0 %2845, %v2087
        %v2847 = vpop.permute.xlu0 %2846
        %2849 = vset.pattern.permute.xlu0 11
        %2850 = vperm.xlu0 %2849, %v2088
        %v2851 = vpop.permute.xlu0 %2850
        %2853 = vset.pattern.permute.xlu0 11
        %2854 = vperm.xlu0 %2853, %v2089
        %v2855 = vpop.permute.xlu0 %2854
        %2857 = vset.pattern.permute.xlu0 11
        %2858 = vperm.xlu0 %2857, %v2090
        %v2859 = vpop.permute.xlu0 %2858
        %2861 = vset.pattern.permute.xlu0 11
        %2862 = vperm.xlu0 %2861, %v2091
        %v2863 = vpop.permute.xlu0 %2862
        %2865 = vset.pattern.permute.xlu0 11
        %2866 = vperm.xlu0 %2865, %v2092
        %v2867 = vpop.permute.xlu0 %2866
        %2869 = vset.pattern.permute.xlu0 11
        %2870 = vperm.xlu0 %2869, %v2093
        %v2871 = vpop.permute.xlu0 %2870
        %v2873 = vmul.f32 %v2257, %v2843
        %v2874 = vmul.f32 %v2256, %v2847
        %v2875 = vmul.f32 %v2255, %v2851
        %v2876 = vmul.f32 %v2254, %v2855
        %v2877 = vmul.f32 %v2253, %v2859
        %v2878 = vmul.f32 %v2252, %v2863
        %v2879 = vmul.f32 %v2251, %v2867
        %v2880 = vmul.f32 %v2250, %v2871
        %v2881 = vld [vmem:[%s3 + $0xb] sm:$0x1]
        %v2882 = vlaneseq
        %v2883 = vshrl.u32 %v2882, 7
        %v2884 = vsub.s32 0, %v2883
        %v2885 = vrot.slane %v2881, %v2884
        %v2886 = vmul.f32 %v2873, %v2885
        %v2887 = vmul.f32 %v2874, %v2885
        %v2888 = vmul.f32 %v2875, %v2885
        %v2889 = vmul.f32 %v2876, %v2885
        %v2890 = vmul.f32 %v2877, %v2885
        %v2891 = vmul.f32 %v2878, %v2885
        %v2892 = vmul.f32 %v2879, %v2885
        %v2893 = vmul.f32 %v2880, %v2885
        %v2894 = vadd.f32 %v2833, %v2886
        %v2895 = vadd.f32 %v2834, %v2887
        %v2896 = vadd.f32 %v2835, %v2888
        %v2897 = vadd.f32 %v2836, %v2889
        %v2898 = vadd.f32 %v2837, %v2890
        %v2899 = vadd.f32 %v2838, %v2891
        %v2900 = vadd.f32 %v2839, %v2892
        %v2901 = vadd.f32 %v2840, %v2893
        %2902 = vset.pattern.permute.xlu0 12
        %2903 = vperm.xlu0 %2902, %v2086
        %v2904 = vpop.permute.xlu0 %2903
        %2906 = vset.pattern.permute.xlu0 12
        %2907 = vperm.xlu0 %2906, %v2087
        %v2908 = vpop.permute.xlu0 %2907
        %2910 = vset.pattern.permute.xlu0 12
        %2911 = vperm.xlu0 %2910, %v2088
        %v2912 = vpop.permute.xlu0 %2911
        %2914 = vset.pattern.permute.xlu0 12
        %2915 = vperm.xlu0 %2914, %v2089
        %v2916 = vpop.permute.xlu0 %2915
        %2918 = vset.pattern.permute.xlu0 12
        %2919 = vperm.xlu0 %2918, %v2090
        %v2920 = vpop.permute.xlu0 %2919
        %2922 = vset.pattern.permute.xlu0 12
        %2923 = vperm.xlu0 %2922, %v2091
        %v2924 = vpop.permute.xlu0 %2923
        %2926 = vset.pattern.permute.xlu0 12
        %2927 = vperm.xlu0 %2926, %v2092
        %v2928 = vpop.permute.xlu0 %2927
        %2930 = vset.pattern.permute.xlu0 12
        %2931 = vperm.xlu0 %2930, %v2093
        %v2932 = vpop.permute.xlu0 %2931
        %v2934 = vmul.f32 %v2335, %v2904
        %v2935 = vmul.f32 %v2334, %v2908
        %v2936 = vmul.f32 %v2333, %v2912
        %v2937 = vmul.f32 %v2332, %v2916
        %v2938 = vmul.f32 %v2331, %v2920
        %v2939 = vmul.f32 %v2330, %v2924
        %v2940 = vmul.f32 %v2329, %v2928
        %v2941 = vmul.f32 %v2328, %v2932
        %v2942 = vld [vmem:[%s3 + $0xc] sm:$0x1]
        %v2943 = vlaneseq
        %v2944 = vshrl.u32 %v2943, 7
        %v2945 = vsub.s32 0, %v2944
        %v2946 = vrot.slane %v2942, %v2945
        %v2947 = vmul.f32 %v2934, %v2946
        %v2948 = vmul.f32 %v2935, %v2946
        %v2949 = vmul.f32 %v2936, %v2946
        %v2950 = vmul.f32 %v2937, %v2946
        %v2951 = vmul.f32 %v2938, %v2946
        %v2952 = vmul.f32 %v2939, %v2946
        %v2953 = vmul.f32 %v2940, %v2946
        %v2954 = vmul.f32 %v2941, %v2946
        %v2955 = vadd.f32 %v2894, %v2947
        %v2956 = vadd.f32 %v2895, %v2948
        %v2957 = vadd.f32 %v2896, %v2949
        %v2958 = vadd.f32 %v2897, %v2950
        %v2959 = vadd.f32 %v2898, %v2951
        %v2960 = vadd.f32 %v2899, %v2952
        %v2961 = vadd.f32 %v2900, %v2953
        %v2962 = vadd.f32 %v2901, %v2954
        %2963 = vset.pattern.permute.xlu0 14
        %2964 = vperm.xlu0 %2963, %v2086
        %v2965 = vpop.permute.xlu0 %2964
        %2967 = vset.pattern.permute.xlu0 14
        %2968 = vperm.xlu0 %2967, %v2087
        %v2969 = vpop.permute.xlu0 %2968
        %2971 = vset.pattern.permute.xlu0 14
        %2972 = vperm.xlu0 %2971, %v2088
        %v2973 = vpop.permute.xlu0 %2972
        %2975 = vset.pattern.permute.xlu0 14
        %2976 = vperm.xlu0 %2975, %v2089
        %v2977 = vpop.permute.xlu0 %2976
        %2979 = vset.pattern.permute.xlu0 14
        %2980 = vperm.xlu0 %2979, %v2090
        %v2981 = vpop.permute.xlu0 %2980
        %2983 = vset.pattern.permute.xlu0 14
        %2984 = vperm.xlu0 %2983, %v2091
        %v2985 = vpop.permute.xlu0 %2984
        %2987 = vset.pattern.permute.xlu0 14
        %2988 = vperm.xlu0 %2987, %v2092
        %v2989 = vpop.permute.xlu0 %2988
        %2991 = vset.pattern.permute.xlu0 14
        %2992 = vperm.xlu0 %2991, %v2093
        %v2993 = vpop.permute.xlu0 %2992
        %v2995 = vmul.f32 %v2473, %v2965
        %v2996 = vmul.f32 %v2472, %v2969
        %v2997 = vmul.f32 %v2471, %v2973
        %v2998 = vmul.f32 %v2470, %v2977
        %v2999 = vmul.f32 %v2469, %v2981
        %v3000 = vmul.f32 %v2468, %v2985
        %v3001 = vmul.f32 %v2467, %v2989
        %v3002 = vmul.f32 %v2474, %v2993
        %v3003 = vld [vmem:[%s3 + $0xe] sm:$0x1]
        %v3004 = vlaneseq
        %v3005 = vshrl.u32 %v3004, 7
        %v3006 = vsub.s32 0, %v3005
        %v3007 = vrot.slane %v3003, %v3006
        %v3008 = vmul.f32 %v2995, %v3007
        %v3009 = vmul.f32 %v2996, %v3007
        %v3010 = vmul.f32 %v2997, %v3007
        %v3011 = vmul.f32 %v2998, %v3007
        %v3012 = vmul.f32 %v2999, %v3007
        %v3013 = vmul.f32 %v3000, %v3007
        %v3014 = vmul.f32 %v3001, %v3007
        %v3015 = vmul.f32 %v3002, %v3007
        %v3016 = vadd.f32 %v2955, %v3008
        %v3017 = vadd.f32 %v2956, %v3009
        %v3018 = vadd.f32 %v2957, %v3010
        %v3019 = vadd.f32 %v2958, %v3011
        %v3020 = vadd.f32 %v2959, %v3012
        %v3021 = vadd.f32 %v2960, %v3013
        %v3022 = vadd.f32 %v2961, %v3014
        %v3023 = vadd.f32 %v2962, %v3015
        %3024 = vset.pattern.permute.xlu0 15
        %3025 = vperm.xlu0 %3024, %v2086
        %v3026 = vpop.permute.xlu0 %3025
        %3028 = vset.pattern.permute.xlu0 15
        %3029 = vperm.xlu0 %3028, %v2087
        %v3030 = vpop.permute.xlu0 %3029
        %3032 = vset.pattern.permute.xlu0 15
        %3033 = vperm.xlu0 %3032, %v2088
        %v3034 = vpop.permute.xlu0 %3033
        %3036 = vset.pattern.permute.xlu0 15
        %3037 = vperm.xlu0 %3036, %v2089
        %v3038 = vpop.permute.xlu0 %3037
        %3040 = vset.pattern.permute.xlu0 15
        %3041 = vperm.xlu0 %3040, %v2090
        %v3042 = vpop.permute.xlu0 %3041
        %3044 = vset.pattern.permute.xlu0 15
        %3045 = vperm.xlu0 %3044, %v2091
        %v3046 = vpop.permute.xlu0 %3045
        %3048 = vset.pattern.permute.xlu0 15
        %3049 = vperm.xlu0 %3048, %v2092
        %v3050 = vpop.permute.xlu0 %3049
        %3052 = vset.pattern.permute.xlu0 15
        %3053 = vperm.xlu0 %3052, %v2093
        %v3054 = vpop.permute.xlu0 %3053
        %v3056 = vmul.f32 %v2084, %v3026
        %v3057 = vmul.f32 %v2083, %v3030
        %v3058 = vmul.f32 %v2082, %v3034
        %v3059 = vmul.f32 %v2081, %v3038
        %v3060 = vmul.f32 %v2080, %v3042
        %v3061 = vmul.f32 %v2079, %v3046
        %v3062 = vmul.f32 %v2078, %v3050
        %v3063 = vmul.f32 %v2085, %v3054
        %v3064 = vld [vmem:[%s3 + $0xf] sm:$0x1]
        %v3065 = vlaneseq
        %v3066 = vshrl.u32 %v3065, 7
        %v3067 = vsub.s32 0, %v3066
        %v3068 = vrot.slane %v3064, %v3067
        %v3069 = vmul.f32 %v3056, %v3068
        %v3070 = vmul.f32 %v3057, %v3068
        %v3071 = vmul.f32 %v3058, %v3068
        %v3072 = vmul.f32 %v3059, %v3068
        %v3073 = vmul.f32 %v3060, %v3068
        %v3074 = vmul.f32 %v3061, %v3068
        %v3075 = vmul.f32 %v3062, %v3068
        %v3076 = vmul.f32 %v3063, %v3068
        %v3077 = vadd.f32 %v3016, %v3069
        %v3078 = vadd.f32 %v3017, %v3070
        %v3079 = vadd.f32 %v3018, %v3071
        %v3080 = vadd.f32 %v3019, %v3072
        %v3081 = vadd.f32 %v3020, %v3073
        %v3082 = vadd.f32 %v3021, %v3074
        %v3083 = vadd.f32 %v3022, %v3075
        %v3084 = vadd.f32 %v3023, %v3076
        %3085 = vset.pattern.permute.xlu0 16
        %3086 = vperm.xlu0 %3085, %v2086
        %v3087 = vpop.permute.xlu0 %3086
        %3089 = vset.pattern.permute.xlu0 16
        %3090 = vperm.xlu0 %3089, %v2087
        %v3091 = vpop.permute.xlu0 %3090
        %3093 = vset.pattern.permute.xlu0 16
        %3094 = vperm.xlu0 %3093, %v2088
        %v3095 = vpop.permute.xlu0 %3094
        %3097 = vset.pattern.permute.xlu0 16
        %3098 = vperm.xlu0 %3097, %v2089
        %v3099 = vpop.permute.xlu0 %3098
        %3101 = vset.pattern.permute.xlu0 16
        %3102 = vperm.xlu0 %3101, %v2090
        %v3103 = vpop.permute.xlu0 %3102
        %3105 = vset.pattern.permute.xlu0 16
        %3106 = vperm.xlu0 %3105, %v2091
        %v3107 = vpop.permute.xlu0 %3106
        %3109 = vset.pattern.permute.xlu0 16
        %3110 = vperm.xlu0 %3109, %v2092
        %v3111 = vpop.permute.xlu0 %3110
        %3113 = vset.pattern.permute.xlu0 16
        %3114 = vperm.xlu0 %3113, %v2093
        %v3115 = vpop.permute.xlu0 %3114
        %v3117 = vmul.f32 %v2178, %v3087
        %v3118 = vmul.f32 %v2177, %v3091
        %v3119 = vmul.f32 %v2176, %v3095
        %v3120 = vmul.f32 %v2175, %v3099
        %v3121 = vmul.f32 %v2174, %v3103
        %v3122 = vmul.f32 %v2173, %v3107
        %v3123 = vmul.f32 %v2172, %v3111
        %v3124 = vmul.f32 %v2179, %v3115
        %v3125 = vld [vmem:[%s3 + $0x10] sm:$0x1]
        %v3126 = vlaneseq
        %v3127 = vshrl.u32 %v3126, 7
        %v3128 = vsub.s32 0, %v3127
        %v3129 = vrot.slane %v3125, %v3128
        %v3130 = vmul.f32 %v3117, %v3129
        %v3131 = vmul.f32 %v3118, %v3129
        %v3132 = vmul.f32 %v3119, %v3129
        %v3133 = vmul.f32 %v3120, %v3129
        %v3134 = vmul.f32 %v3121, %v3129
        %v3135 = vmul.f32 %v3122, %v3129
        %v3136 = vmul.f32 %v3123, %v3129
        %v3137 = vmul.f32 %v3124, %v3129
        %v3138 = vadd.f32 %v3077, %v3130
        %v3139 = vadd.f32 %v3078, %v3131
        %v3140 = vadd.f32 %v3079, %v3132
        %v3141 = vadd.f32 %v3080, %v3133
        %v3142 = vadd.f32 %v3081, %v3134
        %v3143 = vadd.f32 %v3082, %v3135
        %v3144 = vadd.f32 %v3083, %v3136
        %v3145 = vadd.f32 %v3084, %v3137
        %3146 = vset.pattern.permute.xlu0 17
        %3147 = vperm.xlu0 %3146, %v2086
        %v3148 = vpop.permute.xlu0 %3147
        %3150 = vset.pattern.permute.xlu0 17
        %3151 = vperm.xlu0 %3150, %v2087
        %v3152 = vpop.permute.xlu0 %3151
        %3154 = vset.pattern.permute.xlu0 17
        %3155 = vperm.xlu0 %3154, %v2088
        %v3156 = vpop.permute.xlu0 %3155
        %3158 = vset.pattern.permute.xlu0 17
        %3159 = vperm.xlu0 %3158, %v2089
        %v3160 = vpop.permute.xlu0 %3159
        %3162 = vset.pattern.permute.xlu0 17
        %3163 = vperm.xlu0 %3162, %v2090
        %v3164 = vpop.permute.xlu0 %3163
        %3166 = vset.pattern.permute.xlu0 17
        %3167 = vperm.xlu0 %3166, %v2091
        %v3168 = vpop.permute.xlu0 %3167
        %3170 = vset.pattern.permute.xlu0 17
        %3171 = vperm.xlu0 %3170, %v2092
        %v3172 = vpop.permute.xlu0 %3171
        %3174 = vset.pattern.permute.xlu0 17
        %3175 = vperm.xlu0 %3174, %v2093
        %v3176 = vpop.permute.xlu0 %3175
        %v3178 = vmul.f32 %v2256, %v3148
        %v3179 = vmul.f32 %v2255, %v3152
        %v3180 = vmul.f32 %v2254, %v3156
        %v3181 = vmul.f32 %v2253, %v3160
        %v3182 = vmul.f32 %v2252, %v3164
        %v3183 = vmul.f32 %v2251, %v3168
        %v3184 = vmul.f32 %v2250, %v3172
        %v3185 = vmul.f32 %v2257, %v3176
        %v3186 = vld [vmem:[%s3 + $0x11] sm:$0x1]
        %v3187 = vlaneseq
        %v3188 = vshrl.u32 %v3187, 7
        %v3189 = vsub.s32 0, %v3188
        %v3190 = vrot.slane %v3186, %v3189
        %v3191 = vmul.f32 %v3178, %v3190
        %v3192 = vmul.f32 %v3179, %v3190
        %v3193 = vmul.f32 %v3180, %v3190
        %v3194 = vmul.f32 %v3181, %v3190
        %v3195 = vmul.f32 %v3182, %v3190
        %v3196 = vmul.f32 %v3183, %v3190
        %v3197 = vmul.f32 %v3184, %v3190
        %v3198 = vmul.f32 %v3185, %v3190
        %v3199 = vadd.f32 %v3138, %v3191
        %v3200 = vadd.f32 %v3139, %v3192
        %v3201 = vadd.f32 %v3140, %v3193
        %v3202 = vadd.f32 %v3141, %v3194
        %v3203 = vadd.f32 %v3142, %v3195
        %v3204 = vadd.f32 %v3143, %v3196
        %v3205 = vadd.f32 %v3144, %v3197
        %v3206 = vadd.f32 %v3145, %v3198
        %3207 = vset.pattern.permute.xlu0 18
        %3208 = vperm.xlu0 %3207, %v2086
        %v3209 = vpop.permute.xlu0 %3208
        %3211 = vset.pattern.permute.xlu0 18
        %3212 = vperm.xlu0 %3211, %v2087
        %v3213 = vpop.permute.xlu0 %3212
        %3215 = vset.pattern.permute.xlu0 18
        %3216 = vperm.xlu0 %3215, %v2088
        %v3217 = vpop.permute.xlu0 %3216
        %3219 = vset.pattern.permute.xlu0 18
        %3220 = vperm.xlu0 %3219, %v2089
        %v3221 = vpop.permute.xlu0 %3220
        %3223 = vset.pattern.permute.xlu0 18
        %3224 = vperm.xlu0 %3223, %v2090
        %v3225 = vpop.permute.xlu0 %3224
        %3227 = vset.pattern.permute.xlu0 18
        %3228 = vperm.xlu0 %3227, %v2091
        %v3229 = vpop.permute.xlu0 %3228
        %3231 = vset.pattern.permute.xlu0 18
        %3232 = vperm.xlu0 %3231, %v2092
        %v3233 = vpop.permute.xlu0 %3232
        %3235 = vset.pattern.permute.xlu0 18
        %3236 = vperm.xlu0 %3235, %v2093
        %v3237 = vpop.permute.xlu0 %3236
        %v3239 = vmul.f32 %v2083, %v3209
        %v3240 = vmul.f32 %v2082, %v3213
        %v3241 = vmul.f32 %v2081, %v3217
        %v3242 = vmul.f32 %v2080, %v3221
        %v3243 = vmul.f32 %v2079, %v3225
        %v3244 = vmul.f32 %v2078, %v3229
        %v3245 = vmul.f32 %v2085, %v3233
        %v3246 = vmul.f32 %v2084, %v3237
        %v3247 = vld [vmem:[%s3 + $0x12] sm:$0x1]
        %v3248 = vlaneseq
        %v3249 = vshrl.u32 %v3248, 7
        %v3250 = vsub.s32 0, %v3249
        %v3251 = vrot.slane %v3247, %v3250
        %v3252 = vmul.f32 %v3239, %v3251
        %v3253 = vmul.f32 %v3240, %v3251
        %v3254 = vmul.f32 %v3241, %v3251
        %v3255 = vmul.f32 %v3242, %v3251
        %v3256 = vmul.f32 %v3243, %v3251
        %v3257 = vmul.f32 %v3244, %v3251
        %v3258 = vmul.f32 %v3245, %v3251
        %v3259 = vmul.f32 %v3246, %v3251
        %v3260 = vadd.f32 %v3199, %v3252
        %v3261 = vadd.f32 %v3200, %v3253
        %v3262 = vadd.f32 %v3201, %v3254
        %v3263 = vadd.f32 %v3202, %v3255
        %v3264 = vadd.f32 %v3203, %v3256
        %v3265 = vadd.f32 %v3204, %v3257
        %v3266 = vadd.f32 %v3205, %v3258
        %v3267 = vadd.f32 %v3206, %v3259
        %3268 = vset.pattern.permute.xlu0 19
        %3269 = vperm.xlu0 %3268, %v2086
        %v3270 = vpop.permute.xlu0 %3269
        %3272 = vset.pattern.permute.xlu0 19
        %3273 = vperm.xlu0 %3272, %v2087
        %v3274 = vpop.permute.xlu0 %3273
        %3276 = vset.pattern.permute.xlu0 19
        %3277 = vperm.xlu0 %3276, %v2088
        %v3278 = vpop.permute.xlu0 %3277
        %3280 = vset.pattern.permute.xlu0 19
        %3281 = vperm.xlu0 %3280, %v2089
        %v3282 = vpop.permute.xlu0 %3281
        %3284 = vset.pattern.permute.xlu0 19
        %3285 = vperm.xlu0 %3284, %v2090
        %v3286 = vpop.permute.xlu0 %3285
        %3288 = vset.pattern.permute.xlu0 19
        %3289 = vperm.xlu0 %3288, %v2091
        %v3290 = vpop.permute.xlu0 %3289
        %3292 = vset.pattern.permute.xlu0 19
        %3293 = vperm.xlu0 %3292, %v2092
        %v3294 = vpop.permute.xlu0 %3293
        %3296 = vset.pattern.permute.xlu0 19
        %3297 = vperm.xlu0 %3296, %v2093
        %v3298 = vpop.permute.xlu0 %3297
        %v3300 = vmul.f32 %v2177, %v3270
        %v3301 = vmul.f32 %v2176, %v3274
        %v3302 = vmul.f32 %v2175, %v3278
        %v3303 = vmul.f32 %v2174, %v3282
        %v3304 = vmul.f32 %v2173, %v3286
        %v3305 = vmul.f32 %v2172, %v3290
        %v3306 = vmul.f32 %v2179, %v3294
        %v3307 = vmul.f32 %v2178, %v3298
        %v3308 = vld [vmem:[%s3 + $0x13] sm:$0x1]
        %v3309 = vlaneseq
        %v3310 = vshrl.u32 %v3309, 7
        %v3311 = vsub.s32 0, %v3310
        %v3312 = vrot.slane %v3308, %v3311
        %v3313 = vmul.f32 %v3300, %v3312
        %v3314 = vmul.f32 %v3301, %v3312
        %v3315 = vmul.f32 %v3302, %v3312
        %v3316 = vmul.f32 %v3303, %v3312
        %v3317 = vmul.f32 %v3304, %v3312
        %v3318 = vmul.f32 %v3305, %v3312
        %v3319 = vmul.f32 %v3306, %v3312
        %v3320 = vmul.f32 %v3307, %v3312
        %v3321 = vadd.f32 %v3260, %v3313
        %v3322 = vadd.f32 %v3261, %v3314
        %v3323 = vadd.f32 %v3262, %v3315
        %v3324 = vadd.f32 %v3263, %v3316
        %v3325 = vadd.f32 %v3264, %v3317
        %v3326 = vadd.f32 %v3265, %v3318
        %v3327 = vadd.f32 %v3266, %v3319
        %v3328 = vadd.f32 %v3267, %v3320
        %3329 = vset.pattern.permute.xlu0 20
        %3330 = vperm.xlu0 %3329, %v2086
        %v3331 = vpop.permute.xlu0 %3330
        %3333 = vset.pattern.permute.xlu0 20
        %3334 = vperm.xlu0 %3333, %v2087
        %v3335 = vpop.permute.xlu0 %3334
        %3337 = vset.pattern.permute.xlu0 20
        %3338 = vperm.xlu0 %3337, %v2088
        %v3339 = vpop.permute.xlu0 %3338
        %3341 = vset.pattern.permute.xlu0 20
        %3342 = vperm.xlu0 %3341, %v2089
        %v3343 = vpop.permute.xlu0 %3342
        %3345 = vset.pattern.permute.xlu0 20
        %3346 = vperm.xlu0 %3345, %v2090
        %v3347 = vpop.permute.xlu0 %3346
        %3349 = vset.pattern.permute.xlu0 20
        %3350 = vperm.xlu0 %3349, %v2091
        %v3351 = vpop.permute.xlu0 %3350
        %3353 = vset.pattern.permute.xlu0 20
        %3354 = vperm.xlu0 %3353, %v2092
        %v3355 = vpop.permute.xlu0 %3354
        %3357 = vset.pattern.permute.xlu0 20
        %3358 = vperm.xlu0 %3357, %v2093
        %v3359 = vpop.permute.xlu0 %3358
        %v3361 = vmul.f32 %v2255, %v3331
        %v3362 = vmul.f32 %v2254, %v3335
        %v3363 = vmul.f32 %v2253, %v3339
        %v3364 = vmul.f32 %v2252, %v3343
        %v3365 = vmul.f32 %v2251, %v3347
        %v3366 = vmul.f32 %v2250, %v3351
        %v3367 = vmul.f32 %v2257, %v3355
        %v3368 = vmul.f32 %v2256, %v3359
        %v3369 = vld [vmem:[%s3 + $0x14] sm:$0x1]
        %v3370 = vlaneseq
        %v3371 = vshrl.u32 %v3370, 7
        %v3372 = vsub.s32 0, %v3371
        %v3373 = vrot.slane %v3369, %v3372
        %v3374 = vmul.f32 %v3361, %v3373
        %v3375 = vmul.f32 %v3362, %v3373
        %v3376 = vmul.f32 %v3363, %v3373
        %v3377 = vmul.f32 %v3364, %v3373
        %v3378 = vmul.f32 %v3365, %v3373
        %v3379 = vmul.f32 %v3366, %v3373
        %v3380 = vmul.f32 %v3367, %v3373
        %v3381 = vmul.f32 %v3368, %v3373
        %v3382 = vadd.f32 %v3321, %v3374
        %v3383 = vadd.f32 %v3322, %v3375
        %v3384 = vadd.f32 %v3323, %v3376
        %v3385 = vadd.f32 %v3324, %v3377
        %v3386 = vadd.f32 %v3325, %v3378
        %v3387 = vadd.f32 %v3326, %v3379
        %v3388 = vadd.f32 %v3327, %v3380
        %v3389 = vadd.f32 %v3328, %v3381
        %3390 = vset.pattern.permute.xlu0 21
        %3391 = vperm.xlu0 %3390, %v2086
        %v3392 = vpop.permute.xlu0 %3391
        %3394 = vset.pattern.permute.xlu0 21
        %3395 = vperm.xlu0 %3394, %v2087
        %v3396 = vpop.permute.xlu0 %3395
        %3398 = vset.pattern.permute.xlu0 21
        %3399 = vperm.xlu0 %3398, %v2088
        %v3400 = vpop.permute.xlu0 %3399
        %3402 = vset.pattern.permute.xlu0 21
        %3403 = vperm.xlu0 %3402, %v2089
        %v3404 = vpop.permute.xlu0 %3403
        %3406 = vset.pattern.permute.xlu0 21
        %3407 = vperm.xlu0 %3406, %v2090
        %v3408 = vpop.permute.xlu0 %3407
        %3410 = vset.pattern.permute.xlu0 21
        %3411 = vperm.xlu0 %3410, %v2091
        %v3412 = vpop.permute.xlu0 %3411
        %3414 = vset.pattern.permute.xlu0 21
        %3415 = vperm.xlu0 %3414, %v2092
        %v3416 = vpop.permute.xlu0 %3415
        %3418 = vset.pattern.permute.xlu0 21
        %3419 = vperm.xlu0 %3418, %v2093
        %v3420 = vpop.permute.xlu0 %3419
        %v3422 = vmul.f32 %v2333, %v3392
        %v3423 = vmul.f32 %v2332, %v3396
        %v3424 = vmul.f32 %v2331, %v3400
        %v3425 = vmul.f32 %v2330, %v3404
        %v3426 = vmul.f32 %v2329, %v3408
        %v3427 = vmul.f32 %v2328, %v3412
        %v3428 = vmul.f32 %v2335, %v3416
        %v3429 = vmul.f32 %v2334, %v3420
        %v3430 = vld [vmem:[%s3 + $0x15] sm:$0x1]
        %v3431 = vlaneseq
        %v3432 = vshrl.u32 %v3431, 7
        %v3433 = vsub.s32 0, %v3432
        %v3434 = vrot.slane %v3430, %v3433
        %v3435 = vmul.f32 %v3422, %v3434
        %v3436 = vmul.f32 %v3423, %v3434
        %v3437 = vmul.f32 %v3424, %v3434
        %v3438 = vmul.f32 %v3425, %v3434
        %v3439 = vmul.f32 %v3426, %v3434
        %v3440 = vmul.f32 %v3427, %v3434
        %v3441 = vmul.f32 %v3428, %v3434
        %v3442 = vmul.f32 %v3429, %v3434
        %v3443 = vadd.f32 %v3382, %v3435
        %v3444 = vadd.f32 %v3383, %v3436
        %v3445 = vadd.f32 %v3384, %v3437
        %v3446 = vadd.f32 %v3385, %v3438
        %v3447 = vadd.f32 %v3386, %v3439
        %v3448 = vadd.f32 %v3387, %v3440
        %v3449 = vadd.f32 %v3388, %v3441
        %v3450 = vadd.f32 %v3389, %v3442
        %3451 = vset.pattern.permute.xlu0 22
        %3452 = vperm.xlu0 %3451, %v2086
        %v3453 = vpop.permute.xlu0 %3452
        %3455 = vset.pattern.permute.xlu0 22
        %3456 = vperm.xlu0 %3455, %v2087
        %v3457 = vpop.permute.xlu0 %3456
        %3459 = vset.pattern.permute.xlu0 22
        %3460 = vperm.xlu0 %3459, %v2088
        %v3461 = vpop.permute.xlu0 %3460
        %3463 = vset.pattern.permute.xlu0 22
        %3464 = vperm.xlu0 %3463, %v2089
        %v3465 = vpop.permute.xlu0 %3464
        %3467 = vset.pattern.permute.xlu0 22
        %3468 = vperm.xlu0 %3467, %v2090
        %v3469 = vpop.permute.xlu0 %3468
        %3471 = vset.pattern.permute.xlu0 22
        %3472 = vperm.xlu0 %3471, %v2091
        %v3473 = vpop.permute.xlu0 %3472
        %3475 = vset.pattern.permute.xlu0 22
        %3476 = vperm.xlu0 %3475, %v2092
        %v3477 = vpop.permute.xlu0 %3476
        %3479 = vset.pattern.permute.xlu0 22
        %3480 = vperm.xlu0 %3479, %v2093
        %v3481 = vpop.permute.xlu0 %3480
        %v3483 = vmul.f32 %v317, %v3453
        %v3484 = vmul.f32 %v318, %v3457
        %v3485 = vmul.f32 %v319, %v3461
        %v3486 = vmul.f32 %v320, %v3465
        %v3487 = vmul.f32 %v321, %v3469
        %v3488 = vmul.f32 %v322, %v3473
        %v3489 = vmul.f32 %v315, %v3477
        %v3490 = vmul.f32 %v316, %v3481
        %v3491 = vld [vmem:[%s3 + $0x16] sm:$0x1]
        %v3492 = vlaneseq
        %v3493 = vshrl.u32 %v3492, 7
        %v3494 = vsub.s32 0, %v3493
        %v3495 = vrot.slane %v3491, %v3494
        %v3496 = vmul.f32 %v3483, %v3495
        %v3497 = vmul.f32 %v3484, %v3495
        %v3498 = vmul.f32 %v3485, %v3495
        %v3499 = vmul.f32 %v3486, %v3495
        %v3500 = vmul.f32 %v3487, %v3495
        %v3501 = vmul.f32 %v3488, %v3495
        %v3502 = vmul.f32 %v3489, %v3495
        %v3503 = vmul.f32 %v3490, %v3495
        %v3504 = vadd.f32 %v3443, %v3496
        %v3505 = vadd.f32 %v3444, %v3497
        %v3506 = vadd.f32 %v3445, %v3498
        %v3507 = vadd.f32 %v3446, %v3499
        %v3508 = vadd.f32 %v3447, %v3500
        %v3509 = vadd.f32 %v3448, %v3501
        %v3510 = vadd.f32 %v3449, %v3502
        %v3511 = vadd.f32 %v3450, %v3503
        %3512 = vset.pattern.permute.xlu0 23
        %3513 = vperm.xlu0 %3512, %v2086
        %v3514 = vpop.permute.xlu0 %3513
        %3516 = vset.pattern.permute.xlu0 23
        %3517 = vperm.xlu0 %3516, %v2087
        %v3518 = vpop.permute.xlu0 %3517
        %3520 = vset.pattern.permute.xlu0 23
        %3521 = vperm.xlu0 %3520, %v2088
        %v3522 = vpop.permute.xlu0 %3521
        %3524 = vset.pattern.permute.xlu0 23
        %3525 = vperm.xlu0 %3524, %v2089
        %v3526 = vpop.permute.xlu0 %3525
        %3528 = vset.pattern.permute.xlu0 23
        %3529 = vperm.xlu0 %3528, %v2090
        %v3530 = vpop.permute.xlu0 %3529
        %3532 = vset.pattern.permute.xlu0 23
        %3533 = vperm.xlu0 %3532, %v2091
        %v3534 = vpop.permute.xlu0 %3533
        %3536 = vset.pattern.permute.xlu0 23
        %3537 = vperm.xlu0 %3536, %v2092
        %v3538 = vpop.permute.xlu0 %3537
        %3540 = vset.pattern.permute.xlu0 23
        %3541 = vperm.xlu0 %3540, %v2093
        %v3542 = vpop.permute.xlu0 %3541
        %v3544 = vmul.f32 %v2471, %v3514
        %v3545 = vmul.f32 %v2470, %v3518
        %v3546 = vmul.f32 %v2469, %v3522
        %v3547 = vmul.f32 %v2468, %v3526
        %v3548 = vmul.f32 %v2467, %v3530
        %v3549 = vmul.f32 %v2474, %v3534
        %v3550 = vmul.f32 %v2473, %v3538
        %v3551 = vmul.f32 %v2472, %v3542
        %v3552 = vld [vmem:[%s3 + $0x17] sm:$0x1]
        %v3553 = vlaneseq
        %v3554 = vshrl.u32 %v3553, 7
        %v3555 = vsub.s32 0, %v3554
        %v3556 = vrot.slane %v3552, %v3555
        %v3557 = vmul.f32 %v3544, %v3556
        %v3558 = vmul.f32 %v3545, %v3556
        %v3559 = vmul.f32 %v3546, %v3556
        %v3560 = vmul.f32 %v3547, %v3556
        %v3561 = vmul.f32 %v3548, %v3556
        %v3562 = vmul.f32 %v3549, %v3556
        %v3563 = vmul.f32 %v3550, %v3556
        %v3564 = vmul.f32 %v3551, %v3556
        %v3565 = vadd.f32 %v3504, %v3557
        %v3566 = vadd.f32 %v3505, %v3558
        %v3567 = vadd.f32 %v3506, %v3559
        %v3568 = vadd.f32 %v3507, %v3560
        %v3569 = vadd.f32 %v3508, %v3561
        %v3570 = vadd.f32 %v3509, %v3562
        %v3571 = vadd.f32 %v3510, %v3563
        %v3572 = vadd.f32 %v3511, %v3564
        %3573 = vset.pattern.permute.xlu0 24
        %3574 = vperm.xlu0 %3573, %v2086
        %v3575 = vpop.permute.xlu0 %3574
        %3577 = vset.pattern.permute.xlu0 24
        %3578 = vperm.xlu0 %3577, %v2087
        %v3579 = vpop.permute.xlu0 %3578
        %3581 = vset.pattern.permute.xlu0 24
        %3582 = vperm.xlu0 %3581, %v2088
        %v3583 = vpop.permute.xlu0 %3582
        %3585 = vset.pattern.permute.xlu0 24
        %3586 = vperm.xlu0 %3585, %v2089
        %v3587 = vpop.permute.xlu0 %3586
        %3589 = vset.pattern.permute.xlu0 24
        %3590 = vperm.xlu0 %3589, %v2090
        %v3591 = vpop.permute.xlu0 %3590
        %3593 = vset.pattern.permute.xlu0 24
        %3594 = vperm.xlu0 %3593, %v2091
        %v3595 = vpop.permute.xlu0 %3594
        %3597 = vset.pattern.permute.xlu0 24
        %3598 = vperm.xlu0 %3597, %v2092
        %v3599 = vpop.permute.xlu0 %3598
        %3601 = vset.pattern.permute.xlu0 24
        %3602 = vperm.xlu0 %3601, %v2093
        %v3603 = vpop.permute.xlu0 %3602
        %v3605 = vmul.f32 %v2082, %v3575
        %v3606 = vmul.f32 %v2081, %v3579
        %v3607 = vmul.f32 %v2080, %v3583
        %v3608 = vmul.f32 %v2079, %v3587
        %v3609 = vmul.f32 %v2078, %v3591
        %v3610 = vmul.f32 %v2085, %v3595
        %v3611 = vmul.f32 %v2084, %v3599
        %v3612 = vmul.f32 %v2083, %v3603
        %v3613 = vld [vmem:[%s3 + $0x18] sm:$0x1]
        %v3614 = vlaneseq
        %v3615 = vshrl.u32 %v3614, 7
        %v3616 = vsub.s32 0, %v3615
        %v3617 = vrot.slane %v3613, %v3616
        %v3618 = vmul.f32 %v3605, %v3617
        %v3619 = vmul.f32 %v3606, %v3617
        %v3620 = vmul.f32 %v3607, %v3617
        %v3621 = vmul.f32 %v3608, %v3617
        %v3622 = vmul.f32 %v3609, %v3617
        %v3623 = vmul.f32 %v3610, %v3617
        %v3624 = vmul.f32 %v3611, %v3617
        %v3625 = vmul.f32 %v3612, %v3617
        %v3626 = vadd.f32 %v3565, %v3618
        %v3627 = vadd.f32 %v3566, %v3619
        %v3628 = vadd.f32 %v3567, %v3620
        %v3629 = vadd.f32 %v3568, %v3621
        %v3630 = vadd.f32 %v3569, %v3622
        %v3631 = vadd.f32 %v3570, %v3623
        %v3632 = vadd.f32 %v3571, %v3624
        %v3633 = vadd.f32 %v3572, %v3625
        %3634 = vset.pattern.permute.xlu0 25
        %3635 = vperm.xlu0 %3634, %v2086
        %v3636 = vpop.permute.xlu0 %3635
        %3638 = vset.pattern.permute.xlu0 25
        %3639 = vperm.xlu0 %3638, %v2087
        %v3640 = vpop.permute.xlu0 %3639
        %3642 = vset.pattern.permute.xlu0 25
        %3643 = vperm.xlu0 %3642, %v2088
        %v3644 = vpop.permute.xlu0 %3643
        %3646 = vset.pattern.permute.xlu0 25
        %3647 = vperm.xlu0 %3646, %v2089
        %v3648 = vpop.permute.xlu0 %3647
        %3650 = vset.pattern.permute.xlu0 25
        %3651 = vperm.xlu0 %3650, %v2090
        %v3652 = vpop.permute.xlu0 %3651
        %3654 = vset.pattern.permute.xlu0 25
        %3655 = vperm.xlu0 %3654, %v2091
        %v3656 = vpop.permute.xlu0 %3655
        %3658 = vset.pattern.permute.xlu0 25
        %3659 = vperm.xlu0 %3658, %v2092
        %v3660 = vpop.permute.xlu0 %3659
        %3662 = vset.pattern.permute.xlu0 25
        %3663 = vperm.xlu0 %3662, %v2093
        %v3664 = vpop.permute.xlu0 %3663
        %v3666 = vmul.f32 %v2176, %v3636
        %v3667 = vmul.f32 %v2175, %v3640
        %v3668 = vmul.f32 %v2174, %v3644
        %v3669 = vmul.f32 %v2173, %v3648
        %v3670 = vmul.f32 %v2172, %v3652
        %v3671 = vmul.f32 %v2179, %v3656
        %v3672 = vmul.f32 %v2178, %v3660
        %v3673 = vmul.f32 %v2177, %v3664
        %v3674 = vld [vmem:[%s3 + $0x19] sm:$0x1]
        %v3675 = vlaneseq
        %v3676 = vshrl.u32 %v3675, 7
        %v3677 = vsub.s32 0, %v3676
        %v3678 = vrot.slane %v3674, %v3677
        %v3679 = vmul.f32 %v3666, %v3678
        %v3680 = vmul.f32 %v3667, %v3678
        %v3681 = vmul.f32 %v3668, %v3678
        %v3682 = vmul.f32 %v3669, %v3678
        %v3683 = vmul.f32 %v3670, %v3678
        %v3684 = vmul.f32 %v3671, %v3678
        %v3685 = vmul.f32 %v3672, %v3678
        %v3686 = vmul.f32 %v3673, %v3678
        %v3687 = vadd.f32 %v3626, %v3679
        %v3688 = vadd.f32 %v3627, %v3680
        %v3689 = vadd.f32 %v3628, %v3681
        %v3690 = vadd.f32 %v3629, %v3682
        %v3691 = vadd.f32 %v3630, %v3683
        %v3692 = vadd.f32 %v3631, %v3684
        %v3693 = vadd.f32 %v3632, %v3685
        %v3694 = vadd.f32 %v3633, %v3686
        %3695 = vset.pattern.permute.xlu0 26
        %3696 = vperm.xlu0 %3695, %v2086
        %v3697 = vpop.permute.xlu0 %3696
        %3699 = vset.pattern.permute.xlu0 26
        %3700 = vperm.xlu0 %3699, %v2087
        %v3701 = vpop.permute.xlu0 %3700
        %3703 = vset.pattern.permute.xlu0 26
        %3704 = vperm.xlu0 %3703, %v2088
        %v3705 = vpop.permute.xlu0 %3704
        %3707 = vset.pattern.permute.xlu0 26
        %3708 = vperm.xlu0 %3707, %v2089
        %v3709 = vpop.permute.xlu0 %3708
        %3711 = vset.pattern.permute.xlu0 26
        %3712 = vperm.xlu0 %3711, %v2090
        %v3713 = vpop.permute.xlu0 %3712
        %3715 = vset.pattern.permute.xlu0 26
        %3716 = vperm.xlu0 %3715, %v2091
        %v3717 = vpop.permute.xlu0 %3716
        %3719 = vset.pattern.permute.xlu0 26
        %3720 = vperm.xlu0 %3719, %v2092
        %v3721 = vpop.permute.xlu0 %3720
        %3723 = vset.pattern.permute.xlu0 26
        %3724 = vperm.xlu0 %3723, %v2093
        %v3725 = vpop.permute.xlu0 %3724
        %v3727 = vmul.f32 %v2254, %v3697
        %v3728 = vmul.f32 %v2253, %v3701
        %v3729 = vmul.f32 %v2252, %v3705
        %v3730 = vmul.f32 %v2251, %v3709
        %v3731 = vmul.f32 %v2250, %v3713
        %v3732 = vmul.f32 %v2257, %v3717
        %v3733 = vmul.f32 %v2256, %v3721
        %v3734 = vmul.f32 %v2255, %v3725
        %v3735 = vld [vmem:[%s3 + $0x1a] sm:$0x1]
        %v3736 = vlaneseq
        %v3737 = vshrl.u32 %v3736, 7
        %v3738 = vsub.s32 0, %v3737
        %v3739 = vrot.slane %v3735, %v3738
        %v3740 = vmul.f32 %v3727, %v3739
        %v3741 = vmul.f32 %v3728, %v3739
        %v3742 = vmul.f32 %v3729, %v3739
        %v3743 = vmul.f32 %v3730, %v3739
        %v3744 = vmul.f32 %v3731, %v3739
        %v3745 = vmul.f32 %v3732, %v3739
        %v3746 = vmul.f32 %v3733, %v3739
        %v3747 = vmul.f32 %v3734, %v3739
        %v3748 = vadd.f32 %v3687, %v3740
        %v3749 = vadd.f32 %v3688, %v3741
        %v3750 = vadd.f32 %v3689, %v3742
        %v3751 = vadd.f32 %v3690, %v3743
        %v3752 = vadd.f32 %v3691, %v3744
        %v3753 = vadd.f32 %v3692, %v3745
        %v3754 = vadd.f32 %v3693, %v3746
        %v3755 = vadd.f32 %v3694, %v3747
        %v3756 = vadd.f32 %v2046, %v3748
        %v3757 = vadd.f32 %v2047, %v3749
        %v3758 = vadd.f32 %v2048, %v3750
        %v3759 = vadd.f32 %v2049, %v3751
        %v3760 = vadd.f32 %v2050, %v3752
        %v3761 = vadd.f32 %v2051, %v3753
        %v3762 = vadd.f32 %v2052, %v3754
        %v3763 = vadd.f32 %v2053, %v3755
        %v3765 = vlaneseq
        %v3766 = vshrl.u32 %v3765, 7
        %v3767 = vsub.s32 0, %v3766
        %v3768 = vrot.slane %v290, %v3767
        %v3770 = vadd.f32 %v3756, %v3768
        %v3771 = vadd.f32 %v3757, %v3768
        %v3772 = vadd.f32 %v3758, %v3768
        %v3773 = vadd.f32 %v3759, %v3768
        %v3774 = vadd.f32 %v3760, %v3768
        %v3775 = vadd.f32 %v3761, %v3768
        %v3776 = vadd.f32 %v3762, %v3768
        %v3777 = vadd.f32 %v3763, %v3768
        %3778 = vst [vmem:[%s274] sm:$0xff] %v3770
        %3779 = vst [vmem:[%s274 + $0x8] sm:$0xff] %v3771
        %3780 = vst [vmem:[%s274 + $0x10] sm:$0xff] %v3772
        %3781 = vst [vmem:[%s274 + $0x18] sm:$0xff] %v3773
        %3782 = vst [vmem:[%s274 + $0x20] sm:$0xff] %v3774
        %3783 = vst [vmem:[%s274 + $0x28] sm:$0xff] %v3775
        %3784 = vst [vmem:[%s274 + $0x30] sm:$0xff] %v3776
        %3785 = vst [vmem:[%s274 + $0x38] sm:$0xff] %v3777
        %s3786 = sand.u32 %s169, 1
        %s3787 = scalar_lea.sflag [#allocation3], %s3786
        %s3788 = sand.u32 %s169, 1
        %s3789 = smul.addr %s3788, 64
        %s3790 = scalar_lea.vmem [#allocation2], %s3789
        // Predicated region
        $region45: #{lepe_attention.1} parent=43 // pred_check
          %p3791 = pneg %p179
        $region46: #{lepe_attention.1} parent=43 // pred_check_branch
          %3793 = sbr.rel (%p3791) target = $region48
        $region47: #{lepe_attention.1} parent=43 // pred_region
          %s3795 = ssub.s32 1024, 1024
          %3796 = vsyncadd %s3787, %s3795
          %s3797 = smul.addr %s20, 8
          %s3798 = smul.addr %s3797, 128
          %s3799 = scalar_lea.hbm %s6, %s3798
          %s3800 = sshll.u32 %s3790, 4
          %s3801 = int_to_ptr.vmem [resolvable:$true] %s3800
          %3806 = dma.vmem_to_hbm [thread:$0]  %s3801, 1024, %s3799, %s3787, 128, 128, 8
        $region48: #{lepe_attention.1} parent=43 // pred_fallthru
          _
      $region44: #{lepe_attention.1} parent=5 // pred_fallthru
        _
      %p3807 = scmp.le.s32.totalorder 2, %s15
      // Predicated region
      $region49: #{lepe_attention.1} parent=5 // pred_check
        %p3808 = pneg %p3807
      $region50: #{lepe_attention.1} parent=5 // pred_check_branch
        %3810 = sbr.rel (%p3808) target = $region52
      $region51: #{lepe_attention.1} parent=5 // pred_region
        %s3811 = ssub.s32 %s15, 2
        // Predicated region
        $region53: #{lepe_attention.1} parent=51 // pred_check
          %p3812 = pneg %p185
        $region54: #{lepe_attention.1} parent=51 // pred_check_branch
          %3814 = sbr.rel (%p3812) target = $region56
        $region55: #{lepe_attention.1} parent=51 // pred_region
          %s3815 = sand.u32 %s170, 1
          %s3816 = scalar_lea.sflag [#allocation3], %s3815
          %s3817 = sand.u32 %s170, 1
          %s3818 = smul.addr %s3817, 64
          %s3819 = scalar_lea.vmem [#allocation2], %s3818
          %3820 = dma.done %s3816, 1024
        $region56: #{lepe_attention.1} parent=51 // pred_fallthru
          _
      $region52: #{lepe_attention.1} parent=5 // pred_fallthru
        _
    $region6: #{lepe_attention.1} parent=1 // loop_footer
      %s19 = sadd.s32 1, %s15
    $region7: #{lepe_attention.1} parent=1 // loop_footer_branch
      %14 = sbr.rel target = $region3
    $region8: #{lepe_attention.1} parent=1 // loop_exit
      _
    %3821 = vsyncpa [#allocation3], 1
    %s3822 = scalar_lea.sflag [#allocation3], 1
    %3823 = vsyncpa %s3822, 1

</llo_original>
